<compile_context>
chip_gen: v5e
topology: v5e:2x2
jax: 0.10.0
libtpu: 0.0.40
codegen_flags: <defaults>
</compile_context>

<pallas_src>
import math
from functools import partial

import jax
import jax.numpy as jnp
from jax.experimental import pallas as pl
from jax.experimental.pallas import tpu as pltpu


# ----------------------------------------------------------------------------
# Cross-generation VMEM budgeting
# ----------------------------------------------------------------------------
# Tiles are chosen so the double-buffered working set stays under ~24 MiB
# (leaves pipelining headroom inside v7x's 64 MiB physical VMEM); the scoped
# limit is raised above the 16/32 MiB defaults so v5e/v6e accept the tiles.
_VMEM_LIMIT_BYTES = 48 * 1024 * 1024
_TILE_BUDGET_BYTES = 24 * 1024 * 1024

_M_TILES = (512, 256, 128, 64, 32, 16, 8)          # rows of the GEMMs (B*T)
_N_TILES = (1024, 768, 512, 384, 256, 128)         # output-feature tiles
_K_TILES = (1024, 768, 512, 384, 256, 128)         # contraction tiles (fallback)
_SEQ_TILES = (512, 256, 128, 64, 32, 16, 8)        # attention q / kv tiles


def _pick_div(dim, candidates):
    for c in candidates:
        if c <= dim and dim % c == 0:
            return c
    return dim  # full dim is always a legal block


def _cparams(dim_sems):
    return pltpu.CompilerParams(dimension_semantics=dim_sems,
                                vmem_limit_bytes=_VMEM_LIMIT_BYTES)


# ----------------------------------------------------------------------------
# Tiled linear (+ optional fused bias / GELU epilogue)
# ----------------------------------------------------------------------------

def _linear_fullk_kernel(x_ref, w_ref, b_ref, o_ref, *, activation):
    acc = jnp.dot(x_ref[...], w_ref[...], preferred_element_type=jnp.float32)
    acc = acc + b_ref[...].astype(jnp.float32)
    if activation == "gelu":
        acc = jax.nn.gelu(acc, approximate=True)     # tanh-approx -> EUP
    o_ref[...] = acc.astype(o_ref.dtype)


def _linear_ktiled_kernel(x_ref, w_ref, b_ref, o_ref, acc_ref, *, activation):
    @pl.when(pl.program_id(2) == 0)
    def _():
        acc_ref[...] = jnp.zeros_like(acc_ref)

    acc_ref[...] += jnp.dot(x_ref[...], w_ref[...],
                            preferred_element_type=jnp.float32)

    @pl.when(pl.program_id(2) == pl.num_programs(2) - 1)
    def _():
        acc = acc_ref[...] + b_ref[...].astype(jnp.float32)
        if activation == "gelu":
            acc = jax.nn.gelu(acc, approximate=True)
        o_ref[...] = acc.astype(o_ref.dtype)


def linear(x, w, b, activation=None):
    """x: (M, K), w: (K, N), b: (N,) -> (M, N) with fused bias/activation."""
    M, K = x.shape
    N = w.shape[1]
    tm = _pick_div(M, _M_TILES)
    tn = N if N <= 1024 else _pick_div(N, _N_TILES)
    b2 = b.reshape(1, N)

    # Single full-K pass whenever the double-buffered x/w/out tiles fit.
    fullk_bytes = 2 * 2 * (tm * K + K * tn + tm * tn)     # bf16, double-buffered
    if fullk_bytes <= _TILE_BUDGET_BYTES:
        return pl.pallas_call(
            partial(_linear_fullk_kernel, activation=activation),
            out_shape=jax.ShapeDtypeStruct((M, N), x.dtype),
            grid=(M // tm, N // tn),
            in_specs=[
                pl.BlockSpec((tm, K), lambda i, j: (i, 0)),
                pl.BlockSpec((K, tn), lambda i, j: (0, j)),
                pl.BlockSpec((1, tn), lambda i, j: (0, j)),
            ],
            out_specs=pl.BlockSpec((tm, tn), lambda i, j: (i, j)),
            compiler_params=_cparams(("parallel", "parallel")),
        )(x, w, b2)

    tk = _pick_div(K, _K_TILES)
    return pl.pallas_call(
        partial(_linear_ktiled_kernel, activation=activation),
        out_shape=jax.ShapeDtypeStruct((M, N), x.dtype),
        grid=(M // tm, N // tn, K // tk),
        in_specs=[
            pl.BlockSpec((tm, tk), lambda i, j, k: (i, k)),
            pl.BlockSpec((tk, tn), lambda i, j, k: (k, j)),
            pl.BlockSpec((1, tn), lambda i, j, k: (0, j)),
        ],
        out_specs=pl.BlockSpec((tm, tn), lambda i, j, k: (i, j)),
        scratch_shapes=[pltpu.VMEM((tm, tn), jnp.float32)],
        compiler_params=_cparams(("parallel", "parallel", "arbitrary")),
    )(x, w, b2)


# ----------------------------------------------------------------------------
# GEMM with fused bias + residual add + LayerNorm epilogue
#   out = LayerNorm(x @ w + b + residual)   (LN over the full feature dim)
# ----------------------------------------------------------------------------

def _mm_add_ln_fullk_kernel(x_ref, w_ref, b_ref, res_ref, g_ref, be_ref,
                            o_ref, *, eps):
    y = jnp.dot(x_ref[...], w_ref[...], preferred_element_type=jnp.float32)
    y = y + b_ref[...].astype(jnp.float32) + res_ref[...].astype(jnp.float32)
    mean = jnp.mean(y, axis=-1, keepdims=True)
    var = jnp.mean(jnp.square(y - mean), axis=-1, keepdims=True)
    y = (y - mean) * jax.lax.rsqrt(var + eps)
    y = y * g_ref[...].astype(jnp.float32) + be_ref[...].astype(jnp.float32)
    o_ref[...] = y.astype(o_ref.dtype)


def _mm_add_ln_ktiled_kernel(x_ref, w_ref, b_ref, res_ref, g_ref, be_ref,
                             o_ref, acc_ref, *, eps):
    @pl.when(pl.program_id(1) == 0)
    def _():
        acc_ref[...] = jnp.zeros_like(acc_ref)

    acc_ref[...] += jnp.dot(x_ref[...], w_ref[...],
                            preferred_element_type=jnp.float32)

    @pl.when(pl.program_id(1) == pl.num_programs(1) - 1)
    def _():
        y = (acc_ref[...] + b_ref[...].astype(jnp.float32)
             + res_ref[...].astype(jnp.float32))
        mean = jnp.mean(y, axis=-1, keepdims=True)
        var = jnp.mean(jnp.square(y - mean), axis=-1, keepdims=True)
        y = (y - mean) * jax.lax.rsqrt(var + eps)
        y = y * g_ref[...].astype(jnp.float32) + be_ref[...].astype(jnp.float32)
        o_ref[...] = y.astype(o_ref.dtype)


def matmul_add_layernorm(x, w, b, residual, gamma, beta, eps=1e-5):
    """LayerNorm(x @ w + b + residual).  x: (M, K), w: (K, D), residual: (M, D)."""
    M, K = x.shape
    D = w.shape[1]
    tm = _pick_div(M, _M_TILES)
    b2, g2, be2 = b.reshape(1, D), gamma.reshape(1, D), beta.reshape(1, D)

    fullk_bytes = 2 * 2 * (tm * K + K * D + tm * D) + 2 * 2 * tm * D
    if fullk_bytes <= _TILE_BUDGET_BYTES:
        return pl.pallas_call(
            partial(_mm_add_ln_fullk_kernel, eps=eps),
            out_shape=jax.ShapeDtypeStruct((M, D), x.dtype),
            grid=(M // tm,),
            in_specs=[
                pl.BlockSpec((tm, K), lambda i: (i, 0)),
                pl.BlockSpec((K, D), lambda i: (0, 0)),
                pl.BlockSpec((1, D), lambda i: (0, 0)),
                pl.BlockSpec((tm, D), lambda i: (i, 0)),
                pl.BlockSpec((1, D), lambda i: (0, 0)),
                pl.BlockSpec((1, D), lambda i: (0, 0)),
            ],
            out_specs=pl.BlockSpec((tm, D), lambda i: (i, 0)),
            compiler_params=_cparams(("parallel",)),
        )(x, w, b2, residual, g2, be2)

    tk = _pick_div(K, _K_TILES)
    return pl.pallas_call(
        partial(_mm_add_ln_ktiled_kernel, eps=eps),
        out_shape=jax.ShapeDtypeStruct((M, D), x.dtype),
        grid=(M // tm, K // tk),
        in_specs=[
            pl.BlockSpec((tm, tk), lambda i, k: (i, k)),
            pl.BlockSpec((tk, D), lambda i, k: (k, 0)),
            pl.BlockSpec((1, D), lambda i, k: (0, 0)),
            pl.BlockSpec((tm, D), lambda i, k: (i, 0)),
            pl.BlockSpec((1, D), lambda i, k: (0, 0)),
            pl.BlockSpec((1, D), lambda i, k: (0, 0)),
        ],
        out_specs=pl.BlockSpec((tm, D), lambda i, k: (i, 0)),
        scratch_shapes=[pltpu.VMEM((tm, D), jnp.float32)],
        compiler_params=_cparams(("parallel", "arbitrary")),
    )(x, w, b2, residual, g2, be2)


# ----------------------------------------------------------------------------
# Positional-encoding add: x(B,T,D) + pe(T,D), tiled over (B, T)
# ----------------------------------------------------------------------------

def _add_pe_kernel(x_ref, pe_ref, o_ref):
    y = x_ref[...].astype(jnp.float32) + pe_ref[...].astype(jnp.float32)
    o_ref[...] = y.astype(o_ref.dtype)


def add_positional(x, pe):
    B, T, D = x.shape
    tt = _pick_div(T, _SEQ_TILES)
    return pl.pallas_call(
        _add_pe_kernel,
        out_shape=jax.ShapeDtypeStruct((B, T, D), x.dtype),
        grid=(B, T // tt),
        in_specs=[pl.BlockSpec((1, tt, D), lambda b, t: (b, t, 0)),
                  pl.BlockSpec((tt, D), lambda b, t: (t, 0))],
        out_specs=pl.BlockSpec((1, tt, D), lambda b, t: (b, t, 0)),
        compiler_params=_cparams(("parallel", "parallel")),
    )(x, pe)


# ----------------------------------------------------------------------------
# Flash-style multi-head attention reading the fused QKV projection directly.
#   qkv: (B, T, 3*D) row-major (columns [0,D)=Q, [D,2D)=K, [2D,3D)=V, heads
#   packed contiguously inside each group).  Output: (B, T, D) lane-dense.
# ----------------------------------------------------------------------------

def _flash_kernel(q_ref, k_ref, v_ref, o_ref, m_sc, l_sc, acc_sc,
                  *, num_heads, head_dim, scale):
    ki = pl.program_id(2)

    @pl.when(ki == 0)
    def _():
        m_sc[...] = jnp.full(m_sc.shape, -jnp.inf, m_sc.dtype)
        l_sc[...] = jnp.zeros_like(l_sc)
        acc_sc[...] = jnp.zeros_like(acc_sc)

    # Fold 1/sqrt(Dh) into Q once per step (not into the (tq, tk) score slab).
    q = q_ref[0] * scale        # (tq, D) bf16
    k = k_ref[0]                # (tk, D)
    v = v_ref[0]                # (tk, D)

    H, Dh = num_heads, head_dim
    for h in range(H):
        lo, hi = h * Dh, (h + 1) * Dh
        # (tq, Dh) x (tk, Dh) contracting head_dim -> (tq, tk), f32 on the MXU.
        s = jnp.einsum("qd,kd->qk", q[:, lo:hi], k[:, lo:hi],
                       preferred_element_type=jnp.float32)
        m_prev = m_sc[:, h:h + 1]                                   # (tq, 1)
        m_new = jnp.maximum(m_prev, jnp.max(s, axis=-1, keepdims=True))
        alpha = jnp.exp(m_prev - m_new)
        p = jnp.exp(s - m_new)
        l_sc[:, h:h + 1] = alpha * l_sc[:, h:h + 1] + jnp.sum(p, axis=-1,
                                                              keepdims=True)
        acc_sc[:, lo:hi] = alpha * acc_sc[:, lo:hi] + jnp.dot(
            p.astype(v.dtype), v[:, lo:hi], preferred_element_type=jnp.float32)
        m_sc[:, h:h + 1] = m_new

    @pl.when(ki == pl.num_programs(2) - 1)
    def _():
        # Exact normalization (once per q-tile); emit one lane-dense (tq, D)
        # block with heads already packed along the lane axis.
        pieces = []
        for h in range(H):
            lo, hi = h * Dh, (h + 1) * Dh
            pieces.append(acc_sc[:, lo:hi] / l_sc[:, h:h + 1])
        o_ref[0] = jnp.concatenate(pieces, axis=-1).astype(o_ref.dtype)


def flash_attention_fused(qkv, num_heads):
    """qkv: (B, T, 3*D) fused projection -> (B, T, D) attention output."""
    B, T, threeD = qkv.shape
    D = threeD // 3
    H = num_heads
    Dh = D // H
    scale = 1.0 / math.sqrt(Dh)
    tq = _pick_div(T, _SEQ_TILES)
    tk = _pick_div(T, _SEQ_TILES)

    return pl.pallas_call(
        partial(_flash_kernel, num_heads=H, head_dim=Dh, scale=scale),
        out_shape=jax.ShapeDtypeStruct((B, T, D), qkv.dtype),
        grid=(B, T // tq, T // tk),
        in_specs=[
            # Same HBM buffer, three views: last-axis block index selects Q/K/V.
            pl.BlockSpec((1, tq, D), lambda b, qi, ki: (b, qi, 0)),   # Q cols
            pl.BlockSpec((1, tk, D), lambda b, qi, ki: (b, ki, 1)),   # K cols
            pl.BlockSpec((1, tk, D), lambda b, qi, ki: (b, ki, 2)),   # V cols
        ],
        out_specs=pl.BlockSpec((1, tq, D), lambda b, qi, ki: (b, qi, 0)),
        scratch_shapes=[
            pltpu.VMEM((tq, H), jnp.float32),      # running max, per head
            pltpu.VMEM((tq, H), jnp.float32),      # running denom, per head
            pltpu.VMEM((tq, D), jnp.float32),      # lane-dense accumulator
        ],
        compiler_params=_cparams(("parallel", "parallel", "arbitrary")),
    )(qkv, qkv, qkv)


def multi_head_attention(qkv2d, B, T, num_heads):
    """qkv2d: (B*T, 3*D) fused projection -> attention output (B*T, D).

    Free, contiguous reshapes only — no HBM transposes around the kernel.
    """
    D = qkv2d.shape[1] // 3
    out = flash_attention_fused(qkv2d.reshape(B, T, 3 * D), num_heads)
    return out.reshape(B * T, D)


# ----------------------------------------------------------------------------
# Parameter setup + forward (glue in plain JAX)
# ----------------------------------------------------------------------------

def sinusoidal_positional_embeddings(seq_len, dim, dtype=jnp.float32):
    pos = jnp.arange(seq_len, dtype=jnp.float32)[:, None]         # (T, 1)
    i = jnp.arange(dim // 2, dtype=jnp.float32)[None, :]          # (1, D/2)
    angle = pos / jnp.power(10000.0, (2.0 * i) / dim)             # (T, D/2)
    pe = jnp.zeros((seq_len, dim), dtype=jnp.float32)
    pe = pe.at[:, 0::2].set(jnp.sin(angle))
    pe = pe.at[:, 1::2].set(jnp.cos(angle))
    return pe.astype(dtype)


def init_params(key, model_dim, embedding_dim, num_layers, ffn_mult=4,
                dtype=jnp.bfloat16):
    params = {"layers": []}
    ffn_dim = ffn_mult * model_dim

    def w(key, shape, scale=0.02):
        return (scale * jax.random.normal(key, shape)).astype(dtype)

    for _ in range(num_layers):
        key, *ks = jax.random.split(key, 5)
        layer = {
            # fused Q|K|V projection, heads packed contiguously in each group
            "w_qkv": w(ks[0], (model_dim, 3 * model_dim)),
            "b_qkv": jnp.zeros((3 * model_dim,), dtype),
            "wo": w(ks[1], (model_dim, model_dim)), "bo": jnp.zeros((model_dim,), dtype),
            "w1": w(ks[2], (model_dim, ffn_dim)),   "b1": jnp.zeros((ffn_dim,), dtype),
            "w2": w(ks[3], (ffn_dim, model_dim)),   "b2": jnp.zeros((model_dim,), dtype),
            "ln1_g": jnp.ones((model_dim,), dtype), "ln1_b": jnp.zeros((model_dim,), dtype),
            "ln2_g": jnp.ones((model_dim,), dtype), "ln2_b": jnp.zeros((model_dim,), dtype),
        }
        params["layers"].append(layer)

    key, k_lin = jax.random.split(key)
    params["lin_w"] = w(k_lin, (model_dim, embedding_dim))
    params["lin_b"] = jnp.zeros((embedding_dim,), dtype)
    return params


def transformer_net_forward(params, x, *, num_heads,
                            apply_positional_encodings=True, padding_mask=None):
    """x: (B, T, model_dim) -> (B, T, embedding_dim)."""
    # TODO(synk): padding_mask support (key masking) is not implemented.
    B, T, D = x.shape
    E = params["lin_w"].shape[1]

    if apply_positional_encodings:
        pe = sinusoidal_positional_embeddings(T, D, x.dtype)
        x = add_positional(x, pe)

    y2d = x.reshape(B * T, D)

    for layer in params["layers"]:
        # --- multi-head self-attention (post-LN: y = LN1(y + O(MHA(y)))) ---
        qkv = linear(y2d, layer["w_qkv"], layer["b_qkv"])          # fused QKV GEMM
        attn = multi_head_attention(qkv, B, T, num_heads)          # (B*T, D)
        y2d = matmul_add_layernorm(attn, layer["wo"], layer["bo"],
                                   y2d, layer["ln1_g"], layer["ln1_b"])

        # --- feed-forward (y = LN2(y + W2(GELU(W1 y)))) ---
        h = linear(y2d, layer["w1"], layer["b1"], activation="gelu")
        y2d = matmul_add_layernorm(h, layer["w2"], layer["b2"],
                                   y2d, layer["ln2_g"], layer["ln2_b"])

    out = linear(y2d, params["lin_w"], params["lin_b"])
    return out.reshape(B, T, E)


# ----------------------------------------------------------------------------
# Demo
# ----------------------------------------------------------------------------

if __name__ == "__main__":
    # Small config consistent with TransformerNet(model_dim, embedding_dim, ...).
    B, T = 2, 16
    MODEL_DIM = 128          # lane-dense, like the real decoder's 768
    EMBEDDING_DIM = 128      # EnCodec embedding dim
    NUM_LAYERS = 2
    NUM_HEADS = 4            # model_dim divisible by num_heads (head_dim = 32)

    key = jax.random.PRNGKey(0)
    k_params, k_x = jax.random.split(key)
    params = init_params(k_params, MODEL_DIM, EMBEDDING_DIM, NUM_LAYERS,
                         dtype=jnp.bfloat16)
    x = jax.random.normal(k_x, (B, T, MODEL_DIM)).astype(jnp.bfloat16)

    fwd = jax.jit(partial(transformer_net_forward, num_heads=NUM_HEADS,
                          apply_positional_encodings=True, padding_mask=None))
    out = fwd(params, x)
    out = jax.block_until_ready(out)
    assert out.shape == (B, T, EMBEDDING_DIM)
    assert bool(jnp.all(jnp.isfinite(out.astype(jnp.float32))))
    print("KERNEL_OK")
</pallas_src>

<mosaic_0001>
module attributes {stable_mosaic.version = 11 : i64} {
  func.func @_linear_fullk_kernel(%arg0: i32, %arg1: i32, %arg2: memref<32x128xbf16, #tpu.memory_space<vmem>>, %arg3: memref<128x384xbf16, #tpu.memory_space<vmem>>, %arg4: memref<1x384xbf16, #tpu.memory_space<vmem>>, %arg5: memref<32x384xbf16, #tpu.memory_space<vmem>>) attributes {dimension_semantics = [#tpu.dimension_semantics<parallel>, #tpu.dimension_semantics<parallel>], iteration_bounds = array<i64: 1, 1>, scalar_prefetch = 0 : i64, scratch_operands = 0 : i64, tpu.core_type = #tpu.core_type<tc>, window_params = [{transform_indices = @transform_0, window_bounds = array<i64: 32, 128>}, {transform_indices = @transform_1, window_bounds = array<i64: 128, 384>}, {transform_indices = @transform_2, window_bounds = array<i64: 1, 384>}, {transform_indices = @transform_3, window_bounds = array<i64: 32, 384>}]} {
    %c0 = arith.constant 0 : index
    %c0_0 = arith.constant 0 : index
    %0 = vector.load %arg2[%c0, %c0_0] : memref<32x128xbf16, #tpu.memory_space<vmem>>, vector<32x128xbf16>
    %c0_1 = arith.constant 0 : index
    %c0_2 = arith.constant 0 : index
    %1 = vector.load %arg3[%c0_1, %c0_2] : memref<128x384xbf16, #tpu.memory_space<vmem>>, vector<128x384xbf16>
    %cst = arith.constant dense<0.000000e+00> : vector<32x384xf32>
    %2 = tpu.matmul %0, %1, %cst {dimension_numbers = #tpu.dot_dimension_numbers<[1], [0], [0], [1], [0, 0, 1, 1], [], []>} : vector<32x128xbf16>, vector<128x384xbf16>, vector<32x384xf32> -> vector<32x384xf32>
    %c0_3 = arith.constant 0 : index
    %c0_4 = arith.constant 0 : index
    %3 = vector.load %arg4[%c0_3, %c0_4] : memref<1x384xbf16, #tpu.memory_space<vmem>>, vector<1x384xbf16>
    %4 = arith.extf %3 : vector<1x384xbf16> to vector<1x384xf32>
    %5 = vector.broadcast %4 : vector<1x384xf32> to vector<32x384xf32>
    %6 = arith.addf %2, %5 : vector<32x384xf32>
    %7 = arith.truncf %6 : vector<32x384xf32> to vector<32x384xbf16>
    %c0_5 = arith.constant 0 : index
    %c0_6 = arith.constant 0 : index
    %8 = vector.load %arg5[%c0_5, %c0_6] : memref<32x384xbf16, #tpu.memory_space<vmem>>, vector<32x384xbf16>
    tpu.vector_store %arg5[%c0_5, %c0_6], %7 {strides = array<i32>} : memref<32x384xbf16, #tpu.memory_space<vmem>>, vector<32x384xbf16>,
    return
  }
  func.func @transform_0(%arg0: i32, %arg1: i32) -> (i32, i32) {
    %c0_i32 = arith.constant 0 : i32
    %c0_i32_0 = arith.constant 0 : i32
    return %arg0, %c0_i32 : i32, i32
  }
  func.func @transform_1(%arg0: i32, %arg1: i32) -> (i32, i32) {
    %c0_i32 = arith.constant 0 : i32
    %c0_i32_0 = arith.constant 0 : i32
    return %c0_i32, %arg1 : i32, i32
  }
  func.func @transform_2(%arg0: i32, %arg1: i32) -> (i32, i32) {
    %c0_i32 = arith.constant 0 : i32
    %c0_i32_0 = arith.constant 0 : i32
    return %c0_i32, %arg1 : i32, i32
  }
  func.func @transform_3(%arg0: i32, %arg1: i32) -> (i32, i32) {
    %c0_i32 = arith.constant 0 : i32
    return %arg0, %arg1 : i32, i32
  }
}

module attributes {stable_mosaic.version = 11 : i64} {
  func.func @_add_pe_kernel(%arg0: i32, %arg1: i32, %arg2: memref<1x16x128xbf16, #tpu.memory_space<vmem>>, %arg3: memref<16x128xbf16, #tpu.memory_space<vmem>>, %arg4: memref<1x16x128xbf16, #tpu.memory_space<vmem>>) attributes {dimension_semantics = [#tpu.dimension_semantics<parallel>, #tpu.dimension_semantics<parallel>], iteration_bounds = array<i64: 2, 1>, scalar_prefetch = 0 : i64, scratch_operands = 0 : i64, tpu.core_type = #tpu.core_type<tc>, window_params = [{transform_indices = @transform_0, window_bounds = array<i64: 1, 16, 128>}, {transform_indices = @transform_1, window_bounds = array<i64: 16, 128>}, {transform_indices = @transform_2, window_bounds = array<i64: 1, 16, 128>}]} {
    %c0 = arith.constant 0 : index
    %c0_0 = arith.constant 0 : index
    %c0_1 = arith.constant 0 : index
    %0 = vector.load %arg2[%c0, %c0_0, %c0_1] : memref<1x16x128xbf16, #tpu.memory_space<vmem>>, vector<1x16x128xbf16>
    %1 = arith.extf %0 : vector<1x16x128xbf16> to vector<1x16x128xf32>
    %c0_2 = arith.constant 0 : index
    %c0_3 = arith.constant 0 : index
    %2 = vector.load %arg3[%c0_2, %c0_3] : memref<16x128xbf16, #tpu.memory_space<vmem>>, vector<16x128xbf16>
    %3 = arith.extf %2 : vector<16x128xbf16> to vector<16x128xf32>
    %4 = vector.shape_cast %3 : vector<16x128xf32> to vector<1x16x128xf32>
    %5 = arith.addf %1, %4 : vector<1x16x128xf32>
    %6 = arith.truncf %5 : vector<1x16x128xf32> to vector<1x16x128xbf16>
    %c0_4 = arith.constant 0 : index
    %c0_5 = arith.constant 0 : index
    %c0_6 = arith.constant 0 : index
    %7 = vector.load %arg4[%c0_4, %c0_5, %c0_6] : memref<1x16x128xbf16, #tpu.memory_space<vmem>>, vector<1x16x128xbf16>
    tpu.vector_store %arg4[%c0_4, %c0_5, %c0_6], %6 {strides = array<i32>} : memref<1x16x128xbf16, #tpu.memory_space<vmem>>, vector<1x16x128xbf16>,
    return
  }
  func.func @transform_0(%arg0: i32, %arg1: i32) -> (i32, i32, i32) {
    %c0_i32 = arith.constant 0 : i32
    %c0_i32_0 = arith.constant 0 : i32
    return %arg0, %arg1, %c0_i32 : i32, i32, i32
  }
  func.func @transform_1(%arg0: i32, %arg1: i32) -> (i32, i32) {
    %c0_i32 = arith.constant 0 : i32
    %c0_i32_0 = arith.constant 0 : i32
    return %arg1, %c0_i32 : i32, i32
  }
  func.func @transform_2(%arg0: i32, %arg1: i32) -> (i32, i32, i32) {
    %c0_i32 = arith.constant 0 : i32
    %c0_i32_0 = arith.constant 0 : i32
    return %arg0, %arg1, %c0_i32 : i32, i32, i32
  }
}

module attributes {stable_mosaic.version = 11 : i64} {
  func.func @_flash_kernel(%arg0: i32, %arg1: i32, %arg2: i32, %arg3: memref<1x16x128xbf16, #tpu.memory_space<vmem>>, %arg4: memref<1x16x128xbf16, #tpu.memory_space<vmem>>, %arg5: memref<1x16x128xbf16, #tpu.memory_space<vmem>>, %arg6: memref<1x16x128xbf16, #tpu.memory_space<vmem>>, %arg7: memref<16x4xf32, #tpu.memory_space<vmem>>, %arg8: memref<16x4xf32, #tpu.memory_space<vmem>>, %arg9: memref<16x128xf32, #tpu.memory_space<vmem>>) attributes {dimension_semantics = [#tpu.dimension_semantics<parallel>, #tpu.dimension_semantics<parallel>, #tpu.dimension_semantics<arbitrary>], iteration_bounds = array<i64: 2, 1, 1>, scalar_prefetch = 0 : i64, scratch_operands = 3 : i64, tpu.core_type = #tpu.core_type<tc>, window_params = [{transform_indices = @transform_0, window_bounds = array<i64: 1, 16, 128>}, {transform_indices = @transform_1, window_bounds = array<i64: 1, 16, 128>}, {transform_indices = @transform_2, window_bounds = array<i64: 1, 16, 128>}, {transform_indices = @transform_3, window_bounds = array<i64: 1, 16, 128>}]} {
    %c0_i32 = arith.constant 0 : i32
    %0 = arith.cmpi eq, %arg2, %c0_i32 : i32
    %1 = arith.extui %0 : i1 to i32
    %c0_i32_0 = arith.constant 0 : i32
    %2 = arith.cmpi ne, %1, %c0_i32_0 : i32
    scf.if %2 {
      %cst_69 = arith.constant 0xFF800000 : f32
      %122 = vector.broadcast %cst_69 : f32 to vector<16x4xf32>
      %c0_70 = arith.constant 0 : index
      %c0_71 = arith.constant 0 : index
      %123 = vector.load %arg7[%c0_70, %c0_71] : memref<16x4xf32, #tpu.memory_space<vmem>>, vector<16x4xf32>
      tpu.vector_store %arg7[%c0_70, %c0_71], %122 {strides = array<i32>} : memref<16x4xf32, #tpu.memory_space<vmem>>, vector<16x4xf32>,
      %cst_72 = arith.constant 0.000000e+00 : f32
      %124 = vector.broadcast %cst_72 : f32 to vector<16x4xf32>
      %c0_73 = arith.constant 0 : index
      %c0_74 = arith.constant 0 : index
      %125 = vector.load %arg8[%c0_73, %c0_74] : memref<16x4xf32, #tpu.memory_space<vmem>>, vector<16x4xf32>
      tpu.vector_store %arg8[%c0_73, %c0_74], %124 {strides = array<i32>} : memref<16x4xf32, #tpu.memory_space<vmem>>, vector<16x4xf32>,
      %cst_75 = arith.constant 0.000000e+00 : f32
      %126 = vector.broadcast %cst_75 : f32 to vector<16x128xf32>
      %c0_76 = arith.constant 0 : index
      %c0_77 = arith.constant 0 : index
      %127 = vector.load %arg9[%c0_76, %c0_77] : memref<16x128xf32, #tpu.memory_space<vmem>>, vector<16x128xf32>
      tpu.vector_store %arg9[%c0_76, %c0_77], %126 {strides = array<i32>} : memref<16x128xf32, #tpu.memory_space<vmem>>, vector<16x128xf32>,
    } else {
    }
    %c0 = arith.constant 0 : index
    %c0_1 = arith.constant 0 : index
    %c0_2 = arith.constant 0 : index
    %3 = vector.load %arg3[%c0, %c0_1, %c0_2] : memref<1x16x128xbf16, #tpu.memory_space<vmem>>, vector<1x16x128xbf16>
    %4 = vector.shape_cast %3 : vector<1x16x128xbf16> to vector<16x128xbf16>
    %cst = arith.constant 1.767580e-01 : bf16
    %5 = vector.broadcast %cst : bf16 to vector<16x128xbf16>
    %6 = arith.mulf %4, %5 : vector<16x128xbf16>
    %c0_3 = arith.constant 0 : index
    %c0_4 = arith.constant 0 : index
    %c0_5 = arith.constant 0 : index
    %7 = vector.load %arg4[%c0_3, %c0_4, %c0_5] : memref<1x16x128xbf16, #tpu.memory_space<vmem>>, vector<1x16x128xbf16>
    %8 = vector.shape_cast %7 : vector<1x16x128xbf16> to vector<16x128xbf16>
    %c0_6 = arith.constant 0 : index
    %c0_7 = arith.constant 0 : index
    %c0_8 = arith.constant 0 : index
    %9 = vector.load %arg5[%c0_6, %c0_7, %c0_8] : memref<1x16x128xbf16, #tpu.memory_space<vmem>>, vector<1x16x128xbf16>
    %10 = vector.shape_cast %9 : vector<1x16x128xbf16> to vector<16x128xbf16>
    %11 = vector.extract_strided_slice %6 {offsets = [0, 0], sizes = [16, 32], strides = [1, 1]} : vector<16x128xbf16> to vector<16x32xbf16>
    %12 = vector.extract_strided_slice %8 {offsets = [0, 0], sizes = [16, 32], strides = [1, 1]} : vector<16x128xbf16> to vector<16x32xbf16>
    "tpu.trace_start"() <{level = 10 : i32, message = "qd,kd->qk"}> : () -> ()
    %cst_9 = arith.constant dense<0.000000e+00> : vector<16x16xf32>
    %13 = tpu.matmul %11, %12, %cst_9 {dimension_numbers = #tpu.dot_dimension_numbers<[1], [1], [0], [0], [0, 0, 1, 0], [], []>} : vector<16x32xbf16>, vector<16x32xbf16>, vector<16x16xf32> -> vector<16x16xf32>
    "tpu.trace_stop"() : () -> ()
    %c0_10 = arith.constant 0 : index
    %c0_11 = arith.constant 0 : index
    %14 = vector.load %arg7[%c0_10, %c0_11] : memref<16x4xf32, #tpu.memory_space<vmem>>, vector<16x1xf32>
    %cst_12 = arith.constant dense<0xFF800000> : vector<16xf32>
    %15 = vector.multi_reduction <maximumf>, %13, %cst_12 [1] : vector<16x16xf32> to vector<16xf32>
    %16 = vector.shape_cast %15 : vector<16xf32> to vector<16x1xf32>
    %17 = arith.maximumf %14, %16 : vector<16x1xf32>
    %18 = arith.subf %14, %17 : vector<16x1xf32>
    %19 = math.exp %18 : vector<16x1xf32>
    %20 = vector.broadcast %17 : vector<16x1xf32> to vector<16x16xf32>
    %21 = arith.subf %13, %20 : vector<16x16xf32>
    %22 = math.exp %21 : vector<16x16xf32>
    %c0_13 = arith.constant 0 : index
    %c0_14 = arith.constant 0 : index
    %23 = vector.load %arg8[%c0_13, %c0_14] : memref<16x4xf32, #tpu.memory_space<vmem>>, vector<16x1xf32>
    %24 = arith.mulf %19, %23 : vector<16x1xf32>
    %cst_15 = arith.constant dense<0.000000e+00> : vector<16xf32>
    %25 = vector.multi_reduction <add>, %22, %cst_15 [1] : vector<16x16xf32> to vector<16xf32>
    %26 = vector.shape_cast %25 : vector<16xf32> to vector<16x1xf32>
    %27 = arith.addf %24, %26 : vector<16x1xf32>
    %c0_16 = arith.constant 0 : index
    %c0_17 = arith.constant 0 : index
    %28 = vector.load %arg8[%c0_16, %c0_17] : memref<16x4xf32, #tpu.memory_space<vmem>>, vector<16x1xf32>
    tpu.vector_store %arg8[%c0_16, %c0_17], %27 {strides = array<i32>} : memref<16x4xf32, #tpu.memory_space<vmem>>, vector<16x1xf32>,
    %c0_18 = arith.constant 0 : index
    %c0_19 = arith.constant 0 : index
    %29 = vector.load %arg9[%c0_18, %c0_19] : memref<16x128xf32, #tpu.memory_space<vmem>>, vector<16x32xf32>
    %30 = vector.broadcast %19 : vector<16x1xf32> to vector<16x32xf32>
    %31 = arith.mulf %30, %29 : vector<16x32xf32>
    %32 = arith.truncf %22 : vector<16x16xf32> to vector<16x16xbf16>
    %33 = vector.extract_strided_slice %10 {offsets = [0, 0], sizes = [16, 32], strides = [1, 1]} : vector<16x128xbf16> to vector<16x32xbf16>
    %cst_20 = arith.constant dense<0.000000e+00> : vector<16x32xf32>
    %34 = tpu.matmul %32, %33, %cst_20 {dimension_numbers = #tpu.dot_dimension_numbers<[1], [0], [0], [1], [0, 0, 1, 1], [], []>} : vector<16x16xbf16>, vector<16x32xbf16>, vector<16x32xf32> -> vector<16x32xf32>
    %35 = arith.addf %31, %34 : vector<16x32xf32>
    %c0_21 = arith.constant 0 : index
    %c0_22 = arith.constant 0 : index
    %36 = vector.load %arg9[%c0_21, %c0_22] : memref<16x128xf32, #tpu.memory_space<vmem>>, vector<16x32xf32>
    tpu.vector_store %arg9[%c0_21, %c0_22], %35 {strides = array<i32>} : memref<16x128xf32, #tpu.memory_space<vmem>>, vector<16x32xf32>,
    %c0_23 = arith.constant 0 : index
    %c0_24 = arith.constant 0 : index
    %37 = vector.load %arg7[%c0_23, %c0_24] : memref<16x4xf32, #tpu.memory_space<vmem>>, vector<16x1xf32>
    tpu.vector_store %arg7[%c0_23, %c0_24], %17 {strides = array<i32>} : memref<16x4xf32, #tpu.memory_space<vmem>>, vector<16x1xf32>,
    %38 = vector.extract_strided_slice %6 {offsets = [0, 32], sizes = [16, 32], strides = [1, 1]} : vector<16x128xbf16> to vector<16x32xbf16>
    %39 = vector.extract_strided_slice %8 {offsets = [0, 32], sizes = [16, 32], strides = [1, 1]} : vector<16x128xbf16> to vector<16x32xbf16>
    "tpu.trace_start"() <{level = 10 : i32, message = "qd,kd->qk"}> : () -> ()
    %cst_25 = arith.constant dense<0.000000e+00> : vector<16x16xf32>
    %40 = tpu.matmul %38, %39, %cst_25 {dimension_numbers = #tpu.dot_dimension_numbers<[1], [1], [0], [0], [0, 0, 1, 0], [], []>} : vector<16x32xbf16>, vector<16x32xbf16>, vector<16x16xf32> -> vector<16x16xf32>
    "tpu.trace_stop"() : () -> ()
    %c0_26 = arith.constant 0 : index
    %c1 = arith.constant 1 : index
    %41 = vector.load %arg7[%c0_26, %c1] : memref<16x4xf32, #tpu.memory_space<vmem>>, vector<16x1xf32>
    %cst_27 = arith.constant dense<0xFF800000> : vector<16xf32>
    %42 = vector.multi_reduction <maximumf>, %40, %cst_27 [1] : vector<16x16xf32> to vector<16xf32>
    %43 = vector.shape_cast %42 : vector<16xf32> to vector<16x1xf32>
    %44 = arith.maximumf %41, %43 : vector<16x1xf32>
    %45 = arith.subf %41, %44 : vector<16x1xf32>
    %46 = math.exp %45 : vector<16x1xf32>
    %47 = vector.broadcast %44 : vector<16x1xf32> to vector<16x16xf32>
    %48 = arith.subf %40, %47 : vector<16x16xf32>
    %49 = math.exp %48 : vector<16x16xf32>
    %c0_28 = arith.constant 0 : index
    %c1_29 = arith.constant 1 : index
    %50 = vector.load %arg8[%c0_28, %c1_29] : memref<16x4xf32, #tpu.memory_space<vmem>>, vector<16x1xf32>
    %51 = arith.mulf %46, %50 : vector<16x1xf32>
    %cst_30 = arith.constant dense<0.000000e+00> : vector<16xf32>
    %52 = vector.multi_reduction <add>, %49, %cst_30 [1] : vector<16x16xf32> to vector<16xf32>
    %53 = vector.shape_cast %52 : vector<16xf32> to vector<16x1xf32>
    %54 = arith.addf %51, %53 : vector<16x1xf32>
    %c0_31 = arith.constant 0 : index
    %c1_32 = arith.constant 1 : index
    %55 = vector.load %arg8[%c0_31, %c1_32] : memref<16x4xf32, #tpu.memory_space<vmem>>, vector<16x1xf32>
    tpu.vector_store %arg8[%c0_31, %c1_32], %54 {strides = array<i32>} : memref<16x4xf32, #tpu.memory_space<vmem>>, vector<16x1xf32>,
    %c0_33 = arith.constant 0 : index
    %c32 = arith.constant 32 : index
    %56 = vector.load %arg9[%c0_33, %c32] : memref<16x128xf32, #tpu.memory_space<vmem>>, vector<16x32xf32>
    %57 = vector.broadcast %46 : vector<16x1xf32> to vector<16x32xf32>
    %58 = arith.mulf %57, %56 : vector<16x32xf32>
    %59 = arith.truncf %49 : vector<16x16xf32> to vector<16x16xbf16>
    %60 = vector.extract_strided_slice %10 {offsets = [0, 32], sizes = [16, 32], strides = [1, 1]} : vector<16x128xbf16> to vector<16x32xbf16>
    %cst_34 = arith.constant dense<0.000000e+00> : vector<16x32xf32>
    %61 = tpu.matmul %59, %60, %cst_34 {dimension_numbers = #tpu.dot_dimension_numbers<[1], [0], [0], [1], [0, 0, 1, 1], [], []>} : vector<16x16xbf16>, vector<16x32xbf16>, vector<16x32xf32> -> vector<16x32xf32>
    %62 = arith.addf %58, %61 : vector<16x32xf32>
    %c0_35 = arith.constant 0 : index
    %c32_36 = arith.constant 32 : index
    %63 = vector.load %arg9[%c0_35, %c32_36] : memref<16x128xf32, #tpu.memory_space<vmem>>, vector<16x32xf32>
    tpu.vector_store %arg9[%c0_35, %c32_36], %62 {strides = array<i32>} : memref<16x128xf32, #tpu.memory_space<vmem>>, vector<16x32xf32>,
    %c0_37 = arith.constant 0 : index
    %c1_38 = arith.constant 1 : index
    %64 = vector.load %arg7[%c0_37, %c1_38] : memref<16x4xf32, #tpu.memory_space<vmem>>, vector<16x1xf32>
    tpu.vector_store %arg7[%c0_37, %c1_38], %44 {strides = array<i32>} : memref<16x4xf32, #tpu.memory_space<vmem>>, vector<16x1xf32>,
    %65 = vector.extract_strided_slice %6 {offsets = [0, 64], sizes = [16, 32], strides = [1, 1]} : vector<16x128xbf16> to vector<16x32xbf16>
    %66 = vector.extract_strided_slice %8 {offsets = [0, 64], sizes = [16, 32], strides = [1, 1]} : vector<16x128xbf16> to vector<16x32xbf16>
    "tpu.trace_start"() <{level = 10 : i32, message = "qd,kd->qk"}> : () -> ()
    %cst_39 = arith.constant dense<0.000000e+00> : vector<16x16xf32>
    %67 = tpu.matmul %65, %66, %cst_39 {dimension_numbers = #tpu.dot_dimension_numbers<[1], [1], [0], [0], [0, 0, 1, 0], [], []>} : vector<16x32xbf16>, vector<16x32xbf16>, vector<16x16xf32> -> vector<16x16xf32>
    "tpu.trace_stop"() : () -> ()
    %c0_40 = arith.constant 0 : index
    %c2 = arith.constant 2 : index
    %68 = vector.load %arg7[%c0_40, %c2] : memref<16x4xf32, #tpu.memory_space<vmem>>, vector<16x1xf32>
    %cst_41 = arith.constant dense<0xFF800000> : vector<16xf32>
    %69 = vector.multi_reduction <maximumf>, %67, %cst_41 [1] : vector<16x16xf32> to vector<16xf32>
    %70 = vector.shape_cast %69 : vector<16xf32> to vector<16x1xf32>
    %71 = arith.maximumf %68, %70 : vector<16x1xf32>
    %72 = arith.subf %68, %71 : vector<16x1xf32>
    %73 = math.exp %72 : vector<16x1xf32>
    %74 = vector.broadcast %71 : vector<16x1xf32> to vector<16x16xf32>
    %75 = arith.subf %67, %74 : vector<16x16xf32>
    %76 = math.exp %75 : vector<16x16xf32>
    %c0_42 = arith.constant 0 : index
    %c2_43 = arith.constant 2 : index
    %77 = vector.load %arg8[%c0_42, %c2_43] : memref<16x4xf32, #tpu.memory_space<vmem>>, vector<16x1xf32>
    %78 = arith.mulf %73, %77 : vector<16x1xf32>
    %cst_44 = arith.constant dense<0.000000e+00> : vector<16xf32>
    %79 = vector.multi_reduction <add>, %76, %cst_44 [1] : vector<16x16xf32> to vector<16xf32>
    %80 = vector.shape_cast %79 : vector<16xf32> to vector<16x1xf32>
    %81 = arith.addf %78, %80 : vector<16x1xf32>
    %c0_45 = arith.constant 0 : index
    %c2_46 = arith.constant 2 : index
    %82 = vector.load %arg8[%c0_45, %c2_46] : memref<16x4xf32, #tpu.memory_space<vmem>>, vector<16x1xf32>
    tpu.vector_store %arg8[%c0_45, %c2_46], %81 {strides = array<i32>} : memref<16x4xf32, #tpu.memory_space<vmem>>, vector<16x1xf32>,
    %c0_47 = arith.constant 0 : index
    %c64 = arith.constant 64 : index
    %83 = vector.load %arg9[%c0_47, %c64] : memref<16x128xf32, #tpu.memory_space<vmem>>, vector<16x32xf32>
    %84 = vector.broadcast %73 : vector<16x1xf32> to vector<16x32xf32>
    %85 = arith.mulf %84, %83 : vector<16x32xf32>
    %86 = arith.truncf %76 : vector<16x16xf32> to vector<16x16xbf16>
    %87 = vector.extract_strided_slice %10 {offsets = [0, 64], sizes = [16, 32], strides = [1, 1]} : vector<16x128xbf16> to vector<16x32xbf16>
    %cst_48 = arith.constant dense<0.000000e+00> : vector<16x32xf32>
    %88 = tpu.matmul %86, %87, %cst_48 {dimension_numbers = #tpu.dot_dimension_numbers<[1], [0], [0], [1], [0, 0, 1, 1], [], []>} : vector<16x16xbf16>, vector<16x32xbf16>, vector<16x32xf32> -> vector<16x32xf32>
    %89 = arith.addf %85, %88 : vector<16x32xf32>
    %c0_49 = arith.constant 0 : index
    %c64_50 = arith.constant 64 : index
    %90 = vector.load %arg9[%c0_49, %c64_50] : memref<16x128xf32, #tpu.memory_space<vmem>>, vector<16x32xf32>
    tpu.vector_store %arg9[%c0_49, %c64_50], %89 {strides = array<i32>} : memref<16x128xf32, #tpu.memory_space<vmem>>, vector<16x32xf32>,
    %c0_51 = arith.constant 0 : index
    %c2_52 = arith.constant 2 : index
    %91 = vector.load %arg7[%c0_51, %c2_52] : memref<16x4xf32, #tpu.memory_space<vmem>>, vector<16x1xf32>
    tpu.vector_store %arg7[%c0_51, %c2_52], %71 {strides = array<i32>} : memref<16x4xf32, #tpu.memory_space<vmem>>, vector<16x1xf32>,
    %92 = vector.extract_strided_slice %6 {offsets = [0, 96], sizes = [16, 32], strides = [1, 1]} : vector<16x128xbf16> to vector<16x32xbf16>
    %93 = vector.extract_strided_slice %8 {offsets = [0, 96], sizes = [16, 32], strides = [1, 1]} : vector<16x128xbf16> to vector<16x32xbf16>
    "tpu.trace_start"() <{level = 10 : i32, message = "qd,kd->qk"}> : () -> ()
    %cst_53 = arith.constant dense<0.000000e+00> : vector<16x16xf32>
    %94 = tpu.matmul %92, %93, %cst_53 {dimension_numbers = #tpu.dot_dimension_numbers<[1], [1], [0], [0], [0, 0, 1, 0], [], []>} : vector<16x32xbf16>, vector<16x32xbf16>, vector<16x16xf32> -> vector<16x16xf32>
    "tpu.trace_stop"() : () -> ()
    %c0_54 = arith.constant 0 : index
    %c3 = arith.constant 3 : index
    %95 = vector.load %arg7[%c0_54, %c3] : memref<16x4xf32, #tpu.memory_space<vmem>>, vector<16x1xf32>
    %cst_55 = arith.constant dense<0xFF800000> : vector<16xf32>
    %96 = vector.multi_reduction <maximumf>, %94, %cst_55 [1] : vector<16x16xf32> to vector<16xf32>
    %97 = vector.shape_cast %96 : vector<16xf32> to vector<16x1xf32>
    %98 = arith.maximumf %95, %97 : vector<16x1xf32>
    %99 = arith.subf %95, %98 : vector<16x1xf32>
    %100 = math.exp %99 : vector<16x1xf32>
    %101 = vector.broadcast %98 : vector<16x1xf32> to vector<16x16xf32>
    %102 = arith.subf %94, %101 : vector<16x16xf32>
    %103 = math.exp %102 : vector<16x16xf32>
    %c0_56 = arith.constant 0 : index
    %c3_57 = arith.constant 3 : index
    %104 = vector.load %arg8[%c0_56, %c3_57] : memref<16x4xf32, #tpu.memory_space<vmem>>, vector<16x1xf32>
    %105 = arith.mulf %100, %104 : vector<16x1xf32>
    %cst_58 = arith.constant dense<0.000000e+00> : vector<16xf32>
    %106 = vector.multi_reduction <add>, %103, %cst_58 [1] : vector<16x16xf32> to vector<16xf32>
    %107 = vector.shape_cast %106 : vector<16xf32> to vector<16x1xf32>
    %108 = arith.addf %105, %107 : vector<16x1xf32>
    %c0_59 = arith.constant 0 : index
    %c3_60 = arith.constant 3 : index
    %109 = vector.load %arg8[%c0_59, %c3_60] : memref<16x4xf32, #tpu.memory_space<vmem>>, vector<16x1xf32>
    tpu.vector_store %arg8[%c0_59, %c3_60], %108 {strides = array<i32>} : memref<16x4xf32, #tpu.memory_space<vmem>>, vector<16x1xf32>,
    %c0_61 = arith.constant 0 : index
    %c96 = arith.constant 96 : index
    %110 = vector.load %arg9[%c0_61, %c96] : memref<16x128xf32, #tpu.memory_space<vmem>>, vector<16x32xf32>
    %111 = vector.broadcast %100 : vector<16x1xf32> to vector<16x32xf32>
    %112 = arith.mulf %111, %110 : vector<16x32xf32>
    %113 = arith.truncf %103 : vector<16x16xf32> to vector<16x16xbf16>
    %114 = vector.extract_strided_slice %10 {offsets = [0, 96], sizes = [16, 32], strides = [1, 1]} : vector<16x128xbf16> to vector<16x32xbf16>
    %cst_62 = arith.constant dense<0.000000e+00> : vector<16x32xf32>
    %115 = tpu.matmul %113, %114, %cst_62 {dimension_numbers = #tpu.dot_dimension_numbers<[1], [0], [0], [1], [0, 0, 1, 1], [], []>} : vector<16x16xbf16>, vector<16x32xbf16>, vector<16x32xf32> -> vector<16x32xf32>
    %116 = arith.addf %112, %115 : vector<16x32xf32>
    %c0_63 = arith.constant 0 : index
    %c96_64 = arith.constant 96 : index
    %117 = vector.load %arg9[%c0_63, %c96_64] : memref<16x128xf32, #tpu.memory_space<vmem>>, vector<16x32xf32>
    tpu.vector_store %arg9[%c0_63, %c96_64], %116 {strides = array<i32>} : memref<16x128xf32, #tpu.memory_space<vmem>>, vector<16x32xf32>,
    %c0_65 = arith.constant 0 : index
    %c3_66 = arith.constant 3 : index
    %118 = vector.load %arg7[%c0_65, %c3_66] : memref<16x4xf32, #tpu.memory_space<vmem>>, vector<16x1xf32>
    tpu.vector_store %arg7[%c0_65, %c3_66], %98 {strides = array<i32>} : memref<16x4xf32, #tpu.memory_space<vmem>>, vector<16x1xf32>,
    %c0_i32_67 = arith.constant 0 : i32
    %119 = arith.cmpi eq, %arg2, %c0_i32_67 : i32
    %120 = arith.extui %119 : i1 to i32
    %c0_i32_68 = arith.constant 0 : i32
    %121 = arith.cmpi ne, %120, %c0_i32_68 : i32
    scf.if %121 {
      %c0_69 = arith.constant 0 : index
      %c0_70 = arith.constant 0 : index
      %122 = vector.load %arg9[%c0_69, %c0_70] : memref<16x128xf32, #tpu.memory_space<vmem>>, vector<16x32xf32>
      %c0_71 = arith.constant 0 : index
      %c0_72 = arith.constant 0 : index
      %123 = vector.load %arg8[%c0_71, %c0_72] : memref<16x4xf32, #tpu.memory_space<vmem>>, vector<16x1xf32>
      %124 = vector.broadcast %123 : vector<16x1xf32> to vector<16x32xf32>
      %125 = arith.divf %122, %124 : vector<16x32xf32>
      %c0_73 = arith.constant 0 : index
      %c32_74 = arith.constant 32 : index
      %126 = vector.load %arg9[%c0_73, %c32_74] : memref<16x128xf32, #tpu.memory_space<vmem>>, vector<16x32xf32>
      %c0_75 = arith.constant 0 : index
      %c1_76 = arith.constant 1 : index
      %127 = vector.load %arg8[%c0_75, %c1_76] : memref<16x4xf32, #tpu.memory_space<vmem>>, vector<16x1xf32>
      %128 = vector.broadcast %127 : vector<16x1xf32> to vector<16x32xf32>
      %129 = arith.divf %126, %128 : vector<16x32xf32>
      %c0_77 = arith.constant 0 : index
      %c64_78 = arith.constant 64 : index
      %130 = vector.load %arg9[%c0_77, %c64_78] : memref<16x128xf32, #tpu.memory_space<vmem>>, vector<16x32xf32>
      %c0_79 = arith.constant 0 : index
      %c2_80 = arith.constant 2 : index
      %131 = vector.load %arg8[%c0_79, %c2_80] : memref<16x4xf32, #tpu.memory_space<vmem>>, vector<16x1xf32>
      %132 = vector.broadcast %131 : vector<16x1xf32> to vector<16x32xf32>
      %133 = arith.divf %130, %132 : vector<16x32xf32>
      %c0_81 = arith.constant 0 : index
      %c96_82 = arith.constant 96 : index
      %134 = vector.load %arg9[%c0_81, %c96_82] : memref<16x128xf32, #tpu.memory_space<vmem>>, vector<16x32xf32>
      %c0_83 = arith.constant 0 : index
      %c3_84 = arith.constant 3 : index
      %135 = vector.load %arg8[%c0_83, %c3_84] : memref<16x4xf32, #tpu.memory_space<vmem>>, vector<16x1xf32>
      %136 = vector.broadcast %135 : vector<16x1xf32> to vector<16x32xf32>
      %137 = arith.divf %134, %136 : vector<16x32xf32>
      %138 = tpu.concatenate %125, %129, %133, %137 in 1 : vector<16x32xf32>, vector<16x32xf32>, vector<16x32xf32>, vector<16x32xf32> -> vector<16x128xf32>
      %139 = arith.truncf %138 : vector<16x128xf32> to vector<16x128xbf16>
      %c0_85 = arith.constant 0 : index
      %c0_86 = arith.constant 0 : index
      %c0_87 = arith.constant 0 : index
      %140 = vector.load %arg6[%c0_85, %c0_86, %c0_87] : memref<1x16x128xbf16, #tpu.memory_space<vmem>>, vector<1x16x128xbf16>
      %141 = vector.shape_cast %140 : vector<1x16x128xbf16> to vector<16x128xbf16>
      %142 = vector.shape_cast %139 : vector<16x128xbf16> to vector<1x16x128xbf16>
      tpu.vector_store %arg6[%c0_85, %c0_86, %c0_87], %142 {strides = array<i32>} : memref<1x16x128xbf16, #tpu.memory_space<vmem>>, vector<1x16x128xbf16>,
    } else {
    }
    return
  }
  func.func @transform_0(%arg0: i32, %arg1: i32, %arg2: i32) -> (i32, i32, i32) {
    %c0_i32 = arith.constant 0 : i32
    %c0_i32_0 = arith.constant 0 : i32
    return %arg0, %arg1, %c0_i32 : i32, i32, i32
  }
  func.func @transform_1(%arg0: i32, %arg1: i32, %arg2: i32) -> (i32, i32, i32) {
    %c1_i32 = arith.constant 1 : i32
    %c0_i32 = arith.constant 0 : i32
    return %arg0, %arg2, %c1_i32 : i32, i32, i32
  }
  func.func @transform_2(%arg0: i32, %arg1: i32, %arg2: i32) -> (i32, i32, i32) {
    %c2_i32 = arith.constant 2 : i32
    %c0_i32 = arith.constant 0 : i32
    return %arg0, %arg2, %c2_i32 : i32, i32, i32
  }
  func.func @transform_3(%arg0: i32, %arg1: i32, %arg2: i32) -> (i32, i32, i32) {
    %c0_i32 = arith.constant 0 : i32
    %c0_i32_0 = arith.constant 0 : i32
    return %arg0, %arg1, %c0_i32 : i32, i32, i32
  }
}

module attributes {stable_mosaic.version = 11 : i64} {
  func.func @_mm_add_ln_fullk_kernel(%arg0: i32, %arg1: memref<32x128xbf16, #tpu.memory_space<vmem>>, %arg2: memref<128x128xbf16, #tpu.memory_space<vmem>>, %arg3: memref<1x128xbf16, #tpu.memory_space<vmem>>, %arg4: memref<32x128xbf16, #tpu.memory_space<vmem>>, %arg5: memref<1x128xbf16, #tpu.memory_space<vmem>>, %arg6: memref<1x128xbf16, #tpu.memory_space<vmem>>, %arg7: memref<32x128xbf16, #tpu.memory_space<vmem>>) attributes {dimension_semantics = [#tpu.dimension_semantics<parallel>], iteration_bounds = array<i64: 1>, scalar_prefetch = 0 : i64, scratch_operands = 0 : i64, tpu.core_type = #tpu.core_type<tc>, window_params = [{transform_indices = @transform_0, window_bounds = array<i64: 32, 128>}, {pipeline_mode = #tpu.pipeline_mode<synchronous>, transform_indices = @transform_1, window_bounds = array<i64: 128, 128>}, {pipeline_mode = #tpu.pipeline_mode<synchronous>, transform_indices = @transform_2, window_bounds = array<i64: 1, 128>}, {transform_indices = @transform_3, window_bounds = array<i64: 32, 128>}, {pipeline_mode = #tpu.pipeline_mode<synchronous>, transform_indices = @transform_4, window_bounds = array<i64: 1, 128>}, {pipeline_mode = #tpu.pipeline_mode<synchronous>, transform_indices = @transform_5, window_bounds = array<i64: 1, 128>}, {transform_indices = @transform_6, window_bounds = array<i64: 32, 128>}]} {
    %c0 = arith.constant 0 : index
    %c0_0 = arith.constant 0 : index
    %0 = vector.load %arg1[%c0, %c0_0] : memref<32x128xbf16, #tpu.memory_space<vmem>>, vector<32x128xbf16>
    %c0_1 = arith.constant 0 : index
    %c0_2 = arith.constant 0 : index
    %1 = vector.load %arg2[%c0_1, %c0_2] : memref<128x128xbf16, #tpu.memory_space<vmem>>, vector<128x128xbf16>
    %cst = arith.constant dense<0.000000e+00> : vector<32x128xf32>
    %2 = tpu.matmul %0, %1, %cst {dimension_numbers = #tpu.dot_dimension_numbers<[1], [0], [0], [1], [0, 0, 1, 1], [], []>} : vector<32x128xbf16>, vector<128x128xbf16>, vector<32x128xf32> -> vector<32x128xf32>
    %c0_3 = arith.constant 0 : index
    %c0_4 = arith.constant 0 : index
    %3 = vector.load %arg3[%c0_3, %c0_4] : memref<1x128xbf16, #tpu.memory_space<vmem>>, vector<1x128xbf16>
    %4 = arith.extf %3 : vector<1x128xbf16> to vector<1x128xf32>
    %5 = vector.broadcast %4 : vector<1x128xf32> to vector<32x128xf32>
    %6 = arith.addf %2, %5 : vector<32x128xf32>
    %c0_5 = arith.constant 0 : index
    %c0_6 = arith.constant 0 : index
    %7 = vector.load %arg4[%c0_5, %c0_6] : memref<32x128xbf16, #tpu.memory_space<vmem>>, vector<32x128xbf16>
    %8 = arith.extf %7 : vector<32x128xbf16> to vector<32x128xf32>
    %9 = arith.addf %6, %8 : vector<32x128xf32>
    %cst_7 = arith.constant dense<0.000000e+00> : vector<32xf32>
    %10 = vector.multi_reduction <add>, %9, %cst_7 [1] : vector<32x128xf32> to vector<32xf32>
    %11 = vector.shape_cast %10 : vector<32xf32> to vector<32x1xf32>
    %cst_8 = arith.constant 1.280000e+02 : f32
    %12 = vector.broadcast %cst_8 : f32 to vector<32x1xf32>
    %13 = arith.divf %11, %12 : vector<32x1xf32>
    %14 = vector.broadcast %13 : vector<32x1xf32> to vector<32x128xf32>
    %15 = arith.subf %9, %14 : vector<32x128xf32>
    %16 = arith.mulf %15, %15 : vector<32x128xf32>
    %cst_9 = arith.constant dense<0.000000e+00> : vector<32xf32>
    %17 = vector.multi_reduction <add>, %16, %cst_9 [1] : vector<32x128xf32> to vector<32xf32>
    %18 = vector.shape_cast %17 : vector<32xf32> to vector<32x1xf32>
    %cst_10 = arith.constant 1.280000e+02 : f32
    %19 = vector.broadcast %cst_10 : f32 to vector<32x1xf32>
    %20 = arith.divf %18, %19 : vector<32x1xf32>
    %21 = vector.broadcast %13 : vector<32x1xf32> to vector<32x128xf32>
    %22 = arith.subf %9, %21 : vector<32x128xf32>
    %cst_11 = arith.constant 9.99999974E-6 : f32
    %23 = vector.broadcast %cst_11 : f32 to vector<32x1xf32>
    %24 = arith.addf %20, %23 : vector<32x1xf32>
    %25 = math.rsqrt %24 : vector<32x1xf32>
    %26 = vector.broadcast %25 : vector<32x1xf32> to vector<32x128xf32>
    %27 = arith.mulf %22, %26 : vector<32x128xf32>
    %c0_12 = arith.constant 0 : index
    %c0_13 = arith.constant 0 : index
    %28 = vector.load %arg5[%c0_12, %c0_13] : memref<1x128xbf16, #tpu.memory_space<vmem>>, vector<1x128xbf16>
    %29 = arith.extf %28 : vector<1x128xbf16> to vector<1x128xf32>
    %30 = vector.broadcast %29 : vector<1x128xf32> to vector<32x128xf32>
    %31 = arith.mulf %27, %30 : vector<32x128xf32>
    %c0_14 = arith.constant 0 : index
    %c0_15 = arith.constant 0 : index
    %32 = vector.load %arg6[%c0_14, %c0_15] : memref<1x128xbf16, #tpu.memory_space<vmem>>, vector<1x128xbf16>
    %33 = arith.extf %32 : vector<1x128xbf16> to vector<1x128xf32>
    %34 = vector.broadcast %33 : vector<1x128xf32> to vector<32x128xf32>
    %35 = arith.addf %31, %34 : vector<32x128xf32>
    %36 = arith.truncf %35 : vector<32x128xf32> to vector<32x128xbf16>
    %c0_16 = arith.constant 0 : index
    %c0_17 = arith.constant 0 : index
    %37 = vector.load %arg7[%c0_16, %c0_17] : memref<32x128xbf16, #tpu.memory_space<vmem>>, vector<32x128xbf16>
    tpu.vector_store %arg7[%c0_16, %c0_17], %36 {strides = array<i32>} : memref<32x128xbf16, #tpu.memory_space<vmem>>, vector<32x128xbf16>,
    return
  }
  func.func @transform_0(%arg0: i32) -> (i32, i32) {
    %c0_i32 = arith.constant 0 : i32
    %c0_i32_0 = arith.constant 0 : i32
    return %arg0, %c0_i32 : i32, i32
  }
  func.func @transform_1(%arg0: i32) -> (i32, i32) {
    %c0_i32 = arith.constant 0 : i32
    %c0_i32_0 = arith.constant 0 : i32
    %c0_i32_1 = arith.constant 0 : i32
    return %c0_i32, %c0_i32_0 : i32, i32
  }
  func.func @transform_2(%arg0: i32) -> (i32, i32) {
    %c0_i32 = arith.constant 0 : i32
    %c0_i32_0 = arith.constant 0 : i32
    %c0_i32_1 = arith.constant 0 : i32
    return %c0_i32, %c0_i32_0 : i32, i32
  }
  func.func @transform_3(%arg0: i32) -> (i32, i32) {
    %c0_i32 = arith.constant 0 : i32
    %c0_i32_0 = arith.constant 0 : i32
    return %arg0, %c0_i32 : i32, i32
  }
  func.func @transform_4(%arg0: i32) -> (i32, i32) {
    %c0_i32 = arith.constant 0 : i32
    %c0_i32_0 = arith.constant 0 : i32
    %c0_i32_1 = arith.constant 0 : i32
    return %c0_i32, %c0_i32_0 : i32, i32
  }
  func.func @transform_5(%arg0: i32) -> (i32, i32) {
    %c0_i32 = arith.constant 0 : i32
    %c0_i32_0 = arith.constant 0 : i32
    %c0_i32_1 = arith.constant 0 : i32
    return %c0_i32, %c0_i32_0 : i32, i32
  }
  func.func @transform_6(%arg0: i32) -> (i32, i32) {
    %c0_i32 = arith.constant 0 : i32
    %c0_i32_0 = arith.constant 0 : i32
    return %arg0, %c0_i32 : i32, i32
  }
}

module attributes {stable_mosaic.version = 11 : i64} {
  func.func @_linear_fullk_kernel(%arg0: i32, %arg1: i32, %arg2: memref<32x128xbf16, #tpu.memory_space<vmem>>, %arg3: memref<128x512xbf16, #tpu.memory_space<vmem>>, %arg4: memref<1x512xbf16, #tpu.memory_space<vmem>>, %arg5: memref<32x512xbf16, #tpu.memory_space<vmem>>) attributes {dimension_semantics = [#tpu.dimension_semantics<parallel>, #tpu.dimension_semantics<parallel>], iteration_bounds = array<i64: 1, 1>, scalar_prefetch = 0 : i64, scratch_operands = 0 : i64, tpu.core_type = #tpu.core_type<tc>, window_params = [{transform_indices = @transform_0, window_bounds = array<i64: 32, 128>}, {transform_indices = @transform_1, window_bounds = array<i64: 128, 512>}, {transform_indices = @transform_2, window_bounds = array<i64: 1, 512>}, {transform_indices = @transform_3, window_bounds = array<i64: 32, 512>}]} {
    %c0 = arith.constant 0 : index
    %c0_0 = arith.constant 0 : index
    %0 = vector.load %arg2[%c0, %c0_0] : memref<32x128xbf16, #tpu.memory_space<vmem>>, vector<32x128xbf16>
    %c0_1 = arith.constant 0 : index
    %c0_2 = arith.constant 0 : index
    %1 = vector.load %arg3[%c0_1, %c0_2] : memref<128x512xbf16, #tpu.memory_space<vmem>>, vector<128x512xbf16>
    %cst = arith.constant dense<0.000000e+00> : vector<32x512xf32>
    %2 = tpu.matmul %0, %1, %cst {dimension_numbers = #tpu.dot_dimension_numbers<[1], [0], [0], [1], [0, 0, 1, 1], [], []>} : vector<32x128xbf16>, vector<128x512xbf16>, vector<32x512xf32> -> vector<32x512xf32>
    %c0_3 = arith.constant 0 : index
    %c0_4 = arith.constant 0 : index
    %3 = vector.load %arg4[%c0_3, %c0_4] : memref<1x512xbf16, #tpu.memory_space<vmem>>, vector<1x512xbf16>
    %4 = arith.extf %3 : vector<1x512xbf16> to vector<1x512xf32>
    %5 = vector.broadcast %4 : vector<1x512xf32> to vector<32x512xf32>
    %6 = arith.addf %2, %5 : vector<32x512xf32>
    %7 = arith.mulf %6, %6 : vector<32x512xf32>
    %8 = arith.mulf %6, %7 : vector<32x512xf32>
    %cst_5 = arith.constant 4.471500e-02 : f32
    %9 = vector.broadcast %cst_5 : f32 to vector<32x512xf32>
    %10 = arith.mulf %9, %8 : vector<32x512xf32>
    %11 = arith.addf %6, %10 : vector<32x512xf32>
    %cst_6 = arith.constant 0.797884583 : f32
    %12 = vector.broadcast %cst_6 : f32 to vector<32x512xf32>
    %13 = arith.mulf %12, %11 : vector<32x512xf32>
    %14 = math.tanh %13 : vector<32x512xf32>
    %cst_7 = arith.constant 1.000000e+00 : f32
    %15 = vector.broadcast %cst_7 : f32 to vector<32x512xf32>
    %16 = arith.addf %15, %14 : vector<32x512xf32>
    %cst_8 = arith.constant 5.000000e-01 : f32
    %17 = vector.broadcast %cst_8 : f32 to vector<32x512xf32>
    %18 = arith.mulf %17, %16 : vector<32x512xf32>
    %19 = arith.mulf %6, %18 : vector<32x512xf32>
    %20 = arith.truncf %19 : vector<32x512xf32> to vector<32x512xbf16>
    %c0_9 = arith.constant 0 : index
    %c0_10 = arith.constant 0 : index
    %21 = vector.load %arg5[%c0_9, %c0_10] : memref<32x512xbf16, #tpu.memory_space<vmem>>, vector<32x512xbf16>
    tpu.vector_store %arg5[%c0_9, %c0_10], %20 {strides = array<i32>} : memref<32x512xbf16, #tpu.memory_space<vmem>>, vector<32x512xbf16>,
    return
  }
  func.func @transform_0(%arg0: i32, %arg1: i32) -> (i32, i32) {
    %c0_i32 = arith.constant 0 : i32
    %c0_i32_0 = arith.constant 0 : i32
    return %arg0, %c0_i32 : i32, i32
  }
  func.func @transform_1(%arg0: i32, %arg1: i32) -> (i32, i32) {
    %c0_i32 = arith.constant 0 : i32
    %c0_i32_0 = arith.constant 0 : i32
    return %c0_i32, %arg1 : i32, i32
  }
  func.func @transform_2(%arg0: i32, %arg1: i32) -> (i32, i32) {
    %c0_i32 = arith.constant 0 : i32
    %c0_i32_0 = arith.constant 0 : i32
    return %c0_i32, %arg1 : i32, i32
  }
  func.func @transform_3(%arg0: i32, %arg1: i32) -> (i32, i32) {
    %c0_i32 = arith.constant 0 : i32
    return %arg0, %arg1 : i32, i32
  }
}

module attributes {stable_mosaic.version = 11 : i64} {
  func.func @_mm_add_ln_fullk_kernel(%arg0: i32, %arg1: memref<32x512xbf16, #tpu.memory_space<vmem>>, %arg2: memref<512x128xbf16, #tpu.memory_space<vmem>>, %arg3: memref<1x128xbf16, #tpu.memory_space<vmem>>, %arg4: memref<32x128xbf16, #tpu.memory_space<vmem>>, %arg5: memref<1x128xbf16, #tpu.memory_space<vmem>>, %arg6: memref<1x128xbf16, #tpu.memory_space<vmem>>, %arg7: memref<32x128xbf16, #tpu.memory_space<vmem>>) attributes {dimension_semantics = [#tpu.dimension_semantics<parallel>], iteration_bounds = array<i64: 1>, scalar_prefetch = 0 : i64, scratch_operands = 0 : i64, tpu.core_type = #tpu.core_type<tc>, window_params = [{transform_indices = @transform_0, window_bounds = array<i64: 32, 512>}, {pipeline_mode = #tpu.pipeline_mode<synchronous>, transform_indices = @transform_1, window_bounds = array<i64: 512, 128>}, {pipeline_mode = #tpu.pipeline_mode<synchronous>, transform_indices = @transform_2, window_bounds = array<i64: 1, 128>}, {transform_indices = @transform_3, window_bounds = array<i64: 32, 128>}, {pipeline_mode = #tpu.pipeline_mode<synchronous>, transform_indices = @transform_4, window_bounds = array<i64: 1, 128>}, {pipeline_mode = #tpu.pipeline_mode<synchronous>, transform_indices = @transform_5, window_bounds = array<i64: 1, 128>}, {transform_indices = @transform_6, window_bounds = array<i64: 32, 128>}]} {
    %c0 = arith.constant 0 : index
    %c0_0 = arith.constant 0 : index
    %0 = vector.load %arg1[%c0, %c0_0] : memref<32x512xbf16, #tpu.memory_space<vmem>>, vector<32x512xbf16>
    %c0_1 = arith.constant 0 : index
    %c0_2 = arith.constant 0 : index
    %1 = vector.load %arg2[%c0_1, %c0_2] : memref<512x128xbf16, #tpu.memory_space<vmem>>, vector<512x128xbf16>
    %cst = arith.constant dense<0.000000e+00> : vector<32x128xf32>
    %2 = tpu.matmul %0, %1, %cst {dimension_numbers = #tpu.dot_dimension_numbers<[1], [0], [0], [1], [0, 0, 1, 1], [], []>} : vector<32x512xbf16>, vector<512x128xbf16>, vector<32x128xf32> -> vector<32x128xf32>
    %c0_3 = arith.constant 0 : index
    %c0_4 = arith.constant 0 : index
    %3 = vector.load %arg3[%c0_3, %c0_4] : memref<1x128xbf16, #tpu.memory_space<vmem>>, vector<1x128xbf16>
    %4 = arith.extf %3 : vector<1x128xbf16> to vector<1x128xf32>
    %5 = vector.broadcast %4 : vector<1x128xf32> to vector<32x128xf32>
    %6 = arith.addf %2, %5 : vector<32x128xf32>
    %c0_5 = arith.constant 0 : index
    %c0_6 = arith.constant 0 : index
    %7 = vector.load %arg4[%c0_5, %c0_6] : memref<32x128xbf16, #tpu.memory_space<vmem>>, vector<32x128xbf16>
    %8 = arith.extf %7 : vector<32x128xbf16> to vector<32x128xf32>
    %9 = arith.addf %6, %8 : vector<32x128xf32>
    %cst_7 = arith.constant dense<0.000000e+00> : vector<32xf32>
    %10 = vector.multi_reduction <add>, %9, %cst_7 [1] : vector<32x128xf32> to vector<32xf32>
    %11 = vector.shape_cast %10 : vector<32xf32> to vector<32x1xf32>
    %cst_8 = arith.constant 1.280000e+02 : f32
    %12 = vector.broadcast %cst_8 : f32 to vector<32x1xf32>
    %13 = arith.divf %11, %12 : vector<32x1xf32>
    %14 = vector.broadcast %13 : vector<32x1xf32> to vector<32x128xf32>
    %15 = arith.subf %9, %14 : vector<32x128xf32>
    %16 = arith.mulf %15, %15 : vector<32x128xf32>
    %cst_9 = arith.constant dense<0.000000e+00> : vector<32xf32>
    %17 = vector.multi_reduction <add>, %16, %cst_9 [1] : vector<32x128xf32> to vector<32xf32>
    %18 = vector.shape_cast %17 : vector<32xf32> to vector<32x1xf32>
    %cst_10 = arith.constant 1.280000e+02 : f32
    %19 = vector.broadcast %cst_10 : f32 to vector<32x1xf32>
    %20 = arith.divf %18, %19 : vector<32x1xf32>
    %21 = vector.broadcast %13 : vector<32x1xf32> to vector<32x128xf32>
    %22 = arith.subf %9, %21 : vector<32x128xf32>
    %cst_11 = arith.constant 9.99999974E-6 : f32
    %23 = vector.broadcast %cst_11 : f32 to vector<32x1xf32>
    %24 = arith.addf %20, %23 : vector<32x1xf32>
    %25 = math.rsqrt %24 : vector<32x1xf32>
    %26 = vector.broadcast %25 : vector<32x1xf32> to vector<32x128xf32>
    %27 = arith.mulf %22, %26 : vector<32x128xf32>
    %c0_12 = arith.constant 0 : index
    %c0_13 = arith.constant 0 : index
    %28 = vector.load %arg5[%c0_12, %c0_13] : memref<1x128xbf16, #tpu.memory_space<vmem>>, vector<1x128xbf16>
    %29 = arith.extf %28 : vector<1x128xbf16> to vector<1x128xf32>
    %30 = vector.broadcast %29 : vector<1x128xf32> to vector<32x128xf32>
    %31 = arith.mulf %27, %30 : vector<32x128xf32>
    %c0_14 = arith.constant 0 : index
    %c0_15 = arith.constant 0 : index
    %32 = vector.load %arg6[%c0_14, %c0_15] : memref<1x128xbf16, #tpu.memory_space<vmem>>, vector<1x128xbf16>
    %33 = arith.extf %32 : vector<1x128xbf16> to vector<1x128xf32>
    %34 = vector.broadcast %33 : vector<1x128xf32> to vector<32x128xf32>
    %35 = arith.addf %31, %34 : vector<32x128xf32>
    %36 = arith.truncf %35 : vector<32x128xf32> to vector<32x128xbf16>
    %c0_16 = arith.constant 0 : index
    %c0_17 = arith.constant 0 : index
    %37 = vector.load %arg7[%c0_16, %c0_17] : memref<32x128xbf16, #tpu.memory_space<vmem>>, vector<32x128xbf16>
    tpu.vector_store %arg7[%c0_16, %c0_17], %36 {strides = array<i32>} : memref<32x128xbf16, #tpu.memory_space<vmem>>, vector<32x128xbf16>,
    return
  }
  func.func @transform_0(%arg0: i32) -> (i32, i32) {
    %c0_i32 = arith.constant 0 : i32
    %c0_i32_0 = arith.constant 0 : i32
    return %arg0, %c0_i32 : i32, i32
  }
  func.func @transform_1(%arg0: i32) -> (i32, i32) {
    %c0_i32 = arith.constant 0 : i32
    %c0_i32_0 = arith.constant 0 : i32
    %c0_i32_1 = arith.constant 0 : i32
    return %c0_i32, %c0_i32_0 : i32, i32
  }
  func.func @transform_2(%arg0: i32) -> (i32, i32) {
    %c0_i32 = arith.constant 0 : i32
    %c0_i32_0 = arith.constant 0 : i32
    %c0_i32_1 = arith.constant 0 : i32
    return %c0_i32, %c0_i32_0 : i32, i32
  }
  func.func @transform_3(%arg0: i32) -> (i32, i32) {
    %c0_i32 = arith.constant 0 : i32
    %c0_i32_0 = arith.constant 0 : i32
    return %arg0, %c0_i32 : i32, i32
  }
  func.func @transform_4(%arg0: i32) -> (i32, i32) {
    %c0_i32 = arith.constant 0 : i32
    %c0_i32_0 = arith.constant 0 : i32
    %c0_i32_1 = arith.constant 0 : i32
    return %c0_i32, %c0_i32_0 : i32, i32
  }
  func.func @transform_5(%arg0: i32) -> (i32, i32) {
    %c0_i32 = arith.constant 0 : i32
    %c0_i32_0 = arith.constant 0 : i32
    %c0_i32_1 = arith.constant 0 : i32
    return %c0_i32, %c0_i32_0 : i32, i32
  }
  func.func @transform_6(%arg0: i32) -> (i32, i32) {
    %c0_i32 = arith.constant 0 : i32
    %c0_i32_0 = arith.constant 0 : i32
    return %arg0, %c0_i32 : i32, i32
  }
}

module attributes {stable_mosaic.version = 11 : i64} {
  func.func @_linear_fullk_kernel(%arg0: i32, %arg1: i32, %arg2: memref<32x128xbf16, #tpu.memory_space<vmem>>, %arg3: memref<128x512xbf16, #tpu.memory_space<vmem>>, %arg4: memref<1x512xbf16, #tpu.memory_space<vmem>>, %arg5: memref<32x512xbf16, #tpu.memory_space<vmem>>) attributes {dimension_semantics = [#tpu.dimension_semantics<parallel>, #tpu.dimension_semantics<parallel>], iteration_bounds = array<i64: 1, 1>, scalar_prefetch = 0 : i64, scratch_operands = 0 : i64, tpu.core_type = #tpu.core_type<tc>, window_params = [{transform_indices = @transform_0, window_bounds = array<i64: 32, 128>}, {transform_indices = @transform_1, window_bounds = array<i64: 128, 512>}, {transform_indices = @transform_2, window_bounds = array<i64: 1, 512>}, {transform_indices = @transform_3, window_bounds = array<i64: 32, 512>}]} {
    %c0 = arith.constant 0 : index
    %c0_0 = arith.constant 0 : index
    %0 = vector.load %arg2[%c0, %c0_0] : memref<32x128xbf16, #tpu.memory_space<vmem>>, vector<32x128xbf16>
    %c0_1 = arith.constant 0 : index
    %c0_2 = arith.constant 0 : index
    %1 = vector.load %arg3[%c0_1, %c0_2] : memref<128x512xbf16, #tpu.memory_space<vmem>>, vector<128x512xbf16>
    %cst = arith.constant dense<0.000000e+00> : vector<32x512xf32>
    %2 = tpu.matmul %0, %1, %cst {dimension_numbers = #tpu.dot_dimension_numbers<[1], [0], [0], [1], [0, 0, 1, 1], [], []>} : vector<32x128xbf16>, vector<128x512xbf16>, vector<32x512xf32> -> vector<32x512xf32>
    %c0_3 = arith.constant 0 : index
    %c0_4 = arith.constant 0 : index
    %3 = vector.load %arg4[%c0_3, %c0_4] : memref<1x512xbf16, #tpu.memory_space<vmem>>, vector<1x512xbf16>
    %4 = arith.extf %3 : vector<1x512xbf16> to vector<1x512xf32>
    %5 = vector.broadcast %4 : vector<1x512xf32> to vector<32x512xf32>
    %6 = arith.addf %2, %5 : vector<32x512xf32>
    %7 = arith.mulf %6, %6 : vector<32x512xf32>
    %8 = arith.mulf %6, %7 : vector<32x512xf32>
    %cst_5 = arith.constant 4.471500e-02 : f32
    %9 = vector.broadcast %cst_5 : f32 to vector<32x512xf32>
    %10 = arith.mulf %9, %8 : vector<32x512xf32>
    %11 = arith.addf %6, %10 : vector<32x512xf32>
    %cst_6 = arith.constant 0.797884583 : f32
    %12 = vector.broadcast %cst_6 : f32 to vector<32x512xf32>
    %13 = arith.mulf %12, %11 : vector<32x512xf32>
    %14 = math.tanh %13 : vector<32x512xf32>
    %cst_7 = arith.constant 1.000000e+00 : f32
    %15 = vector.broadcast %cst_7 : f32 to vector<32x512xf32>
    %16 = arith.addf %15, %14 : vector<32x512xf32>
    %cst_8 = arith.constant 5.000000e-01 : f32
    %17 = vector.broadcast %cst_8 : f32 to vector<32x512xf32>
    %18 = arith.mulf %17, %16 : vector<32x512xf32>
    %19 = arith.mulf %6, %18 : vector<32x512xf32>
    %20 = arith.truncf %19 : vector<32x512xf32> to vector<32x512xbf16>
    %c0_9 = arith.constant 0 : index
    %c0_10 = arith.constant 0 : index
    %21 = vector.load %arg5[%c0_9, %c0_10] : memref<32x512xbf16, #tpu.memory_space<vmem>>, vector<32x512xbf16>
    tpu.vector_store %arg5[%c0_9, %c0_10], %20 {strides = array<i32>} : memref<32x512xbf16, #tpu.memory_space<vmem>>, vector<32x512xbf16>,
    return
  }
  func.func @transform_0(%arg0: i32, %arg1: i32) -> (i32, i32) {
    %c0_i32 = arith.constant 0 : i32
    %c0_i32_0 = arith.constant 0 : i32
    return %arg0, %c0_i32 : i32, i32
  }
  func.func @transform_1(%arg0: i32, %arg1: i32) -> (i32, i32) {
    %c0_i32 = arith.constant 0 : i32
    %c0_i32_0 = arith.constant 0 : i32
    return %c0_i32, %arg1 : i32, i32
  }
  func.func @transform_2(%arg0: i32, %arg1: i32) -> (i32, i32) {
    %c0_i32 = arith.constant 0 : i32
    %c0_i32_0 = arith.constant 0 : i32
    return %c0_i32, %arg1 : i32, i32
  }
  func.func @transform_3(%arg0: i32, %arg1: i32) -> (i32, i32) {
    %c0_i32 = arith.constant 0 : i32
    return %arg0, %arg1 : i32, i32
  }
}

module attributes {stable_mosaic.version = 11 : i64} {
  func.func @_linear_fullk_kernel(%arg0: i32, %arg1: i32, %arg2: memref<32x128xbf16, #tpu.memory_space<vmem>>, %arg3: memref<128x128xbf16, #tpu.memory_space<vmem>>, %arg4: memref<1x128xbf16, #tpu.memory_space<vmem>>, %arg5: memref<32x128xbf16, #tpu.memory_space<vmem>>) attributes {dimension_semantics = [#tpu.dimension_semantics<parallel>, #tpu.dimension_semantics<parallel>], iteration_bounds = array<i64: 1, 1>, scalar_prefetch = 0 : i64, scratch_operands = 0 : i64, tpu.core_type = #tpu.core_type<tc>, window_params = [{transform_indices = @transform_0, window_bounds = array<i64: 32, 128>}, {transform_indices = @transform_1, window_bounds = array<i64: 128, 128>}, {transform_indices = @transform_2, window_bounds = array<i64: 1, 128>}, {transform_indices = @transform_3, window_bounds = array<i64: 32, 128>}]} {
    %c0 = arith.constant 0 : index
    %c0_0 = arith.constant 0 : index
    %0 = vector.load %arg2[%c0, %c0_0] : memref<32x128xbf16, #tpu.memory_space<vmem>>, vector<32x128xbf16>
    %c0_1 = arith.constant 0 : index
    %c0_2 = arith.constant 0 : index
    %1 = vector.load %arg3[%c0_1, %c0_2] : memref<128x128xbf16, #tpu.memory_space<vmem>>, vector<128x128xbf16>
    %cst = arith.constant dense<0.000000e+00> : vector<32x128xf32>
    %2 = tpu.matmul %0, %1, %cst {dimension_numbers = #tpu.dot_dimension_numbers<[1], [0], [0], [1], [0, 0, 1, 1], [], []>} : vector<32x128xbf16>, vector<128x128xbf16>, vector<32x128xf32> -> vector<32x128xf32>
    %c0_3 = arith.constant 0 : index
    %c0_4 = arith.constant 0 : index
    %3 = vector.load %arg4[%c0_3, %c0_4] : memref<1x128xbf16, #tpu.memory_space<vmem>>, vector<1x128xbf16>
    %4 = arith.extf %3 : vector<1x128xbf16> to vector<1x128xf32>
    %5 = vector.broadcast %4 : vector<1x128xf32> to vector<32x128xf32>
    %6 = arith.addf %2, %5 : vector<32x128xf32>
    %7 = arith.truncf %6 : vector<32x128xf32> to vector<32x128xbf16>
    %c0_5 = arith.constant 0 : index
    %c0_6 = arith.constant 0 : index
    %8 = vector.load %arg5[%c0_5, %c0_6] : memref<32x128xbf16, #tpu.memory_space<vmem>>, vector<32x128xbf16>
    tpu.vector_store %arg5[%c0_5, %c0_6], %7 {strides = array<i32>} : memref<32x128xbf16, #tpu.memory_space<vmem>>, vector<32x128xbf16>,
    return
  }
  func.func @transform_0(%arg0: i32, %arg1: i32) -> (i32, i32) {
    %c0_i32 = arith.constant 0 : i32
    %c0_i32_0 = arith.constant 0 : i32
    return %arg0, %c0_i32 : i32, i32
  }
  func.func @transform_1(%arg0: i32, %arg1: i32) -> (i32, i32) {
    %c0_i32 = arith.constant 0 : i32
    %c0_i32_0 = arith.constant 0 : i32
    return %c0_i32, %arg1 : i32, i32
  }
  func.func @transform_2(%arg0: i32, %arg1: i32) -> (i32, i32) {
    %c0_i32 = arith.constant 0 : i32
    %c0_i32_0 = arith.constant 0 : i32
    return %c0_i32, %arg1 : i32, i32
  }
  func.func @transform_3(%arg0: i32, %arg1: i32) -> (i32, i32) {
    %c0_i32 = arith.constant 0 : i32
    return %arg0, %arg1 : i32, i32
  }
}

</mosaic_0001>

<llo_original>
// kernel: transformer_net_forward.12
$region0: #{transformer_net_forward.12}
  #allocation0 [shape = 'u32[]', space=smem, size = 0x4, offset = 0x4, fixed_abs, tag = 'smem constant byte address 0x4 - core index']
  #allocation1 [shape = 'u32[72,128]{1,0:T(1,128)}', space=vmem, size = 0x9000, scoped, tag = 'internal scratch']
  %s0 = inlined_call_operand.vmem [shape: bf16[2,16,128], index: 0, kind: input, shape index: {}]
  %s1 = inlined_call_operand.vmem [shape: bf16[16,128], index: 1, kind: input, shape index: {}]
  %s2 = inlined_call_operand.vmem [shape: bf16[2,16,128], index: 2, kind: output, shape index: {}]
  %s3 = sld [smem:[#allocation0]]
  $region41: #{transformer_net_forward.12} parent=0
    _
  %s5 = ssub.s32 1, %s3
  %s6 = scalar_select 0, %s5, %s3
  loop: start=0, step=1, limit=4
  $region2: #{transformer_net_forward.12} parent=0 // loop_pre_header
    _
  $region3: #{transformer_net_forward.12} parent=0 // loop_header
    %s8 = sphi 0, %s12
    %p9 = scmp.ge.s32.totalorder %s8, 4
    %s15 = sphi 0, %s27
    %s16 = sphi 0, %s23
    %s17 = sphi 0, %s15
    %s18 = sphi 0, %s16
    %s19 = sphi 0, %s17
    %s20 = sphi 0, %s18
    %s32 = sphi 0, %s34
    %s35 = sphi 0, %s32
    %s36 = sphi 0, %s35
    %s52 = sphi 0, %s36
    %s58 = sphi 0, %s60
    %s61 = sphi 0, %s58
    %s62 = sphi 0, %s61
    %s78 = sphi 0, %s62
    %s86 = sphi 0, %s88
    %s89 = sphi 0, %s86
    %s90 = sphi 0, %s89
    %s106 = sphi 0, %s90
  $region4: #{transformer_net_forward.12} parent=0 // loop_header_branch
    %11 = sbr.rel (%p9) target = $region8
  $region5: #{transformer_net_forward.12} parent=0 // loop_body
    %s13 = ssub.s32 %s8, 1
    %s14 = ssub.s32 %s8, 2
    %s21 = sadd.s32 1, %s16
    %p22 = scmp.ge.s32.totalorder %s21, 1
    %s23 = scalar_select %p22, 0, %s21
    %s24 = sadd.s32 1, %s15
    %s25 = scalar_select %p22, %s24, %s15
    %p26 = scmp.ge.s32.totalorder %s25, 2
    %s27 = scalar_select %p26, 0, %s25
    %s28 = ssub.s32 %s15, %s27
    %s29 = ssub.s32 %s16, %s23
    %s30 = sor.u32 %s28, %s29
    %p31 = scmp.eq.s32.totalorder %s30, 0
    %s33 = sadd.s32 %s32, 1
    %s34 = scalar_select %p31, %s32, %s33
    %p37 = pneg %p31
    %p38 = scmp.eq.s32.totalorder %s8, 1
    %p39 = por %p37, %p38
    %p40 = scmp.ne.s32.totalorder %s32, %s35
    %p41 = scmp.eq.s32.totalorder %s8, 0
    %p42 = por %p40, %p41
    %p43 = scmp.ne.s32.totalorder %s32, %s35
    %p44 = scmp.eq.s32.totalorder %s13, 1
    %p45 = por %p43, %p44
    %p46 = scmp.ne.s32.totalorder %s35, %s36
    %p47 = scmp.eq.s32.totalorder %s13, 0
    %p48 = por %p46, %p47
    %p49 = scmp.ne.s32.totalorder %s35, %s36
    %p50 = scmp.eq.s32.totalorder %s14, 1
    %p51 = por %p49, %p50
    %p53 = scmp.ne.s32.totalorder %s36, %s52
    %p54 = scmp.eq.s32.totalorder %s14, 0
    %p55 = por %p53, %p54
    %s56 = ssub.s32 %s16, %s23
    %p57 = scmp.eq.s32.totalorder %s56, 0
    %s59 = sadd.s32 %s58, 1
    %s60 = scalar_select %p57, %s58, %s59
    %p63 = pneg %p57
    %p64 = scmp.eq.s32.totalorder %s8, 1
    %p65 = por %p63, %p64
    %p66 = scmp.ne.s32.totalorder %s58, %s61
    %p67 = scmp.eq.s32.totalorder %s8, 0
    %p68 = por %p66, %p67
    %p69 = scmp.ne.s32.totalorder %s58, %s61
    %p70 = scmp.eq.s32.totalorder %s13, 1
    %p71 = por %p69, %p70
    %p72 = scmp.ne.s32.totalorder %s61, %s62
    %p73 = scmp.eq.s32.totalorder %s13, 0
    %p74 = por %p72, %p73
    %p75 = scmp.ne.s32.totalorder %s61, %s62
    %p76 = scmp.eq.s32.totalorder %s14, 1
    %p77 = por %p75, %p76
    %p79 = scmp.ne.s32.totalorder %s62, %s78
    %p80 = scmp.eq.s32.totalorder %s14, 0
    %p81 = por %p79, %p80
    %s82 = ssub.s32 %s15, %s27
    %s83 = ssub.s32 %s16, %s23
    %s84 = sor.u32 %s82, %s83
    %p85 = scmp.eq.s32.totalorder %s84, 0
    %s87 = sadd.s32 %s86, 1
    %s88 = scalar_select %p85, %s86, %s87
    %p91 = pneg %p85
    %p92 = scmp.eq.s32.totalorder %s8, 1
    %p93 = por %p91, %p92
    %p94 = scmp.ne.s32.totalorder %s86, %s89
    %p95 = scmp.eq.s32.totalorder %s8, 0
    %p96 = por %p94, %p95
    %p97 = scmp.ne.s32.totalorder %s86, %s89
    %p98 = scmp.eq.s32.totalorder %s13, 1
    %p99 = por %p97, %p98
    %p100 = scmp.ne.s32.totalorder %s89, %s90
    %p101 = scmp.eq.s32.totalorder %s13, 0
    %p102 = por %p100, %p101
    %p103 = scmp.ne.s32.totalorder %s89, %s90
    %p104 = scmp.eq.s32.totalorder %s14, 1
    %p105 = por %p103, %p104
    %p107 = scmp.ne.s32.totalorder %s90, %s106
    %p108 = scmp.eq.s32.totalorder %s14, 0
    %p109 = por %p107, %p108
    %p110 = scmp.le.s32.totalorder 1, %s8
    %p111 = scmp.lt.s32.totalorder %s8, 3
    %p112 = pnand %p110, %p111
    %p113 = pneg %p112
    // Predicated region
    $region9: #{transformer_net_forward.12} parent=5 // pred_check
      _
    $region10: #{transformer_net_forward.12} parent=5 // pred_check_branch
      %115 = sbr.rel (%p112) target = $region12
    $region11: #{transformer_net_forward.12} parent=5 // pred_region
      %s116 = ssub.s32 %s8, 1
      // Predicated region
      $region13: #{transformer_net_forward.12} parent=11 // pred_check
        %p117 = pneg %p74
      $region14: #{transformer_net_forward.12} parent=11 // pred_check_branch
        %119 = sbr.rel (%p117) target = $region16
      $region15: #{transformer_net_forward.12} parent=11 // pred_region
        %s120 = smul.u32 2, %s18
        %p121 = scmp.lt.s32.totalorder %s120, 1
        %s122 = scalar_select %p121, %s120, 1
        %s123 = smul.addr %s122, 4
        %s124 = scalar_lea.vmem %s1, %s123
        %s125 = smul.u32 2, %s18
      $region16: #{transformer_net_forward.12} parent=11 // pred_fallthru
        _
    $region12: #{transformer_net_forward.12} parent=5 // pred_fallthru
      _
    %p126 = scmp.lt.s32.totalorder %s8, 2
    // Predicated region
    $region17: #{transformer_net_forward.12} parent=5 // pred_check
      %p127 = pneg %p126
    $region18: #{transformer_net_forward.12} parent=5 // pred_check_branch
      %129 = sbr.rel (%p127) target = $region20
    $region19: #{transformer_net_forward.12} parent=5 // pred_region
      // Predicated region
      $region21: #{transformer_net_forward.12} parent=19 // pred_check
        %p130 = pneg %p42
      $region22: #{transformer_net_forward.12} parent=19 // pred_check_branch
        %132 = sbr.rel (%p130) target = $region24
      $region23: #{transformer_net_forward.12} parent=19 // pred_region
        %s133 = smul.u32 2, %s16
        %p134 = scmp.lt.s32.totalorder %s15, 1
        %s135 = scalar_select %p134, %s15, 1
        %p136 = scmp.lt.s32.totalorder %s133, 1
        %s137 = scalar_select %p136, %s133, 1
        %s138 = smul.addr %s135, 2
        %s139 = sadd.s32 %s137, %s138
        %s140 = smul.addr %s139, 4
        %s141 = scalar_lea.vmem %s0, %s140
        %s142 = smul.u32 2, %s16
      $region24: #{transformer_net_forward.12} parent=19 // pred_fallthru
        _
    $region20: #{transformer_net_forward.12} parent=5 // pred_fallthru
      _
    %p143 = scmp.le.s32.totalorder 1, %s8
    %p144 = scmp.lt.s32.totalorder %s8, 3
    %p145 = pnand %p143, %p144
    %p146 = pneg %p145
    // Predicated region
    $region25: #{transformer_net_forward.12} parent=5 // pred_check
      _
    $region26: #{transformer_net_forward.12} parent=5 // pred_check_branch
      %148 = sbr.rel (%p145) target = $region28
    $region27: #{transformer_net_forward.12} parent=5 // pred_region
      %s149 = ssub.s32 %s8, 1
      %s150 = smul.u32 2, %s18
      %p151 = scmp.lt.s32.totalorder %s17, 1
      %s152 = scalar_select %p151, %s17, 1
      %p153 = scmp.lt.s32.totalorder %s150, 1
      %s154 = scalar_select %p153, %s150, 1
      %s155 = smul.addr %s152, 2
      %s156 = sadd.s32 %s154, %s155
      %s157 = smul.addr %s156, 4
      %s158 = scalar_lea.vmem %s0, %s157
      %p159 = pneg %p48
      %p160 = pneg %p45
      %s161 = smul.u32 2, %s18
      %p162 = scmp.lt.s32.totalorder %s161, 1
      %s163 = scalar_select %p162, %s161, 1
      %s164 = smul.addr %s163, 4
      %s165 = scalar_lea.vmem %s1, %s164
      %p166 = pneg %p74
      %p167 = pneg %p71
      %p168 = pneg %p102
      %p169 = pneg %p99
      %s170 = smul.u32 2, %s18
      %p171 = scmp.lt.s32.totalorder %s17, 1
      %s172 = scalar_select %p171, %s17, 1
      %p173 = scmp.lt.s32.totalorder %s170, 1
      %s174 = scalar_select %p173, %s170, 1
      %s175 = smul.addr %s172, 2
      %s176 = sadd.s32 %s174, %s175
      %s177 = smul.addr %s176, 4
      %s178 = scalar_lea.vmem %s2, %s177
      %s179 = smul.u32 2, %s18
      %p180 = scmp.lt.s32.totalorder %s17, 1
      %s181 = scalar_select %p180, %s17, 1
      %p182 = scmp.lt.s32.totalorder %s179, 1
      %s183 = scalar_select %p182, %s179, 1
      %s184 = smul.addr %s181, 2
      %s185 = sadd.s32 %s183, %s184
      %s186 = smul.addr %s185, 4
      %s187 = scalar_lea.vmem %s0, %s186
      %s188 = smul.u32 2, %s18
      %s189 = smul.u32 2, %s18
      %p190 = scmp.lt.s32.totalorder %s189, 1
      %s191 = scalar_select %p190, %s189, 1
      %s192 = smul.addr %s191, 4
      %s193 = scalar_lea.vmem %s1, %s192
      %s194 = smul.u32 2, %s18
      %s195 = smul.u32 2, %s18
      %p196 = scmp.lt.s32.totalorder %s17, 1
      %s197 = scalar_select %p196, %s17, 1
      %p198 = scmp.lt.s32.totalorder %s195, 1
      %s199 = scalar_select %p198, %s195, 1
      %s200 = smul.addr %s197, 2
      %s201 = sadd.s32 %s199, %s200
      %s202 = smul.addr %s201, 4
      %s203 = scalar_lea.vmem %s2, %s202
      %s204 = smul.u32 2, %s18
      %v205 = vld [vmem:[%s187] sm:$0xf]
      %v206 = vld [vmem:[%s187 + $0x4] sm:$0xf]
      %v207 = vunpack.c.l.bf16 %v205
      %v208 = vunpack.c.l.bf16 %v206
      %v209 = vld [vmem:[%s193] sm:$0xf]
      %v210 = vld [vmem:[%s193 + $0x4] sm:$0xf]
      %v211 = vunpack.c.l.bf16 %v209
      %v212 = vunpack.c.l.bf16 %v210
      %v213 = vadd.f32 %v207, %v211
      %v214 = vadd.f32 %v208, %v212
      %v215 = vpack.c.bf16 %v213, %v213
      %v216 = vpack.c.bf16 %v214, %v214
      %217 = vst [vmem:[%s203] sm:$0xf] %v215
      %218 = vst [vmem:[%s203 + $0x4] sm:$0xf] %v216
      %s219 = smul.u32 2, %s18
      %p220 = scmp.lt.s32.totalorder %s17, 1
      %s221 = scalar_select %p220, %s17, 1
      %p222 = scmp.lt.s32.totalorder %s219, 1
      %s223 = scalar_select %p222, %s219, 1
      %s224 = smul.addr %s221, 2
      %s225 = sadd.s32 %s223, %s224
      %s226 = smul.addr %s225, 4
      %s227 = scalar_lea.vmem %s2, %s226
      // Predicated region
      $region29: #{transformer_net_forward.12} parent=27 // pred_check
        %p228 = pneg %p99
      $region30: #{transformer_net_forward.12} parent=27 // pred_check_branch
        %230 = sbr.rel (%p228) target = $region32
      $region31: #{transformer_net_forward.12} parent=27 // pred_region
        %s231 = smul.u32 2, %s18
      $region32: #{transformer_net_forward.12} parent=27 // pred_fallthru
        _
    $region28: #{transformer_net_forward.12} parent=5 // pred_fallthru
      _
    %p232 = scmp.le.s32.totalorder 2, %s8
    // Predicated region
    $region33: #{transformer_net_forward.12} parent=5 // pred_check
      %p233 = pneg %p232
    $region34: #{transformer_net_forward.12} parent=5 // pred_check_branch
      %235 = sbr.rel (%p233) target = $region36
    $region35: #{transformer_net_forward.12} parent=5 // pred_region
      %s236 = ssub.s32 %s8, 2
      // Predicated region
      $region37: #{transformer_net_forward.12} parent=35 // pred_check
        %p237 = pneg %p105
      $region38: #{transformer_net_forward.12} parent=35 // pred_check_branch
        %239 = sbr.rel (%p237) target = $region40
      $region39: #{transformer_net_forward.12} parent=35 // pred_region
        %s240 = smul.u32 2, %s20
        %p241 = scmp.lt.s32.totalorder %s19, 1
        %s242 = scalar_select %p241, %s19, 1
        %p243 = scmp.lt.s32.totalorder %s240, 1
        %s244 = scalar_select %p243, %s240, 1
        %s245 = smul.addr %s242, 2
        %s246 = sadd.s32 %s244, %s245
        %s247 = smul.addr %s246, 4
        %s248 = scalar_lea.vmem %s2, %s247
      $region40: #{transformer_net_forward.12} parent=35 // pred_fallthru
        _
    $region36: #{transformer_net_forward.12} parent=5 // pred_fallthru
      _
  $region6: #{transformer_net_forward.12} parent=0 // loop_footer
    %s12 = sadd.s32 1, %s8
  $region7: #{transformer_net_forward.12} parent=0 // loop_footer_branch
    %7 = sbr.rel target = $region3
  $region8: #{transformer_net_forward.12} parent=0 // loop_exit
    _

// kernel: transformer_net_forward.13
$region0: #{transformer_net_forward.13}
  #allocation0 [shape = 'u32[]', space=smem, size = 0x4, offset = 0x4, fixed_abs, tag = 'smem constant byte address 0x4 - core index']
  #allocation1 [shape = 'u32[72,128]{1,0:T(1,128)}', space=vmem, size = 0x9000, scoped, tag = 'internal scratch']
  %s0 = inlined_call_operand.vmem [shape: bf16[32,128], index: 0, kind: input, shape index: {}]
  %s1 = inlined_call_operand.hbm [shape: bf16[128,384], index: 1, kind: input, shape index: {}]
  %s2 = inlined_call_operand.vmem [shape: bf16[1,384], index: 2, kind: input, shape index: {}]
  %s3 = inlined_call_operand.vmem [shape: bf16[32,384], index: 3, kind: output, shape index: {}]
  %s4 = sld [smem:[#allocation0]]
  $region26: #{transformer_net_forward.13} parent=0
    _
  %s6 = ssub.s32 1, %s4
  %s7 = scalar_select 0, %s6, %s4
  $region1: #{transformer_net_forward.13} parent=0
    #allocation2 [shape = 'u8[98304]{0}', space=vmem, size = 0x18000, scoped, tag = 'input window, operand 1, single buffered']
    #allocation3 [shape = 's32[1]{0}', space=sflag, size = 0x4, scoped, tag = 'scoped memory for transformer_net_forward.13']
    %8 = vsyncpa [#allocation3], 0
    // Predicated region
    $region2: #{transformer_net_forward.13} parent=1 // pred_check
      _
    $region3: #{transformer_net_forward.13} parent=1 // pred_check_branch
      %10 = sbr.rel (0) target = $region5
    $region4: #{transformer_net_forward.13} parent=1 // pred_region
      _
    $region5: #{transformer_net_forward.13} parent=1 // pred_fallthru
      _
    // Predicated region
    $region6: #{transformer_net_forward.13} parent=1 // pred_check
      _
    $region7: #{transformer_net_forward.13} parent=1 // pred_check_branch
      %12 = sbr.rel (0) target = $region9
    $region8: #{transformer_net_forward.13} parent=1 // pred_region
      %14 = vsyncadd [#allocation3], 0
      %s15 = sshll.u32 %s1, 4
      %s16 = int_to_ptr.hbm [resolvable:$true] %s15
      %s17 = sshll.u32 [#allocation2], 4
      %s18 = int_to_ptr.vmem [resolvable:$true] %s17
      %23 = dma.hbm_to_vmem [thread:$0]  %s16, 3072, %s18, [#allocation3], 192, 192, 12
    $region9: #{transformer_net_forward.13} parent=1 // pred_fallthru
      _
    // Predicated region
    $region10: #{transformer_net_forward.13} parent=1 // pred_check
      _
    $region11: #{transformer_net_forward.13} parent=1 // pred_check_branch
      %25 = sbr.rel (0) target = $region13
    $region12: #{transformer_net_forward.13} parent=1 // pred_region
      _
    $region13: #{transformer_net_forward.13} parent=1 // pred_fallthru
      _
    // Predicated region
    $region14: #{transformer_net_forward.13} parent=1 // pred_check
      _
    $region15: #{transformer_net_forward.13} parent=1 // pred_check_branch
      %27 = sbr.rel (0) target = $region17
    $region16: #{transformer_net_forward.13} parent=1 // pred_region
      %29 = dma.done [#allocation3], 3072
    $region17: #{transformer_net_forward.13} parent=1 // pred_fallthru
      _
    %v30 = vld [vmem:[%s0] sm:$0xf]
    %v31 = vld [vmem:[%s0 + $0x4] sm:$0xf]
    %v32 = vld [vmem:[%s0 + $0x8] sm:$0xf]
    %v33 = vld [vmem:[%s0 + $0xc] sm:$0xf]
    %v34 = vld [vmem:[#allocation2] sm:$0xff]
    %v35 = vld [vmem:[#allocation2 + $0x8] sm:$0xf]
    %v36 = vld [vmem:[#allocation2 + $0xc] sm:$0xff]
    %v37 = vld [vmem:[#allocation2 + $0x14] sm:$0xf]
    %v38 = vld [vmem:[#allocation2 + $0x18] sm:$0xff]
    %v39 = vld [vmem:[#allocation2 + $0x20] sm:$0xf]
    %v40 = vld [vmem:[#allocation2 + $0x24] sm:$0xff]
    %v41 = vld [vmem:[#allocation2 + $0x2c] sm:$0xf]
    %v42 = vld [vmem:[#allocation2 + $0x30] sm:$0xff]
    %v43 = vld [vmem:[#allocation2 + $0x38] sm:$0xf]
    %v44 = vld [vmem:[#allocation2 + $0x3c] sm:$0xff]
    %v45 = vld [vmem:[#allocation2 + $0x44] sm:$0xf]
    %v46 = vld [vmem:[#allocation2 + $0x48] sm:$0xff]
    %v47 = vld [vmem:[#allocation2 + $0x50] sm:$0xf]
    %v48 = vld [vmem:[#allocation2 + $0x54] sm:$0xff]
    %v49 = vld [vmem:[#allocation2 + $0x5c] sm:$0xf]
    %v50 = vld [vmem:[#allocation2 + $0x60] sm:$0xff]
    %v51 = vld [vmem:[#allocation2 + $0x68] sm:$0xf]
    %v52 = vld [vmem:[#allocation2 + $0x6c] sm:$0xff]
    %v53 = vld [vmem:[#allocation2 + $0x74] sm:$0xf]
    %v54 = vld [vmem:[#allocation2 + $0x78] sm:$0xff]
    %v55 = vld [vmem:[#allocation2 + $0x80] sm:$0xf]
    %v56 = vld [vmem:[#allocation2 + $0x84] sm:$0xff]
    %v57 = vld [vmem:[#allocation2 + $0x8c] sm:$0xf]
    %v58 = vld [vmem:[#allocation2 + $0x90] sm:$0xff]
    %v59 = vld [vmem:[#allocation2 + $0x98] sm:$0xf]
    %v60 = vld [vmem:[#allocation2 + $0x9c] sm:$0xff]
    %v61 = vld [vmem:[#allocation2 + $0xa4] sm:$0xf]
    %v62 = vld [vmem:[#allocation2 + $0xa8] sm:$0xff]
    %v63 = vld [vmem:[#allocation2 + $0xb0] sm:$0xf]
    %v64 = vld [vmem:[#allocation2 + $0xb4] sm:$0xff]
    %v65 = vld [vmem:[#allocation2 + $0xbc] sm:$0xf]
    %v66 = vld [vmem:[%s2] sm:$0x7]
    %v67 = vunpack.c.l.bf16 %v66
    %v69 = vperm.slane %v67, 0
    %v70 = vperm.slane %v67, 2
    %v71 = vperm.slane %v67, 4
    %v75 = vperm.slane %v69, 0
    %v76 = vperm.slane %v70, 0
    %v77 = vperm.slane %v71, 0
    %v82 = vunpack.c.l.b16 %v30
    %v83 = vunpack.c.l.b16 %v31
    %v84 = vunpack.c.l.b16 %v32
    %v85 = vunpack.c.l.b16 %v33
    %v86 = vpack.c.b16 %v83, %v82
    %v87 = vpack.c.b16 %v85, %v84
    %v122 = vunpack.c.l.b16 %v34
    %v123 = vunpack.c.h.b16 %v34
    %v124 = vunpack.c.l.b16 %v35
    %v125 = vunpack.c.l.b16 %v36
    %v126 = vunpack.c.h.b16 %v36
    %v127 = vunpack.c.l.b16 %v37
    %v128 = vunpack.c.l.b16 %v38
    %v129 = vunpack.c.h.b16 %v38
    %v130 = vunpack.c.l.b16 %v39
    %v131 = vunpack.c.l.b16 %v40
    %v132 = vunpack.c.h.b16 %v40
    %v133 = vunpack.c.l.b16 %v41
    %v134 = vunpack.c.l.b16 %v42
    %v135 = vunpack.c.h.b16 %v42
    %v136 = vunpack.c.l.b16 %v43
    %v137 = vunpack.c.l.b16 %v44
    %v138 = vunpack.c.h.b16 %v44
    %v139 = vunpack.c.l.b16 %v45
    %v140 = vunpack.c.l.b16 %v46
    %v141 = vunpack.c.h.b16 %v46
    %v142 = vunpack.c.l.b16 %v47
    %v143 = vunpack.c.l.b16 %v48
    %v144 = vunpack.c.h.b16 %v48
    %v145 = vunpack.c.l.b16 %v49
    %v146 = vunpack.c.l.b16 %v50
    %v147 = vunpack.c.h.b16 %v50
    %v148 = vunpack.c.l.b16 %v51
    %v149 = vunpack.c.l.b16 %v52
    %v150 = vunpack.c.h.b16 %v52
    %v151 = vunpack.c.l.b16 %v53
    %v152 = vunpack.c.l.b16 %v54
    %v153 = vunpack.c.h.b16 %v54
    %v154 = vunpack.c.l.b16 %v55
    %v155 = vunpack.c.l.b16 %v56
    %v156 = vunpack.c.h.b16 %v56
    %v157 = vunpack.c.l.b16 %v57
    %v158 = vunpack.c.l.b16 %v58
    %v159 = vunpack.c.h.b16 %v58
    %v160 = vunpack.c.l.b16 %v59
    %v161 = vunpack.c.l.b16 %v60
    %v162 = vunpack.c.h.b16 %v60
    %v163 = vunpack.c.l.b16 %v61
    %v164 = vunpack.c.l.b16 %v62
    %v165 = vunpack.c.h.b16 %v62
    %v166 = vunpack.c.l.b16 %v63
    %v167 = vunpack.c.l.b16 %v64
    %v168 = vunpack.c.h.b16 %v64
    %v169 = vunpack.c.l.b16 %v65
    %v170 = vpack.c.b16 %v125, %v122
    %v171 = vpack.c.b16 %v126, %v123
    %v172 = vpack.c.b16 %v127, %v124
    %v173 = vpack.c.b16 %v131, %v128
    %v174 = vpack.c.b16 %v132, %v129
    %v175 = vpack.c.b16 %v133, %v130
    %v176 = vpack.c.b16 %v137, %v134
    %v177 = vpack.c.b16 %v138, %v135
    %v178 = vpack.c.b16 %v139, %v136
    %v179 = vpack.c.b16 %v143, %v140
    %v180 = vpack.c.b16 %v144, %v141
    %v181 = vpack.c.b16 %v145, %v142
    %v182 = vpack.c.b16 %v149, %v146
    %v183 = vpack.c.b16 %v150, %v147
    %v184 = vpack.c.b16 %v151, %v148
    %v185 = vpack.c.b16 %v155, %v152
    %v186 = vpack.c.b16 %v156, %v153
    %v187 = vpack.c.b16 %v157, %v154
    %v188 = vpack.c.b16 %v161, %v158
    %v189 = vpack.c.b16 %v162, %v159
    %v190 = vpack.c.b16 %v163, %v160
    %v191 = vpack.c.b16 %v167, %v164
    %v192 = vpack.c.b16 %v168, %v165
    %v193 = vpack.c.b16 %v169, %v166
    %218 = vmatpush.bf16.msra.mxu0 %v191
    %219 = vmatpush.bf16.msra.mxu0 %v188
    %220 = vmatpush.bf16.msra.mxu0 %v185
    %221 = vmatpush.bf16.msra.mxu0 %v182
    %222 = vmatpush.bf16.msra.mxu0 %v179
    %223 = vmatpush.bf16.msra.mxu0 %v176
    %224 = vmatpush.bf16.msra.mxu0 %v173
    %225 = vmatpush.bf16.msra.mxu0 %v170
    %226 = vmatmul.bf16.gmra.mxu0 %v86
    %v227 = vpop.f32.mrf.mxu0
    %v228 = vadd.f32 %v75, %v227
    %v229 = vpop.f32.mrf.mxu0
    %v230 = vadd.f32 %v75, %v229
    %231 = vmatmul.bf16.gmra.mxu0 %v87
    %v232 = vpop.f32.mrf.mxu0
    %v233 = vadd.f32 %v75, %v232
    %v234 = vpop.f32.mrf.mxu0
    %v235 = vadd.f32 %v75, %v234
    %236 = vdwg.mxu0
    %237 = vmatpush.bf16.msra.mxu0 %v192
    %238 = vmatpush.bf16.msra.mxu0 %v189
    %239 = vmatpush.bf16.msra.mxu0 %v186
    %240 = vmatpush.bf16.msra.mxu0 %v183
    %241 = vmatpush.bf16.msra.mxu0 %v180
    %242 = vmatpush.bf16.msra.mxu0 %v177
    %243 = vmatpush.bf16.msra.mxu0 %v174
    %244 = vmatpush.bf16.msra.mxu0 %v171
    %245 = vmatmul.bf16.gmra.mxu0 %v86
    %v246 = vpop.f32.mrf.mxu0
    %v247 = vadd.f32 %v76, %v246
    %v248 = vpop.f32.mrf.mxu0
    %v249 = vadd.f32 %v76, %v248
    %250 = vmatmul.bf16.gmra.mxu0 %v87
    %v251 = vpop.f32.mrf.mxu0
    %v252 = vadd.f32 %v76, %v251
    %v253 = vpop.f32.mrf.mxu0
    %v254 = vadd.f32 %v76, %v253
    %255 = vdwg.mxu0
    %256 = vmatpush.bf16.msra.mxu0 %v193
    %257 = vmatpush.bf16.msra.mxu0 %v190
    %258 = vmatpush.bf16.msra.mxu0 %v187
    %259 = vmatpush.bf16.msra.mxu0 %v184
    %260 = vmatpush.bf16.msra.mxu0 %v181
    %261 = vmatpush.bf16.msra.mxu0 %v178
    %262 = vmatpush.bf16.msra.mxu0 %v175
    %263 = vmatpush.bf16.msra.mxu0 %v172
    %264 = vmatmul.bf16.gmra.mxu0 %v86
    %v265 = vpop.f32.mrf.mxu0
    %v266 = vadd.f32 %v77, %v265
    %v267 = vpop.f32.mrf.mxu0
    %v268 = vadd.f32 %v77, %v267
    %269 = vmatmul.bf16.gmra.mxu0 %v87
    %v270 = vpop.f32.mrf.mxu0
    %v271 = vadd.f32 %v77, %v270
    %v272 = vpop.f32.mrf.mxu0
    %v273 = vadd.f32 %v77, %v272
    %274 = vdwg.mxu0
    %v275 = vpack.c.bf16 %v247, %v228
    %v276 = vpack.c.bf16 %v266, %v266
    %v277 = vpack.c.bf16 %v249, %v230
    %v278 = vpack.c.bf16 %v268, %v268
    %v279 = vpack.c.bf16 %v252, %v233
    %v280 = vpack.c.bf16 %v271, %v271
    %v281 = vpack.c.bf16 %v254, %v235
    %v282 = vpack.c.bf16 %v273, %v273
    %283 = vst [vmem:[%s3] sm:$0xff] %v275
    %284 = vst [vmem:[%s3 + $0x8] sm:$0xf] %v276
    %285 = vst [vmem:[%s3 + $0xc] sm:$0xff] %v277
    %286 = vst [vmem:[%s3 + $0x14] sm:$0xf] %v278
    %287 = vst [vmem:[%s3 + $0x18] sm:$0xff] %v279
    %288 = vst [vmem:[%s3 + $0x20] sm:$0xf] %v280
    %289 = vst [vmem:[%s3 + $0x24] sm:$0xff] %v281
    %290 = vst [vmem:[%s3 + $0x2c] sm:$0xf] %v282
    // Predicated region
    $region18: #{transformer_net_forward.13} parent=1 // pred_check
      _
    $region19: #{transformer_net_forward.13} parent=1 // pred_check_branch
      %292 = sbr.rel (0) target = $region21
    $region20: #{transformer_net_forward.13} parent=1 // pred_region
      _
    $region21: #{transformer_net_forward.13} parent=1 // pred_fallthru
      _
    // Predicated region
    $region22: #{transformer_net_forward.13} parent=1 // pred_check
      _
    $region23: #{transformer_net_forward.13} parent=1 // pred_check_branch
      %294 = sbr.rel (0) target = $region25
    $region24: #{transformer_net_forward.13} parent=1 // pred_region
      _
    $region25: #{transformer_net_forward.13} parent=1 // pred_fallthru
      _
    %295 = vsyncpa [#allocation3], 1

// kernel: transformer_net_forward.15
$region0: #{transformer_net_forward.15}
  #allocation0 [shape = 'u32[]', space=smem, size = 0x4, offset = 0x4, fixed_abs, tag = 'smem constant byte address 0x4 - core index']
  #allocation1 [shape = 'u32[72,128]{1,0:T(1,128)}', space=vmem, size = 0x9000, scoped, tag = 'internal scratch']
  %s0 = inlined_call_operand.vmem [shape: bf16[32,128], index: 0, kind: input, shape index: {}]
  %s1 = inlined_call_operand.vmem [shape: bf16[128,128], index: 1, kind: input, shape index: {}]
  %s2 = inlined_call_operand.vmem [shape: bf16[1,128], index: 2, kind: input, shape index: {}]
  %s3 = inlined_call_operand.vmem [shape: bf16[32,128], index: 3, kind: input, shape index: {}]
  %s4 = inlined_call_operand.vmem [shape: bf16[1,128], index: 4, kind: input, shape index: {}]
  %s5 = inlined_call_operand.vmem [shape: bf16[1,128], index: 5, kind: input, shape index: {}]
  %s6 = inlined_call_operand.vmem [shape: bf16[32,128], index: 6, kind: output, shape index: {}]
  %s7 = sld [smem:[#allocation0]]
  $region34: #{transformer_net_forward.15} parent=0
    _
  %s9 = ssub.s32 1, %s7
  %s10 = scalar_select 0, %s9, %s7
  // Predicated region
  $region2: #{transformer_net_forward.15} parent=0 // pred_check
    _
  $region3: #{transformer_net_forward.15} parent=0 // pred_check_branch
    %12 = sbr.rel (0) target = $region5
  $region4: #{transformer_net_forward.15} parent=0 // pred_region
    _
  $region5: #{transformer_net_forward.15} parent=0 // pred_fallthru
    _
  // Predicated region
  $region6: #{transformer_net_forward.15} parent=0 // pred_check
    _
  $region7: #{transformer_net_forward.15} parent=0 // pred_check_branch
    %14 = sbr.rel (0) target = $region9
  $region8: #{transformer_net_forward.15} parent=0 // pred_region
    _
  $region9: #{transformer_net_forward.15} parent=0 // pred_fallthru
    _
  // Predicated region
  $region10: #{transformer_net_forward.15} parent=0 // pred_check
    _
  $region11: #{transformer_net_forward.15} parent=0 // pred_check_branch
    %16 = sbr.rel (0) target = $region13
  $region12: #{transformer_net_forward.15} parent=0 // pred_region
    _
  $region13: #{transformer_net_forward.15} parent=0 // pred_fallthru
    _
  // Predicated region
  $region14: #{transformer_net_forward.15} parent=0 // pred_check
    _
  $region15: #{transformer_net_forward.15} parent=0 // pred_check_branch
    %18 = sbr.rel (0) target = $region17
  $region16: #{transformer_net_forward.15} parent=0 // pred_region
    _
  $region17: #{transformer_net_forward.15} parent=0 // pred_fallthru
    _
  // Predicated region
  $region18: #{transformer_net_forward.15} parent=0 // pred_check
    _
  $region19: #{transformer_net_forward.15} parent=0 // pred_check_branch
    %20 = sbr.rel (0) target = $region21
  $region20: #{transformer_net_forward.15} parent=0 // pred_region
    _
  $region21: #{transformer_net_forward.15} parent=0 // pred_fallthru
    _
  // Predicated region
  $region22: #{transformer_net_forward.15} parent=0 // pred_check
    _
  $region23: #{transformer_net_forward.15} parent=0 // pred_check_branch
    %22 = sbr.rel (0) target = $region25
  $region24: #{transformer_net_forward.15} parent=0 // pred_region
    _
  $region25: #{transformer_net_forward.15} parent=0 // pred_fallthru
    _
  %v23 = vld [vmem:[%s0] sm:$0xf]
  %v24 = vld [vmem:[%s0 + $0x4] sm:$0xf]
  %v25 = vld [vmem:[%s0 + $0x8] sm:$0xf]
  %v26 = vld [vmem:[%s0 + $0xc] sm:$0xf]
  %v27 = vld [vmem:[%s1] sm:$0xf]
  %v28 = vld [vmem:[%s1 + $0x4] sm:$0xf]
  %v29 = vld [vmem:[%s1 + $0x8] sm:$0xf]
  %v30 = vld [vmem:[%s1 + $0xc] sm:$0xf]
  %v31 = vld [vmem:[%s1 + $0x10] sm:$0xf]
  %v32 = vld [vmem:[%s1 + $0x14] sm:$0xf]
  %v33 = vld [vmem:[%s1 + $0x18] sm:$0xf]
  %v34 = vld [vmem:[%s1 + $0x1c] sm:$0xf]
  %v35 = vld [vmem:[%s1 + $0x20] sm:$0xf]
  %v36 = vld [vmem:[%s1 + $0x24] sm:$0xf]
  %v37 = vld [vmem:[%s1 + $0x28] sm:$0xf]
  %v38 = vld [vmem:[%s1 + $0x2c] sm:$0xf]
  %v39 = vld [vmem:[%s1 + $0x30] sm:$0xf]
  %v40 = vld [vmem:[%s1 + $0x34] sm:$0xf]
  %v41 = vld [vmem:[%s1 + $0x38] sm:$0xf]
  %v42 = vld [vmem:[%s1 + $0x3c] sm:$0xf]
  %v43 = vld [vmem:[%s2] sm:$0x1]
  %v44 = vunpack.c.l.bf16 %v43
  %v45 = vperm.slane %v44, 0
  %v50 = vunpack.c.l.b16 %v23
  %v51 = vunpack.c.l.b16 %v24
  %v52 = vunpack.c.l.b16 %v25
  %v53 = vunpack.c.l.b16 %v26
  %v54 = vpack.c.b16 %v51, %v50
  %v55 = vpack.c.b16 %v53, %v52
  %v74 = vunpack.c.l.b16 %v27
  %v75 = vunpack.c.l.b16 %v28
  %v76 = vunpack.c.l.b16 %v29
  %v77 = vunpack.c.l.b16 %v30
  %v78 = vunpack.c.l.b16 %v31
  %v79 = vunpack.c.l.b16 %v32
  %v80 = vunpack.c.l.b16 %v33
  %v81 = vunpack.c.l.b16 %v34
  %v82 = vunpack.c.l.b16 %v35
  %v83 = vunpack.c.l.b16 %v36
  %v84 = vunpack.c.l.b16 %v37
  %v85 = vunpack.c.l.b16 %v38
  %v86 = vunpack.c.l.b16 %v39
  %v87 = vunpack.c.l.b16 %v40
  %v88 = vunpack.c.l.b16 %v41
  %v89 = vunpack.c.l.b16 %v42
  %v90 = vpack.c.b16 %v75, %v74
  %v91 = vpack.c.b16 %v77, %v76
  %v92 = vpack.c.b16 %v79, %v78
  %v93 = vpack.c.b16 %v81, %v80
  %v94 = vpack.c.b16 %v83, %v82
  %v95 = vpack.c.b16 %v85, %v84
  %v96 = vpack.c.b16 %v87, %v86
  %v97 = vpack.c.b16 %v89, %v88
  %106 = vmatpush.bf16.msra.mxu0 %v97
  %107 = vmatpush.bf16.msra.mxu0 %v96
  %108 = vmatpush.bf16.msra.mxu0 %v95
  %109 = vmatpush.bf16.msra.mxu0 %v94
  %110 = vmatpush.bf16.msra.mxu0 %v93
  %111 = vmatpush.bf16.msra.mxu0 %v92
  %112 = vmatpush.bf16.msra.mxu0 %v91
  %113 = vmatpush.bf16.msra.mxu0 %v90
  %114 = vmatmul.bf16.gmra.mxu0 %v54
  %v115 = vpop.f32.mrf.mxu0
  %v116 = vadd.f32 %v45, %v115
  %v117 = vpop.f32.mrf.mxu0
  %v118 = vadd.f32 %v45, %v117
  %119 = vmatmul.bf16.gmra.mxu0 %v55
  %v120 = vpop.f32.mrf.mxu0
  %v121 = vadd.f32 %v45, %v120
  %v122 = vpop.f32.mrf.mxu0
  %v123 = vadd.f32 %v45, %v122
  %124 = vdwg.mxu0
  %v125 = vld [vmem:[%s3] sm:$0xf]
  %v126 = vld [vmem:[%s3 + $0x4] sm:$0xf]
  %v127 = vld [vmem:[%s3 + $0x8] sm:$0xf]
  %v128 = vld [vmem:[%s3 + $0xc] sm:$0xf]
  %v129 = vunpack.c.l.bf16 %v125
  %v130 = vunpack.c.l.bf16 %v126
  %v131 = vunpack.c.l.bf16 %v127
  %v132 = vunpack.c.l.bf16 %v128
  %v133 = vadd.f32 %v116, %v129
  %v134 = vadd.f32 %v118, %v130
  %v135 = vadd.f32 %v121, %v131
  %v136 = vadd.f32 %v123, %v132
  %137 = vadd.xlane.f32.xlu0 %v133
  %v138 = vpop.xlane.xlu0 %137
  %139 = vadd.xlane.f32.xlu0 %v134
  %v140 = vpop.xlane.xlu0 %139
  %141 = vadd.xlane.f32.xlu0 %v135
  %v142 = vpop.xlane.xlu0 %141
  %143 = vadd.xlane.f32.xlu0 %v136
  %v144 = vpop.xlane.xlu0 %143
  %v145 = vrcp.pop 128.0
  %v146 = vmul.f32 128.0, %v145
  %v147 = vsub.f32 1.0, %v146
  %v148 = vmul.f32 %v145, %v147
  %v149 = vadd.f32 %v145, %v148
  %vm150 = vweird.f32 %v145
  %v151 = vsel %vm150, %v145, %v149
  %v152 = vmul.f32 %v138, %v151
  %v153 = vmul.f32 %v140, %v151
  %v154 = vmul.f32 %v142, %v151
  %v155 = vmul.f32 %v144, %v151
  %v156 = vsub.f32 %v133, %v152
  %v157 = vsub.f32 %v134, %v153
  %v158 = vsub.f32 %v135, %v154
  %v159 = vsub.f32 %v136, %v155
  %v160 = vmul.f32 %v156, %v156
  %v161 = vmul.f32 %v157, %v157
  %v162 = vmul.f32 %v158, %v158
  %v163 = vmul.f32 %v159, %v159
  %164 = vadd.xlane.f32.xlu0 %v160
  %v165 = vpop.xlane.xlu0 %164
  %166 = vadd.xlane.f32.xlu0 %v161
  %v167 = vpop.xlane.xlu0 %166
  %168 = vadd.xlane.f32.xlu0 %v162
  %v169 = vpop.xlane.xlu0 %168
  %170 = vadd.xlane.f32.xlu0 %v163
  %v171 = vpop.xlane.xlu0 %170
  %v172 = vmul.f32 %v165, %v151
  %v173 = vmul.f32 %v167, %v151
  %v174 = vmul.f32 %v169, %v151
  %v175 = vmul.f32 %v171, %v151
  %v176 = vadd.f32 %v172, 1e-05
  %v177 = vadd.f32 %v173, 1e-05
  %v178 = vadd.f32 %v174, 1e-05
  %v179 = vadd.f32 %v175, 1e-05
  %v180 = vrsqrt.pop %v176
  %v181 = vmul.f32 %v180, %v176
  %v182 = vmul.f32 %v181, %v180
  %v183 = vmul.f32 0.5, %v182
  %v184 = vsub.f32 1.5, %v183
  %v185 = vmul.f32 %v180, %v184
  %vm186 = vweird.f32 %v176
  %vm187 = vweird.f32 %v180
  %vm188 = vmor %vm186, %vm187
  %v189 = vsel %vm188, %v180, %v185
  %v190 = vrsqrt.pop %v177
  %v191 = vmul.f32 %v190, %v177
  %v192 = vmul.f32 %v191, %v190
  %v193 = vmul.f32 0.5, %v192
  %v194 = vsub.f32 1.5, %v193
  %v195 = vmul.f32 %v190, %v194
  %vm196 = vweird.f32 %v177
  %vm197 = vweird.f32 %v190
  %vm198 = vmor %vm196, %vm197
  %v199 = vsel %vm198, %v190, %v195
  %v200 = vrsqrt.pop %v178
  %v201 = vmul.f32 %v200, %v178
  %v202 = vmul.f32 %v201, %v200
  %v203 = vmul.f32 0.5, %v202
  %v204 = vsub.f32 1.5, %v203
  %v205 = vmul.f32 %v200, %v204
  %vm206 = vweird.f32 %v178
  %vm207 = vweird.f32 %v200
  %vm208 = vmor %vm206, %vm207
  %v209 = vsel %vm208, %v200, %v205
  %v210 = vrsqrt.pop %v179
  %v211 = vmul.f32 %v210, %v179
  %v212 = vmul.f32 %v211, %v210
  %v213 = vmul.f32 0.5, %v212
  %v214 = vsub.f32 1.5, %v213
  %v215 = vmul.f32 %v210, %v214
  %vm216 = vweird.f32 %v179
  %vm217 = vweird.f32 %v210
  %vm218 = vmor %vm216, %vm217
  %v219 = vsel %vm218, %v210, %v215
  %v220 = vmul.f32 %v156, %v189
  %v221 = vmul.f32 %v157, %v199
  %v222 = vmul.f32 %v158, %v209
  %v223 = vmul.f32 %v159, %v219
  %v224 = vld [vmem:[%s4] sm:$0x1]
  %v225 = vunpack.c.l.bf16 %v224
  %v226 = vperm.slane %v225, 0
  %v227 = vmul.f32 %v220, %v226
  %v228 = vmul.f32 %v221, %v226
  %v229 = vmul.f32 %v222, %v226
  %v230 = vmul.f32 %v223, %v226
  %v231 = vld [vmem:[%s5] sm:$0x1]
  %v232 = vunpack.c.l.bf16 %v231
  %v233 = vperm.slane %v232, 0
  %v234 = vadd.f32 %v227, %v233
  %v235 = vadd.f32 %v228, %v233
  %v236 = vadd.f32 %v229, %v233
  %v237 = vadd.f32 %v230, %v233
  %v238 = vpack.c.bf16 %v234, %v234
  %v239 = vpack.c.bf16 %v235, %v235
  %v240 = vpack.c.bf16 %v236, %v236
  %v241 = vpack.c.bf16 %v237, %v237
  %242 = vst [vmem:[%s6] sm:$0xf] %v238
  %243 = vst [vmem:[%s6 + $0x4] sm:$0xf] %v239
  %244 = vst [vmem:[%s6 + $0x8] sm:$0xf] %v240
  %245 = vst [vmem:[%s6 + $0xc] sm:$0xf] %v241
  // Predicated region
  $region26: #{transformer_net_forward.15} parent=0 // pred_check
    _
  $region27: #{transformer_net_forward.15} parent=0 // pred_check_branch
    %247 = sbr.rel (0) target = $region29
  $region28: #{transformer_net_forward.15} parent=0 // pred_region
    _
  $region29: #{transformer_net_forward.15} parent=0 // pred_fallthru
    _
  // Predicated region
  $region30: #{transformer_net_forward.15} parent=0 // pred_check
    _
  $region31: #{transformer_net_forward.15} parent=0 // pred_check_branch
    %249 = sbr.rel (0) target = $region33
  $region32: #{transformer_net_forward.15} parent=0 // pred_region
    _
  $region33: #{transformer_net_forward.15} parent=0 // pred_fallthru
    _

// kernel: transformer_net_forward.16
$region0: #{transformer_net_forward.16}
  #allocation0 [shape = 'u32[]', space=smem, size = 0x4, offset = 0x4, fixed_abs, tag = 'smem constant byte address 0x4 - core index']
  #allocation1 [shape = 'u32[72,128]{1,0:T(1,128)}', space=vmem, size = 0x9000, scoped, tag = 'internal scratch']
  %s0 = inlined_call_operand.vmem [shape: bf16[32,128], index: 0, kind: input, shape index: {}]
  %s1 = inlined_call_operand.vmem [shape: bf16[128,512], index: 1, kind: input, shape index: {}]
  %s2 = inlined_call_operand.vmem [shape: bf16[1,512], index: 2, kind: input, shape index: {}]
  %s3 = inlined_call_operand.vmem [shape: bf16[32,512], index: 3, kind: output, shape index: {}]
  %s4 = sld [smem:[#allocation0]]
  $region22: #{transformer_net_forward.16} parent=0
    _
  %s6 = ssub.s32 1, %s4
  %s7 = scalar_select 0, %s6, %s4
  // Predicated region
  $region2: #{transformer_net_forward.16} parent=0 // pred_check
    _
  $region3: #{transformer_net_forward.16} parent=0 // pred_check_branch
    %9 = sbr.rel (0) target = $region5
  $region4: #{transformer_net_forward.16} parent=0 // pred_region
    _
  $region5: #{transformer_net_forward.16} parent=0 // pred_fallthru
    _
  // Predicated region
  $region6: #{transformer_net_forward.16} parent=0 // pred_check
    _
  $region7: #{transformer_net_forward.16} parent=0 // pred_check_branch
    %11 = sbr.rel (0) target = $region9
  $region8: #{transformer_net_forward.16} parent=0 // pred_region
    _
  $region9: #{transformer_net_forward.16} parent=0 // pred_fallthru
    _
  // Predicated region
  $region10: #{transformer_net_forward.16} parent=0 // pred_check
    _
  $region11: #{transformer_net_forward.16} parent=0 // pred_check_branch
    %13 = sbr.rel (0) target = $region13
  $region12: #{transformer_net_forward.16} parent=0 // pred_region
    _
  $region13: #{transformer_net_forward.16} parent=0 // pred_fallthru
    _
  %v14 = vld [vmem:[%s0] sm:$0xf]
  %v15 = vld [vmem:[%s0 + $0x4] sm:$0xf]
  %v16 = vld [vmem:[%s0 + $0x8] sm:$0xf]
  %v17 = vld [vmem:[%s0 + $0xc] sm:$0xf]
  %v18 = vld [vmem:[%s1] sm:$0xff]
  %v19 = vld [vmem:[%s1 + $0x8] sm:$0xff]
  %v20 = vld [vmem:[%s1 + $0x10] sm:$0xff]
  %v21 = vld [vmem:[%s1 + $0x18] sm:$0xff]
  %v22 = vld [vmem:[%s1 + $0x20] sm:$0xff]
  %v23 = vld [vmem:[%s1 + $0x28] sm:$0xff]
  %v24 = vld [vmem:[%s1 + $0x30] sm:$0xff]
  %v25 = vld [vmem:[%s1 + $0x38] sm:$0xff]
  %v26 = vld [vmem:[%s1 + $0x40] sm:$0xff]
  %v27 = vld [vmem:[%s1 + $0x48] sm:$0xff]
  %v28 = vld [vmem:[%s1 + $0x50] sm:$0xff]
  %v29 = vld [vmem:[%s1 + $0x58] sm:$0xff]
  %v30 = vld [vmem:[%s1 + $0x60] sm:$0xff]
  %v31 = vld [vmem:[%s1 + $0x68] sm:$0xff]
  %v32 = vld [vmem:[%s1 + $0x70] sm:$0xff]
  %v33 = vld [vmem:[%s1 + $0x78] sm:$0xff]
  %v34 = vld [vmem:[%s1 + $0x80] sm:$0xff]
  %v35 = vld [vmem:[%s1 + $0x88] sm:$0xff]
  %v36 = vld [vmem:[%s1 + $0x90] sm:$0xff]
  %v37 = vld [vmem:[%s1 + $0x98] sm:$0xff]
  %v38 = vld [vmem:[%s1 + $0xa0] sm:$0xff]
  %v39 = vld [vmem:[%s1 + $0xa8] sm:$0xff]
  %v40 = vld [vmem:[%s1 + $0xb0] sm:$0xff]
  %v41 = vld [vmem:[%s1 + $0xb8] sm:$0xff]
  %v42 = vld [vmem:[%s1 + $0xc0] sm:$0xff]
  %v43 = vld [vmem:[%s1 + $0xc8] sm:$0xff]
  %v44 = vld [vmem:[%s1 + $0xd0] sm:$0xff]
  %v45 = vld [vmem:[%s1 + $0xd8] sm:$0xff]
  %v46 = vld [vmem:[%s1 + $0xe0] sm:$0xff]
  %v47 = vld [vmem:[%s1 + $0xe8] sm:$0xff]
  %v48 = vld [vmem:[%s1 + $0xf0] sm:$0xff]
  %v49 = vld [vmem:[%s1 + $0xf8] sm:$0xff]
  %v50 = vld [vmem:[%s2] sm:$0xf]
  %v51 = vunpack.c.l.bf16 %v50
  %v53 = vperm.slane %v51, 0
  %v54 = vperm.slane %v51, 2
  %v55 = vperm.slane %v51, 4
  %v56 = vperm.slane %v51, 6
  %v61 = vperm.slane %v53, 0
  %v62 = vperm.slane %v54, 0
  %v63 = vperm.slane %v55, 0
  %v64 = vperm.slane %v56, 0
  %v69 = vunpack.c.l.b16 %v14
  %v70 = vunpack.c.l.b16 %v15
  %v71 = vunpack.c.l.b16 %v16
  %v72 = vunpack.c.l.b16 %v17
  %v73 = vpack.c.b16 %v70, %v69
  %v74 = vpack.c.b16 %v72, %v71
  %v109 = vunpack.c.l.b16 %v18
  %v110 = vunpack.c.h.b16 %v18
  %v111 = vunpack.c.l.b16 %v19
  %v112 = vunpack.c.h.b16 %v19
  %v113 = vunpack.c.l.b16 %v20
  %v114 = vunpack.c.h.b16 %v20
  %v115 = vunpack.c.l.b16 %v21
  %v116 = vunpack.c.h.b16 %v21
  %v117 = vunpack.c.l.b16 %v22
  %v118 = vunpack.c.h.b16 %v22
  %v119 = vunpack.c.l.b16 %v23
  %v120 = vunpack.c.h.b16 %v23
  %v121 = vunpack.c.l.b16 %v24
  %v122 = vunpack.c.h.b16 %v24
  %v123 = vunpack.c.l.b16 %v25
  %v124 = vunpack.c.h.b16 %v25
  %v125 = vunpack.c.l.b16 %v26
  %v126 = vunpack.c.h.b16 %v26
  %v127 = vunpack.c.l.b16 %v27
  %v128 = vunpack.c.h.b16 %v27
  %v129 = vunpack.c.l.b16 %v28
  %v130 = vunpack.c.h.b16 %v28
  %v131 = vunpack.c.l.b16 %v29
  %v132 = vunpack.c.h.b16 %v29
  %v133 = vunpack.c.l.b16 %v30
  %v134 = vunpack.c.h.b16 %v30
  %v135 = vunpack.c.l.b16 %v31
  %v136 = vunpack.c.h.b16 %v31
  %v137 = vunpack.c.l.b16 %v32
  %v138 = vunpack.c.h.b16 %v32
  %v139 = vunpack.c.l.b16 %v33
  %v140 = vunpack.c.h.b16 %v33
  %v141 = vunpack.c.l.b16 %v34
  %v142 = vunpack.c.h.b16 %v34
  %v143 = vunpack.c.l.b16 %v35
  %v144 = vunpack.c.h.b16 %v35
  %v145 = vunpack.c.l.b16 %v36
  %v146 = vunpack.c.h.b16 %v36
  %v147 = vunpack.c.l.b16 %v37
  %v148 = vunpack.c.h.b16 %v37
  %v149 = vunpack.c.l.b16 %v38
  %v150 = vunpack.c.h.b16 %v38
  %v151 = vunpack.c.l.b16 %v39
  %v152 = vunpack.c.h.b16 %v39
  %v153 = vunpack.c.l.b16 %v40
  %v154 = vunpack.c.h.b16 %v40
  %v155 = vunpack.c.l.b16 %v41
  %v156 = vunpack.c.h.b16 %v41
  %v157 = vunpack.c.l.b16 %v42
  %v158 = vunpack.c.h.b16 %v42
  %v159 = vunpack.c.l.b16 %v43
  %v160 = vunpack.c.h.b16 %v43
  %v161 = vunpack.c.l.b16 %v44
  %v162 = vunpack.c.h.b16 %v44
  %v163 = vunpack.c.l.b16 %v45
  %v164 = vunpack.c.h.b16 %v45
  %v165 = vunpack.c.l.b16 %v46
  %v166 = vunpack.c.h.b16 %v46
  %v167 = vunpack.c.l.b16 %v47
  %v168 = vunpack.c.h.b16 %v47
  %v169 = vunpack.c.l.b16 %v48
  %v170 = vunpack.c.h.b16 %v48
  %v171 = vunpack.c.l.b16 %v49
  %v172 = vunpack.c.h.b16 %v49
  %v173 = vpack.c.b16 %v113, %v109
  %v174 = vpack.c.b16 %v114, %v110
  %v175 = vpack.c.b16 %v115, %v111
  %v176 = vpack.c.b16 %v116, %v112
  %v177 = vpack.c.b16 %v121, %v117
  %v178 = vpack.c.b16 %v122, %v118
  %v179 = vpack.c.b16 %v123, %v119
  %v180 = vpack.c.b16 %v124, %v120
  %v181 = vpack.c.b16 %v129, %v125
  %v182 = vpack.c.b16 %v130, %v126
  %v183 = vpack.c.b16 %v131, %v127
  %v184 = vpack.c.b16 %v132, %v128
  %v185 = vpack.c.b16 %v137, %v133
  %v186 = vpack.c.b16 %v138, %v134
  %v187 = vpack.c.b16 %v139, %v135
  %v188 = vpack.c.b16 %v140, %v136
  %v189 = vpack.c.b16 %v145, %v141
  %v190 = vpack.c.b16 %v146, %v142
  %v191 = vpack.c.b16 %v147, %v143
  %v192 = vpack.c.b16 %v148, %v144
  %v193 = vpack.c.b16 %v153, %v149
  %v194 = vpack.c.b16 %v154, %v150
  %v195 = vpack.c.b16 %v155, %v151
  %v196 = vpack.c.b16 %v156, %v152
  %v197 = vpack.c.b16 %v161, %v157
  %v198 = vpack.c.b16 %v162, %v158
  %v199 = vpack.c.b16 %v163, %v159
  %v200 = vpack.c.b16 %v164, %v160
  %v201 = vpack.c.b16 %v169, %v165
  %v202 = vpack.c.b16 %v170, %v166
  %v203 = vpack.c.b16 %v171, %v167
  %v204 = vpack.c.b16 %v172, %v168
  %237 = vmatpush.bf16.msra.mxu0 %v201
  %238 = vmatpush.bf16.msra.mxu0 %v197
  %239 = vmatpush.bf16.msra.mxu0 %v193
  %240 = vmatpush.bf16.msra.mxu0 %v189
  %241 = vmatpush.bf16.msra.mxu0 %v185
  %242 = vmatpush.bf16.msra.mxu0 %v181
  %243 = vmatpush.bf16.msra.mxu0 %v177
  %244 = vmatpush.bf16.msra.mxu0 %v173
  %245 = vmatmul.bf16.gmra.mxu0 %v73
  %v246 = vpop.f32.mrf.mxu0
  %v247 = vadd.f32 %v61, %v246
  %v248 = vpop.f32.mrf.mxu0
  %v249 = vadd.f32 %v61, %v248
  %250 = vmatmul.bf16.gmra.mxu0 %v74
  %v251 = vpop.f32.mrf.mxu0
  %v252 = vadd.f32 %v61, %v251
  %v253 = vpop.f32.mrf.mxu0
  %v254 = vadd.f32 %v61, %v253
  %255 = vdwg.mxu0
  %256 = vmatpush.bf16.msra.mxu0 %v202
  %257 = vmatpush.bf16.msra.mxu0 %v198
  %258 = vmatpush.bf16.msra.mxu0 %v194
  %259 = vmatpush.bf16.msra.mxu0 %v190
  %260 = vmatpush.bf16.msra.mxu0 %v186
  %261 = vmatpush.bf16.msra.mxu0 %v182
  %262 = vmatpush.bf16.msra.mxu0 %v178
  %263 = vmatpush.bf16.msra.mxu0 %v174
  %264 = vmatmul.bf16.gmra.mxu0 %v73
  %v265 = vpop.f32.mrf.mxu0
  %v266 = vadd.f32 %v62, %v265
  %v267 = vpop.f32.mrf.mxu0
  %v268 = vadd.f32 %v62, %v267
  %269 = vmatmul.bf16.gmra.mxu0 %v74
  %v270 = vpop.f32.mrf.mxu0
  %v271 = vadd.f32 %v62, %v270
  %v272 = vpop.f32.mrf.mxu0
  %v273 = vadd.f32 %v62, %v272
  %274 = vdwg.mxu0
  %275 = vmatpush.bf16.msra.mxu0 %v203
  %276 = vmatpush.bf16.msra.mxu0 %v199
  %277 = vmatpush.bf16.msra.mxu0 %v195
  %278 = vmatpush.bf16.msra.mxu0 %v191
  %279 = vmatpush.bf16.msra.mxu0 %v187
  %280 = vmatpush.bf16.msra.mxu0 %v183
  %281 = vmatpush.bf16.msra.mxu0 %v179
  %282 = vmatpush.bf16.msra.mxu0 %v175
  %283 = vmatmul.bf16.gmra.mxu0 %v73
  %v284 = vpop.f32.mrf.mxu0
  %v285 = vadd.f32 %v63, %v284
  %v286 = vpop.f32.mrf.mxu0
  %v287 = vadd.f32 %v63, %v286
  %288 = vmatmul.bf16.gmra.mxu0 %v74
  %v289 = vpop.f32.mrf.mxu0
  %v290 = vadd.f32 %v63, %v289
  %v291 = vpop.f32.mrf.mxu0
  %v292 = vadd.f32 %v63, %v291
  %293 = vdwg.mxu0
  %294 = vmatpush.bf16.msra.mxu0 %v204
  %295 = vmatpush.bf16.msra.mxu0 %v200
  %296 = vmatpush.bf16.msra.mxu0 %v196
  %297 = vmatpush.bf16.msra.mxu0 %v192
  %298 = vmatpush.bf16.msra.mxu0 %v188
  %299 = vmatpush.bf16.msra.mxu0 %v184
  %300 = vmatpush.bf16.msra.mxu0 %v180
  %301 = vmatpush.bf16.msra.mxu0 %v176
  %302 = vmatmul.bf16.gmra.mxu0 %v73
  %v303 = vpop.f32.mrf.mxu0
  %v304 = vadd.f32 %v64, %v303
  %v305 = vpop.f32.mrf.mxu0
  %v306 = vadd.f32 %v64, %v305
  %307 = vmatmul.bf16.gmra.mxu0 %v74
  %v308 = vpop.f32.mrf.mxu0
  %v309 = vadd.f32 %v64, %v308
  %v310 = vpop.f32.mrf.mxu0
  %v311 = vadd.f32 %v64, %v310
  %312 = vdwg.mxu0
  %v313 = vmul.f32 %v247, %v247
  %v314 = vmul.f32 %v266, %v266
  %v315 = vmul.f32 %v285, %v285
  %v316 = vmul.f32 %v304, %v304
  %v317 = vmul.f32 %v249, %v249
  %v318 = vmul.f32 %v268, %v268
  %v319 = vmul.f32 %v287, %v287
  %v320 = vmul.f32 %v306, %v306
  %v321 = vmul.f32 %v252, %v252
  %v322 = vmul.f32 %v271, %v271
  %v323 = vmul.f32 %v290, %v290
  %v324 = vmul.f32 %v309, %v309
  %v325 = vmul.f32 %v254, %v254
  %v326 = vmul.f32 %v273, %v273
  %v327 = vmul.f32 %v292, %v292
  %v328 = vmul.f32 %v311, %v311
  %v329 = vmul.f32 %v247, %v313
  %v330 = vmul.f32 %v266, %v314
  %v331 = vmul.f32 %v285, %v315
  %v332 = vmul.f32 %v304, %v316
  %v333 = vmul.f32 %v249, %v317
  %v334 = vmul.f32 %v268, %v318
  %v335 = vmul.f32 %v287, %v319
  %v336 = vmul.f32 %v306, %v320
  %v337 = vmul.f32 %v252, %v321
  %v338 = vmul.f32 %v271, %v322
  %v339 = vmul.f32 %v290, %v323
  %v340 = vmul.f32 %v309, %v324
  %v341 = vmul.f32 %v254, %v325
  %v342 = vmul.f32 %v273, %v326
  %v343 = vmul.f32 %v292, %v327
  %v344 = vmul.f32 %v311, %v328
  %v345 = vmul.f32 %v329, 0.044715
  %v346 = vmul.f32 %v330, 0.044715
  %v347 = vmul.f32 %v331, 0.044715
  %v348 = vmul.f32 %v332, 0.044715
  %v349 = vmul.f32 %v333, 0.044715
  %v350 = vmul.f32 %v334, 0.044715
  %v351 = vmul.f32 %v335, 0.044715
  %v352 = vmul.f32 %v336, 0.044715
  %v353 = vmul.f32 %v337, 0.044715
  %v354 = vmul.f32 %v338, 0.044715
  %v355 = vmul.f32 %v339, 0.044715
  %v356 = vmul.f32 %v340, 0.044715
  %v357 = vmul.f32 %v341, 0.044715
  %v358 = vmul.f32 %v342, 0.044715
  %v359 = vmul.f32 %v343, 0.044715
  %v360 = vmul.f32 %v344, 0.044715
  %v361 = vadd.f32 %v247, %v345
  %v362 = vadd.f32 %v266, %v346
  %v363 = vadd.f32 %v285, %v347
  %v364 = vadd.f32 %v304, %v348
  %v365 = vadd.f32 %v249, %v349
  %v366 = vadd.f32 %v268, %v350
  %v367 = vadd.f32 %v287, %v351
  %v368 = vadd.f32 %v306, %v352
  %v369 = vadd.f32 %v252, %v353
  %v370 = vadd.f32 %v271, %v354
  %v371 = vadd.f32 %v290, %v355
  %v372 = vadd.f32 %v309, %v356
  %v373 = vadd.f32 %v254, %v357
  %v374 = vadd.f32 %v273, %v358
  %v375 = vadd.f32 %v292, %v359
  %v376 = vadd.f32 %v311, %v360
  %v377 = vmul.f32 %v361, 0.7978846
  %v378 = vmul.f32 %v362, 0.7978846
  %v379 = vmul.f32 %v363, 0.7978846
  %v380 = vmul.f32 %v364, 0.7978846
  %v381 = vmul.f32 %v365, 0.7978846
  %v382 = vmul.f32 %v366, 0.7978846
  %v383 = vmul.f32 %v367, 0.7978846
  %v384 = vmul.f32 %v368, 0.7978846
  %v385 = vmul.f32 %v369, 0.7978846
  %v386 = vmul.f32 %v370, 0.7978846
  %v387 = vmul.f32 %v371, 0.7978846
  %v388 = vmul.f32 %v372, 0.7978846
  %v389 = vmul.f32 %v373, 0.7978846
  %v390 = vmul.f32 %v374, 0.7978846
  %v391 = vmul.f32 %v375, 0.7978846
  %v392 = vmul.f32 %v376, 0.7978846
  %v393 = vtanh.pop %v377
  %v394 = vtanh.pop %v378
  %v395 = vtanh.pop %v379
  %v396 = vtanh.pop %v380
  %v397 = vtanh.pop %v381
  %v398 = vtanh.pop %v382
  %v399 = vtanh.pop %v383
  %v400 = vtanh.pop %v384
  %v401 = vtanh.pop %v385
  %v402 = vtanh.pop %v386
  %v403 = vtanh.pop %v387
  %v404 = vtanh.pop %v388
  %v405 = vtanh.pop %v389
  %v406 = vtanh.pop %v390
  %v407 = vtanh.pop %v391
  %v408 = vtanh.pop %v392
  %v409 = vadd.f32 %v393, 1.0
  %v410 = vadd.f32 %v394, 1.0
  %v411 = vadd.f32 %v395, 1.0
  %v412 = vadd.f32 %v396, 1.0
  %v413 = vadd.f32 %v397, 1.0
  %v414 = vadd.f32 %v398, 1.0
  %v415 = vadd.f32 %v399, 1.0
  %v416 = vadd.f32 %v400, 1.0
  %v417 = vadd.f32 %v401, 1.0
  %v418 = vadd.f32 %v402, 1.0
  %v419 = vadd.f32 %v403, 1.0
  %v420 = vadd.f32 %v404, 1.0
  %v421 = vadd.f32 %v405, 1.0
  %v422 = vadd.f32 %v406, 1.0
  %v423 = vadd.f32 %v407, 1.0
  %v424 = vadd.f32 %v408, 1.0
  %v425 = vmul.f32 %v409, 0.5
  %v426 = vmul.f32 %v410, 0.5
  %v427 = vmul.f32 %v411, 0.5
  %v428 = vmul.f32 %v412, 0.5
  %v429 = vmul.f32 %v413, 0.5
  %v430 = vmul.f32 %v414, 0.5
  %v431 = vmul.f32 %v415, 0.5
  %v432 = vmul.f32 %v416, 0.5
  %v433 = vmul.f32 %v417, 0.5
  %v434 = vmul.f32 %v418, 0.5
  %v435 = vmul.f32 %v419, 0.5
  %v436 = vmul.f32 %v420, 0.5
  %v437 = vmul.f32 %v421, 0.5
  %v438 = vmul.f32 %v422, 0.5
  %v439 = vmul.f32 %v423, 0.5
  %v440 = vmul.f32 %v424, 0.5
  %v441 = vmul.f32 %v247, %v425
  %v442 = vmul.f32 %v266, %v426
  %v443 = vmul.f32 %v285, %v427
  %v444 = vmul.f32 %v304, %v428
  %v445 = vmul.f32 %v249, %v429
  %v446 = vmul.f32 %v268, %v430
  %v447 = vmul.f32 %v287, %v431
  %v448 = vmul.f32 %v306, %v432
  %v449 = vmul.f32 %v252, %v433
  %v450 = vmul.f32 %v271, %v434
  %v451 = vmul.f32 %v290, %v435
  %v452 = vmul.f32 %v309, %v436
  %v453 = vmul.f32 %v254, %v437
  %v454 = vmul.f32 %v273, %v438
  %v455 = vmul.f32 %v292, %v439
  %v456 = vmul.f32 %v311, %v440
  %v457 = vpack.c.bf16 %v442, %v441
  %v458 = vpack.c.bf16 %v444, %v443
  %v459 = vpack.c.bf16 %v446, %v445
  %v460 = vpack.c.bf16 %v448, %v447
  %v461 = vpack.c.bf16 %v450, %v449
  %v462 = vpack.c.bf16 %v452, %v451
  %v463 = vpack.c.bf16 %v454, %v453
  %v464 = vpack.c.bf16 %v456, %v455
  %465 = vst [vmem:[%s3] sm:$0xff] %v457
  %466 = vst [vmem:[%s3 + $0x8] sm:$0xff] %v458
  %467 = vst [vmem:[%s3 + $0x10] sm:$0xff] %v459
  %468 = vst [vmem:[%s3 + $0x18] sm:$0xff] %v460
  %469 = vst [vmem:[%s3 + $0x20] sm:$0xff] %v461
  %470 = vst [vmem:[%s3 + $0x28] sm:$0xff] %v462
  %471 = vst [vmem:[%s3 + $0x30] sm:$0xff] %v463
  %472 = vst [vmem:[%s3 + $0x38] sm:$0xff] %v464
  // Predicated region
  $region14: #{transformer_net_forward.16} parent=0 // pred_check
    _
  $region15: #{transformer_net_forward.16} parent=0 // pred_check_branch
    %474 = sbr.rel (0) target = $region17
  $region16: #{transformer_net_forward.16} parent=0 // pred_region
    _
  $region17: #{transformer_net_forward.16} parent=0 // pred_fallthru
    _
  // Predicated region
  $region18: #{transformer_net_forward.16} parent=0 // pred_check
    _
  $region19: #{transformer_net_forward.16} parent=0 // pred_check_branch
    %476 = sbr.rel (0) target = $region21
  $region20: #{transformer_net_forward.16} parent=0 // pred_region
    _
  $region21: #{transformer_net_forward.16} parent=0 // pred_fallthru
    _

// kernel: transformer_net_forward.14
$region0: #{transformer_net_forward.14}
  #allocation0 [shape = 'u32[]', space=smem, size = 0x4, offset = 0x4, fixed_abs, tag = 'smem constant byte address 0x4 - core index']
  #allocation1 [shape = 'u32[72,128]{1,0:T(1,128)}', space=vmem, size = 0x9000, scoped, tag = 'internal scratch']
  #allocation2 [shape = 'f32[16,4]{1,0:T(8,128)}', space=vmem, size = 0x2000, scoped, tag = 'scratch operand']
  #allocation3 [shape = 'f32[16,4]{1,0:T(8,128)}', space=vmem, size = 0x2000, scoped, tag = 'scratch operand']
  #allocation4 [shape = 'f32[16,128]{1,0:T(8,128)}', space=vmem, size = 0x2000, scoped, tag = 'scratch operand']
  %s0 = inlined_call_operand.vmem [shape: bf16[2,16,384], index: 0, kind: input, shape index: {}, may-alias: {0,1,2}]
  %s1 = inlined_call_operand.vmem [shape: bf16[2,16,384], index: 1, kind: input, shape index: {}, may-alias: {0,1,2}]
  %s2 = inlined_call_operand.vmem [shape: bf16[2,16,384], index: 2, kind: input, shape index: {}, may-alias: {0,1,2}]
  %s3 = inlined_call_operand.vmem [shape: bf16[2,16,128], index: 3, kind: output, shape index: {}]
  %s4 = sld [smem:[#allocation0]]
  $region176: #{transformer_net_forward.14} parent=0
    _
  %s6 = ssub.s32 1, %s4
  %s7 = scalar_select 0, %s6, %s4
  $region1: #{transformer_net_forward.14} parent=0
    #allocation5 [shape = 'u8[8192]{0}', space=vmem, size = 0x2000, scoped, tag = 'input window, operand 0']
    #allocation6 [shape = 'u8[8192]{0}', space=vmem, size = 0x2000, scoped, tag = 'input window, operand 1']
    #allocation7 [shape = 'u8[8192]{0}', space=vmem, size = 0x2000, scoped, tag = 'input window, operand 2']
    loop: start=0, step=1, limit=4
    $region2: #{transformer_net_forward.14} parent=1 // loop_pre_header
      _
    $region3: #{transformer_net_forward.14} parent=1 // loop_header
      %s9 = sphi 0, %s13
      %p10 = scmp.ge.s32.totalorder %s9, 4
      %s16 = sphi 0, %s35
      %s17 = sphi 0, %s31
      %s18 = sphi 0, %s27
      %s19 = sphi 0, %s16
      %s20 = sphi 0, %s17
      %s21 = sphi 0, %s18
      %s22 = sphi 0, %s19
      %s23 = sphi 0, %s20
      %s24 = sphi 0, %s21
      %s40 = sphi 0, %s42
      %s43 = sphi 0, %s40
      %s44 = sphi 0, %s43
      %s60 = sphi 0, %s44
      %s68 = sphi 0, %s70
      %s71 = sphi 0, %s68
      %s72 = sphi 0, %s71
      %s88 = sphi 0, %s72
      %s96 = sphi 0, %s98
      %s99 = sphi 0, %s96
      %s100 = sphi 0, %s99
      %s116 = sphi 0, %s100
      %s124 = sphi 0, %s126
      %s127 = sphi 0, %s124
      %s128 = sphi 0, %s127
      %s144 = sphi 0, %s128
    $region4: #{transformer_net_forward.14} parent=1 // loop_header_branch
      %12 = sbr.rel (%p10) target = $region8
    $region5: #{transformer_net_forward.14} parent=1 // loop_body
      %s14 = ssub.s32 %s9, 1
      %s15 = ssub.s32 %s9, 2
      %s25 = sadd.s32 1, %s18
      %p26 = scmp.ge.s32.totalorder %s25, 1
      %s27 = scalar_select %p26, 0, %s25
      %s28 = sadd.s32 1, %s17
      %s29 = scalar_select %p26, %s28, %s17
      %p30 = scmp.ge.s32.totalorder %s29, 1
      %s31 = scalar_select %p30, 0, %s29
      %s32 = sadd.s32 1, %s16
      %s33 = scalar_select %p30, %s32, %s16
      %p34 = scmp.ge.s32.totalorder %s33, 2
      %s35 = scalar_select %p34, 0, %s33
      %s36 = ssub.s32 %s16, %s35
      %s37 = ssub.s32 %s17, %s31
      %s38 = sor.u32 %s36, %s37
      %p39 = scmp.eq.s32.totalorder %s38, 0
      %s41 = sadd.s32 %s40, 1
      %s42 = scalar_select %p39, %s40, %s41
      %p45 = pneg %p39
      %p46 = scmp.eq.s32.totalorder %s9, 1
      %p47 = por %p45, %p46
      %p48 = scmp.ne.s32.totalorder %s40, %s43
      %p49 = scmp.eq.s32.totalorder %s9, 0
      %p50 = por %p48, %p49
      %p51 = scmp.ne.s32.totalorder %s40, %s43
      %p52 = scmp.eq.s32.totalorder %s14, 1
      %p53 = por %p51, %p52
      %p54 = scmp.ne.s32.totalorder %s43, %s44
      %p55 = scmp.eq.s32.totalorder %s14, 0
      %p56 = por %p54, %p55
      %p57 = scmp.ne.s32.totalorder %s43, %s44
      %p58 = scmp.eq.s32.totalorder %s15, 1
      %p59 = por %p57, %p58
      %p61 = scmp.ne.s32.totalorder %s44, %s60
      %p62 = scmp.eq.s32.totalorder %s15, 0
      %p63 = por %p61, %p62
      %s64 = ssub.s32 %s16, %s35
      %s65 = ssub.s32 %s18, %s27
      %s66 = sor.u32 %s64, %s65
      %p67 = scmp.eq.s32.totalorder %s66, 0
      %s69 = sadd.s32 %s68, 1
      %s70 = scalar_select %p67, %s68, %s69
      %p73 = pneg %p67
      %p74 = scmp.eq.s32.totalorder %s9, 1
      %p75 = por %p73, %p74
      %p76 = scmp.ne.s32.totalorder %s68, %s71
      %p77 = scmp.eq.s32.totalorder %s9, 0
      %p78 = por %p76, %p77
      %p79 = scmp.ne.s32.totalorder %s68, %s71
      %p80 = scmp.eq.s32.totalorder %s14, 1
      %p81 = por %p79, %p80
      %p82 = scmp.ne.s32.totalorder %s71, %s72
      %p83 = scmp.eq.s32.totalorder %s14, 0
      %p84 = por %p82, %p83
      %p85 = scmp.ne.s32.totalorder %s71, %s72
      %p86 = scmp.eq.s32.totalorder %s15, 1
      %p87 = por %p85, %p86
      %p89 = scmp.ne.s32.totalorder %s72, %s88
      %p90 = scmp.eq.s32.totalorder %s15, 0
      %p91 = por %p89, %p90
      %s92 = ssub.s32 %s16, %s35
      %s93 = ssub.s32 %s18, %s27
      %s94 = sor.u32 %s92, %s93
      %p95 = scmp.eq.s32.totalorder %s94, 0
      %s97 = sadd.s32 %s96, 1
      %s98 = scalar_select %p95, %s96, %s97
      %p101 = pneg %p95
      %p102 = scmp.eq.s32.totalorder %s9, 1
      %p103 = por %p101, %p102
      %p104 = scmp.ne.s32.totalorder %s96, %s99
      %p105 = scmp.eq.s32.totalorder %s9, 0
      %p106 = por %p104, %p105
      %p107 = scmp.ne.s32.totalorder %s96, %s99
      %p108 = scmp.eq.s32.totalorder %s14, 1
      %p109 = por %p107, %p108
      %p110 = scmp.ne.s32.totalorder %s99, %s100
      %p111 = scmp.eq.s32.totalorder %s14, 0
      %p112 = por %p110, %p111
      %p113 = scmp.ne.s32.totalorder %s99, %s100
      %p114 = scmp.eq.s32.totalorder %s15, 1
      %p115 = por %p113, %p114
      %p117 = scmp.ne.s32.totalorder %s100, %s116
      %p118 = scmp.eq.s32.totalorder %s15, 0
      %p119 = por %p117, %p118
      %s120 = ssub.s32 %s16, %s35
      %s121 = ssub.s32 %s17, %s31
      %s122 = sor.u32 %s120, %s121
      %p123 = scmp.eq.s32.totalorder %s122, 0
      %s125 = sadd.s32 %s124, 1
      %s126 = scalar_select %p123, %s124, %s125
      %p129 = pneg %p123
      %p130 = scmp.eq.s32.totalorder %s9, 1
      %p131 = por %p129, %p130
      %p132 = scmp.ne.s32.totalorder %s124, %s127
      %p133 = scmp.eq.s32.totalorder %s9, 0
      %p134 = por %p132, %p133
      %p135 = scmp.ne.s32.totalorder %s124, %s127
      %p136 = scmp.eq.s32.totalorder %s14, 1
      %p137 = por %p135, %p136
      %p138 = scmp.ne.s32.totalorder %s127, %s128
      %p139 = scmp.eq.s32.totalorder %s14, 0
      %p140 = por %p138, %p139
      %p141 = scmp.ne.s32.totalorder %s127, %s128
      %p142 = scmp.eq.s32.totalorder %s15, 1
      %p143 = por %p141, %p142
      %p145 = scmp.ne.s32.totalorder %s128, %s144
      %p146 = scmp.eq.s32.totalorder %s15, 0
      %p147 = por %p145, %p146
      %p148 = scmp.le.s32.totalorder 1, %s9
      %p149 = scmp.lt.s32.totalorder %s9, 3
      %p150 = pnand %p148, %p149
      %p151 = pneg %p150
      // Predicated region
      $region9: #{transformer_net_forward.14} parent=5 // pred_check
        _
      $region10: #{transformer_net_forward.14} parent=5 // pred_check_branch
        %153 = sbr.rel (%p150) target = $region12
      $region11: #{transformer_net_forward.14} parent=5 // pred_region
        %s154 = ssub.s32 %s9, 1
      $region12: #{transformer_net_forward.14} parent=5 // pred_fallthru
        _
      %p155 = scmp.lt.s32.totalorder %s9, 2
      // Predicated region
      $region13: #{transformer_net_forward.14} parent=5 // pred_check
        %p156 = pneg %p155
      $region14: #{transformer_net_forward.14} parent=5 // pred_check_branch
        %158 = sbr.rel (%p156) target = $region16
      $region15: #{transformer_net_forward.14} parent=5 // pred_region
        // Predicated region
        $region17: #{transformer_net_forward.14} parent=15 // pred_check
          %p159 = pneg %p50
        $region18: #{transformer_net_forward.14} parent=15 // pred_check_branch
          %161 = sbr.rel (%p159) target = $region20
        $region19: #{transformer_net_forward.14} parent=15 // pred_region
          %s162 = sand.u32 %s40, 1
          %s163 = sand.u32 %s40, 1
          %s164 = smul.addr %s163, 8
          %s165 = scalar_lea.vmem [#allocation5], %s164
          %s166 = smul.u32 2, %s17
          %s167 = smul.addr %s166, 3
          %s168 = smul.addr %s16, 6
          %s169 = sadd.s32 %s167, %s168
          %s170 = smul.addr %s169, 4
          %s171 = scalar_lea.vmem %s0, %s170
          // Predicated region
          $region21: #{transformer_net_forward.14} parent=19 // pred_check
            _
          $region22: #{transformer_net_forward.14} parent=19 // pred_check_branch
            %173 = sbr.rel (0) target = $region24
          $region23: #{transformer_net_forward.14} parent=19 // pred_region
            // Predicated region
            $region25: #{transformer_net_forward.14} parent=23 // pred_check
              _
            $region26: #{transformer_net_forward.14} parent=23 // pred_check_branch
              %175 = sbr.rel target = $region28
            $region27: #{transformer_net_forward.14} parent=23 // pred_region
              // Predicated region
              $region40: #{transformer_net_forward.14} parent=27 // pred_check
                _
              $region41: #{transformer_net_forward.14} parent=27 // pred_check_branch
                %193 = sbr.rel (0) target = $region43
              $region42: #{transformer_net_forward.14} parent=27 // pred_region
                loop: start=0, step=1, limit=1
                $region44: #{transformer_net_forward.14} parent=42 // loop_pre_header
                  _
                $region45: #{transformer_net_forward.14} parent=42 // loop_header
                  %s195 = sphi 0, %s199
                  %p196 = scmp.ge.s32.totalorder %s195, 1
                  %s200 = sphi %s171, %s171
                  %s201 = sphi %s165, %s165
                $region46: #{transformer_net_forward.14} parent=42 // loop_header_branch
                  %198 = sbr.rel (%p196) target = $region50
                $region47: #{transformer_net_forward.14} parent=42 // loop_body
                  _
                $region48: #{transformer_net_forward.14} parent=42 // loop_footer
                  %s199 = sadd.s32 1, %s195
                $region49: #{transformer_net_forward.14} parent=42 // loop_footer_branch
                  %194 = sbr.rel target = $region45
                $region50: #{transformer_net_forward.14} parent=42 // loop_exit
                  _
                %s203 = ssub.s32 16, 1
                loop: start=0, step=1, limit=1
                $region51: #{transformer_net_forward.14} parent=42 // loop_pre_header
                  _
                $region52: #{transformer_net_forward.14} parent=42 // loop_header
                  %s205 = sphi 0, %s209
                  %p206 = scmp.ge.s32.totalorder %s205, 1
                  %s210 = sphi %s171, %s171
                  %s211 = sphi %s165, %s165
                $region53: #{transformer_net_forward.14} parent=42 // loop_header_branch
                  %208 = sbr.rel (%p206) target = $region57
                $region54: #{transformer_net_forward.14} parent=42 // loop_body
                  %v212 = vld [vmem:[%s210] sm:%s203]
                  %213 = vst [vmem:[%s211] sm:%s203] %v212
                  %v214 = vld [vmem:[%s210 + $0xc] sm:%s203]
                  %215 = vst [vmem:[%s211 + $0x4] sm:%s203] %v214
                $region55: #{transformer_net_forward.14} parent=42 // loop_footer
                  %s209 = sadd.s32 1, %s205
                $region56: #{transformer_net_forward.14} parent=42 // loop_footer_branch
                  %204 = sbr.rel target = $region52
                $region57: #{transformer_net_forward.14} parent=42 // loop_exit
                  _
              $region43: #{transformer_net_forward.14} parent=27 // pred_fallthru
                _
            $region28: #{transformer_net_forward.14} parent=23 // pred_fallthru
              _
            // Predicated region
            $region29: #{transformer_net_forward.14} parent=23 // pred_check
              _
            $region30: #{transformer_net_forward.14} parent=23 // pred_check_branch
              %177 = sbr.rel (0) target = $region32
            $region31: #{transformer_net_forward.14} parent=23 // pred_region
              %s179 = ssub.s32 16, 1
              loop: start=0, step=1, limit=1
              $region33: #{transformer_net_forward.14} parent=31 // loop_pre_header
                _
              $region34: #{transformer_net_forward.14} parent=31 // loop_header
                %s181 = sphi 0, %s185
                %p182 = scmp.ge.s32.totalorder %s181, 1
                %s186 = sphi %s171, %s171
                %s187 = sphi %s165, %s165
              $region35: #{transformer_net_forward.14} parent=31 // loop_header_branch
                %184 = sbr.rel (%p182) target = $region39
              $region36: #{transformer_net_forward.14} parent=31 // loop_body
                %v188 = vld [vmem:[%s186] sm:%s179]
                %189 = vst [vmem:[%s187] sm:%s179] %v188
                %v190 = vld [vmem:[%s186 + $0xc] sm:%s179]
                %191 = vst [vmem:[%s187 + $0x4] sm:%s179] %v190
              $region37: #{transformer_net_forward.14} parent=31 // loop_footer
                %s185 = sadd.s32 1, %s181
              $region38: #{transformer_net_forward.14} parent=31 // loop_footer_branch
                %180 = sbr.rel target = $region34
              $region39: #{transformer_net_forward.14} parent=31 // loop_exit
                _
            $region32: #{transformer_net_forward.14} parent=23 // pred_fallthru
              _
          $region24: #{transformer_net_forward.14} parent=19 // pred_fallthru
            _
          %216 = vnop
        $region20: #{transformer_net_forward.14} parent=15 // pred_fallthru
          _
        // Predicated region
        $region58: #{transformer_net_forward.14} parent=15 // pred_check
          %p217 = pneg %p78
        $region59: #{transformer_net_forward.14} parent=15 // pred_check_branch
          %219 = sbr.rel (%p217) target = $region61
        $region60: #{transformer_net_forward.14} parent=15 // pred_region
          %s220 = sand.u32 %s68, 1
          %s221 = sand.u32 %s68, 1
          %s222 = smul.addr %s221, 8
          %s223 = scalar_lea.vmem [#allocation6], %s222
          %s224 = smul.u32 2, %s18
          %s225 = smul.addr %s224, 3
          %s226 = sadd.s32 1, %s225
          %s227 = smul.addr %s16, 6
          %s228 = sadd.s32 %s226, %s227
          %s229 = smul.addr %s228, 4
          %s230 = scalar_lea.vmem %s1, %s229
          // Predicated region
          $region62: #{transformer_net_forward.14} parent=60 // pred_check
            _
          $region63: #{transformer_net_forward.14} parent=60 // pred_check_branch
            %232 = sbr.rel (0) target = $region65
          $region64: #{transformer_net_forward.14} parent=60 // pred_region
            // Predicated region
            $region66: #{transformer_net_forward.14} parent=64 // pred_check
              _
            $region67: #{transformer_net_forward.14} parent=64 // pred_check_branch
              %234 = sbr.rel target = $region69
            $region68: #{transformer_net_forward.14} parent=64 // pred_region
              // Predicated region
              $region81: #{transformer_net_forward.14} parent=68 // pred_check
                _
              $region82: #{transformer_net_forward.14} parent=68 // pred_check_branch
                %252 = sbr.rel (0) target = $region84
              $region83: #{transformer_net_forward.14} parent=68 // pred_region
                loop: start=0, step=1, limit=1
                $region85: #{transformer_net_forward.14} parent=83 // loop_pre_header
                  _
                $region86: #{transformer_net_forward.14} parent=83 // loop_header
                  %s254 = sphi 0, %s258
                  %p255 = scmp.ge.s32.totalorder %s254, 1
                  %s259 = sphi %s230, %s230
                  %s260 = sphi %s223, %s223
                $region87: #{transformer_net_forward.14} parent=83 // loop_header_branch
                  %257 = sbr.rel (%p255) target = $region91
                $region88: #{transformer_net_forward.14} parent=83 // loop_body
                  _
                $region89: #{transformer_net_forward.14} parent=83 // loop_footer
                  %s258 = sadd.s32 1, %s254
                $region90: #{transformer_net_forward.14} parent=83 // loop_footer_branch
                  %253 = sbr.rel target = $region86
                $region91: #{transformer_net_forward.14} parent=83 // loop_exit
                  _
                %s262 = ssub.s32 16, 1
                loop: start=0, step=1, limit=1
                $region92: #{transformer_net_forward.14} parent=83 // loop_pre_header
                  _
                $region93: #{transformer_net_forward.14} parent=83 // loop_header
                  %s264 = sphi 0, %s268
                  %p265 = scmp.ge.s32.totalorder %s264, 1
                  %s269 = sphi %s230, %s230
                  %s270 = sphi %s223, %s223
                $region94: #{transformer_net_forward.14} parent=83 // loop_header_branch
                  %267 = sbr.rel (%p265) target = $region98
                $region95: #{transformer_net_forward.14} parent=83 // loop_body
                  %v271 = vld [vmem:[%s269] sm:%s262]
                  %272 = vst [vmem:[%s270] sm:%s262] %v271
                  %v273 = vld [vmem:[%s269 + $0xc] sm:%s262]
                  %274 = vst [vmem:[%s270 + $0x4] sm:%s262] %v273
                $region96: #{transformer_net_forward.14} parent=83 // loop_footer
                  %s268 = sadd.s32 1, %s264
                $region97: #{transformer_net_forward.14} parent=83 // loop_footer_branch
                  %263 = sbr.rel target = $region93
                $region98: #{transformer_net_forward.14} parent=83 // loop_exit
                  _
              $region84: #{transformer_net_forward.14} parent=68 // pred_fallthru
                _
            $region69: #{transformer_net_forward.14} parent=64 // pred_fallthru
              _
            // Predicated region
            $region70: #{transformer_net_forward.14} parent=64 // pred_check
              _
            $region71: #{transformer_net_forward.14} parent=64 // pred_check_branch
              %236 = sbr.rel (0) target = $region73
            $region72: #{transformer_net_forward.14} parent=64 // pred_region
              %s238 = ssub.s32 16, 1
              loop: start=0, step=1, limit=1
              $region74: #{transformer_net_forward.14} parent=72 // loop_pre_header
                _
              $region75: #{transformer_net_forward.14} parent=72 // loop_header
                %s240 = sphi 0, %s244
                %p241 = scmp.ge.s32.totalorder %s240, 1
                %s245 = sphi %s230, %s230
                %s246 = sphi %s223, %s223
              $region76: #{transformer_net_forward.14} parent=72 // loop_header_branch
                %243 = sbr.rel (%p241) target = $region80
              $region77: #{transformer_net_forward.14} parent=72 // loop_body
                %v247 = vld [vmem:[%s245] sm:%s238]
                %248 = vst [vmem:[%s246] sm:%s238] %v247
                %v249 = vld [vmem:[%s245 + $0xc] sm:%s238]
                %250 = vst [vmem:[%s246 + $0x4] sm:%s238] %v249
              $region78: #{transformer_net_forward.14} parent=72 // loop_footer
                %s244 = sadd.s32 1, %s240
              $region79: #{transformer_net_forward.14} parent=72 // loop_footer_branch
                %239 = sbr.rel target = $region75
              $region80: #{transformer_net_forward.14} parent=72 // loop_exit
                _
            $region73: #{transformer_net_forward.14} parent=64 // pred_fallthru
              _
          $region65: #{transformer_net_forward.14} parent=60 // pred_fallthru
            _
          %275 = vnop
        $region61: #{transformer_net_forward.14} parent=15 // pred_fallthru
          _
        // Predicated region
        $region99: #{transformer_net_forward.14} parent=15 // pred_check
          %p276 = pneg %p106
        $region100: #{transformer_net_forward.14} parent=15 // pred_check_branch
          %278 = sbr.rel (%p276) target = $region102
        $region101: #{transformer_net_forward.14} parent=15 // pred_region
          %s279 = sand.u32 %s96, 1
          %s280 = sand.u32 %s96, 1
          %s281 = smul.addr %s280, 8
          %s282 = scalar_lea.vmem [#allocation7], %s281
          %s283 = smul.u32 2, %s18
          %s284 = smul.addr %s283, 3
          %s285 = sadd.s32 2, %s284
          %s286 = smul.addr %s16, 6
          %s287 = sadd.s32 %s285, %s286
          %s288 = smul.addr %s287, 4
          %s289 = scalar_lea.vmem %s2, %s288
          // Predicated region
          $region103: #{transformer_net_forward.14} parent=101 // pred_check
            _
          $region104: #{transformer_net_forward.14} parent=101 // pred_check_branch
            %291 = sbr.rel (0) target = $region106
          $region105: #{transformer_net_forward.14} parent=101 // pred_region
            // Predicated region
            $region107: #{transformer_net_forward.14} parent=105 // pred_check
              _
            $region108: #{transformer_net_forward.14} parent=105 // pred_check_branch
              %293 = sbr.rel target = $region110
            $region109: #{transformer_net_forward.14} parent=105 // pred_region
              // Predicated region
              $region122: #{transformer_net_forward.14} parent=109 // pred_check
                _
              $region123: #{transformer_net_forward.14} parent=109 // pred_check_branch
                %311 = sbr.rel (0) target = $region125
              $region124: #{transformer_net_forward.14} parent=109 // pred_region
                loop: start=0, step=1, limit=1
                $region126: #{transformer_net_forward.14} parent=124 // loop_pre_header
                  _
                $region127: #{transformer_net_forward.14} parent=124 // loop_header
                  %s313 = sphi 0, %s317
                  %p314 = scmp.ge.s32.totalorder %s313, 1
                  %s318 = sphi %s289, %s289
                  %s319 = sphi %s282, %s282
                $region128: #{transformer_net_forward.14} parent=124 // loop_header_branch
                  %316 = sbr.rel (%p314) target = $region132
                $region129: #{transformer_net_forward.14} parent=124 // loop_body
                  _
                $region130: #{transformer_net_forward.14} parent=124 // loop_footer
                  %s317 = sadd.s32 1, %s313
                $region131: #{transformer_net_forward.14} parent=124 // loop_footer_branch
                  %312 = sbr.rel target = $region127
                $region132: #{transformer_net_forward.14} parent=124 // loop_exit
                  _
                %s321 = ssub.s32 16, 1
                loop: start=0, step=1, limit=1
                $region133: #{transformer_net_forward.14} parent=124 // loop_pre_header
                  _
                $region134: #{transformer_net_forward.14} parent=124 // loop_header
                  %s323 = sphi 0, %s327
                  %p324 = scmp.ge.s32.totalorder %s323, 1
                  %s328 = sphi %s289, %s289
                  %s329 = sphi %s282, %s282
                $region135: #{transformer_net_forward.14} parent=124 // loop_header_branch
                  %326 = sbr.rel (%p324) target = $region139
                $region136: #{transformer_net_forward.14} parent=124 // loop_body
                  %v330 = vld [vmem:[%s328] sm:%s321]
                  %331 = vst [vmem:[%s329] sm:%s321] %v330
                  %v332 = vld [vmem:[%s328 + $0xc] sm:%s321]
                  %333 = vst [vmem:[%s329 + $0x4] sm:%s321] %v332
                $region137: #{transformer_net_forward.14} parent=124 // loop_footer
                  %s327 = sadd.s32 1, %s323
                $region138: #{transformer_net_forward.14} parent=124 // loop_footer_branch
                  %322 = sbr.rel target = $region134
                $region139: #{transformer_net_forward.14} parent=124 // loop_exit
                  _
              $region125: #{transformer_net_forward.14} parent=109 // pred_fallthru
                _
            $region110: #{transformer_net_forward.14} parent=105 // pred_fallthru
              _
            // Predicated region
            $region111: #{transformer_net_forward.14} parent=105 // pred_check
              _
            $region112: #{transformer_net_forward.14} parent=105 // pred_check_branch
              %295 = sbr.rel (0) target = $region114
            $region113: #{transformer_net_forward.14} parent=105 // pred_region
              %s297 = ssub.s32 16, 1
              loop: start=0, step=1, limit=1
              $region115: #{transformer_net_forward.14} parent=113 // loop_pre_header
                _
              $region116: #{transformer_net_forward.14} parent=113 // loop_header
                %s299 = sphi 0, %s303
                %p300 = scmp.ge.s32.totalorder %s299, 1
                %s304 = sphi %s289, %s289
                %s305 = sphi %s282, %s282
              $region117: #{transformer_net_forward.14} parent=113 // loop_header_branch
                %302 = sbr.rel (%p300) target = $region121
              $region118: #{transformer_net_forward.14} parent=113 // loop_body
                %v306 = vld [vmem:[%s304] sm:%s297]
                %307 = vst [vmem:[%s305] sm:%s297] %v306
                %v308 = vld [vmem:[%s304 + $0xc] sm:%s297]
                %309 = vst [vmem:[%s305 + $0x4] sm:%s297] %v308
              $region119: #{transformer_net_forward.14} parent=113 // loop_footer
                %s303 = sadd.s32 1, %s299
              $region120: #{transformer_net_forward.14} parent=113 // loop_footer_branch
                %298 = sbr.rel target = $region116
              $region121: #{transformer_net_forward.14} parent=113 // loop_exit
                _
            $region114: #{transformer_net_forward.14} parent=105 // pred_fallthru
              _
          $region106: #{transformer_net_forward.14} parent=101 // pred_fallthru
            _
          %334 = vnop
        $region102: #{transformer_net_forward.14} parent=15 // pred_fallthru
          _
      $region16: #{transformer_net_forward.14} parent=5 // pred_fallthru
        _
      %p335 = scmp.le.s32.totalorder 1, %s9
      %p336 = scmp.lt.s32.totalorder %s9, 3
      %p337 = pnand %p335, %p336
      %p338 = pneg %p337
      // Predicated region
      $region140: #{transformer_net_forward.14} parent=5 // pred_check
        _
      $region141: #{transformer_net_forward.14} parent=5 // pred_check_branch
        %340 = sbr.rel (%p337) target = $region143
      $region142: #{transformer_net_forward.14} parent=5 // pred_region
        %s341 = ssub.s32 %s9, 1
        %s342 = sand.u32 %s43, 1
        %s343 = sand.u32 %s43, 1
        %s344 = smul.addr %s343, 8
        %s345 = scalar_lea.vmem [#allocation5], %s344
        // Predicated region
        $region144: #{transformer_net_forward.14} parent=142 // pred_check
          %p346 = pneg %p56
        $region145: #{transformer_net_forward.14} parent=142 // pred_check_branch
          %348 = sbr.rel (%p346) target = $region147
        $region146: #{transformer_net_forward.14} parent=142 // pred_region
          _
        $region147: #{transformer_net_forward.14} parent=142 // pred_fallthru
          _
        %s349 = sand.u32 %s71, 1
        %s350 = sand.u32 %s71, 1
        %s351 = smul.addr %s350, 8
        %s352 = scalar_lea.vmem [#allocation6], %s351
        // Predicated region
        $region148: #{transformer_net_forward.14} parent=142 // pred_check
          %p353 = pneg %p84
        $region149: #{transformer_net_forward.14} parent=142 // pred_check_branch
          %355 = sbr.rel (%p353) target = $region151
        $region150: #{transformer_net_forward.14} parent=142 // pred_region
          _
        $region151: #{transformer_net_forward.14} parent=142 // pred_fallthru
          _
        %s356 = sand.u32 %s99, 1
        %s357 = sand.u32 %s99, 1
        %s358 = smul.addr %s357, 8
        %s359 = scalar_lea.vmem [#allocation7], %s358
        // Predicated region
        $region152: #{transformer_net_forward.14} parent=142 // pred_check
          %p360 = pneg %p112
        $region153: #{transformer_net_forward.14} parent=142 // pred_check_branch
          %362 = sbr.rel (%p360) target = $region155
        $region154: #{transformer_net_forward.14} parent=142 // pred_region
          _
        $region155: #{transformer_net_forward.14} parent=142 // pred_fallthru
          _
        %s363 = sand.u32 %s43, 1
        %s364 = sand.u32 %s43, 1
        %s365 = smul.addr %s364, 8
        %s366 = scalar_lea.vmem [#allocation5], %s365
        %p367 = pneg %p56
        %p368 = pneg %p53
        %s369 = sand.u32 %s71, 1
        %s370 = sand.u32 %s71, 1
        %s371 = smul.addr %s370, 8
        %s372 = scalar_lea.vmem [#allocation6], %s371
        %p373 = pneg %p84
        %p374 = pneg %p81
        %s375 = sand.u32 %s99, 1
        %s376 = sand.u32 %s99, 1
        %s377 = smul.addr %s376, 8
        %s378 = scalar_lea.vmem [#allocation7], %s377
        %p379 = pneg %p112
        %p380 = pneg %p109
        %p381 = pneg %p140
        %p382 = pneg %p137
        %s383 = smul.u32 2, %s20
        %p384 = scmp.lt.s32.totalorder %s19, 1
        %s385 = scalar_select %p384, %s19, 1
        %p386 = scmp.lt.s32.totalorder %s383, 1
        %s387 = scalar_select %p386, %s383, 1
        %s388 = smul.addr %s385, 2
        %s389 = sadd.s32 %s387, %s388
        %s390 = smul.addr %s389, 4
        %s391 = scalar_lea.vmem %s3, %s390
        %s392 = smul.u32 2, %s20
        %s393 = smul.u32 2, %s21
        %s394 = smul.u32 2, %s21
        %s395 = smul.u32 2, %s20
        %p396 = scmp.lt.s32.totalorder %s19, 1
        %s397 = scalar_select %p396, %s19, 1
        %p398 = scmp.lt.s32.totalorder %s395, 1
        %s399 = scalar_select %p398, %s395, 1
        %s400 = smul.addr %s397, 2
        %s401 = sadd.s32 %s399, %s400
        %s402 = smul.addr %s401, 4
        %s403 = scalar_lea.vmem %s3, %s402
        %s404 = smul.u32 2, %s20
        %p406 = scmp.eq.s32.totalorder %s21, 0
        // Predicated region
        $region156: #{transformer_net_forward.14} parent=142 // pred_check
          %p407 = pneg %p406
        $region157: #{transformer_net_forward.14} parent=142 // pred_check_branch
          %409 = sbr.rel (%p407) target = $region159
        $region158: #{transformer_net_forward.14} parent=142 // pred_region
          %vm410 = vcmask 31744
          %411 = vst.msk [vmem:[#allocation2] sm:$0xff] %vm410, -inf
          %412 = vst.msk [vmem:[#allocation2 + $0x8] sm:$0xff] %vm410, -inf
          %413 = vst.msk [vmem:[#allocation3] sm:$0xff] %vm410, 0.0
          %414 = vst.msk [vmem:[#allocation3 + $0x8] sm:$0xff] %vm410, 0.0
          %415 = vst [vmem:[#allocation4] sm:$0xff] 0.0
          %416 = vst [vmem:[#allocation4 + $0x8] sm:$0xff] 0.0
        $region159: #{transformer_net_forward.14} parent=142 // pred_fallthru
          _
        %v417 = vld [vmem:[%s345] sm:$0xf]
        %v418 = vld [vmem:[%s345 + $0x4] sm:$0xf]
        %v419 = vunpack.c.l.bf16 %v417
        %v420 = vunpack.c.l.bf16 %v418
        %v421 = vmul.f32 %v419, 0.17675781
        %v422 = vmul.f32 %v420, 0.17675781
        %v423 = vpack.c.bf16 %v421, %v421
        %v424 = vpack.c.bf16 %v422, %v422
        %v425 = vld [vmem:[%s352] sm:$0xf]
        %v426 = vld [vmem:[%s352 + $0x4] sm:$0xf]
        %v427 = vld [vmem:[%s359] sm:$0xf]
        %v428 = vld [vmem:[%s359 + $0x4] sm:$0xf]
        %v431 = vunpack.c.l.b16 %v423
        %v432 = vunpack.c.l.b16 %v424
        %v433 = vpack.c.b16 %v432, %v431
        %v436 = vunpack.c.l.b16 %v425
        %v437 = vunpack.c.l.b16 %v426
        %v438 = vpack.c.b16 %v437, %v436
        %vm439 = vcmask 261120
        %v441 = vsel %vm439, %v433, 0
        %v444 = vsel %vm439, %v438, 0
        %446 = vmatpush.bf16.xpose.msra.mxu0 0
        %447 = vmatpush.bf16.xpose.msra.mxu0 0
        %448 = vmatpush.bf16.xpose.msra.mxu0 0
        %449 = vmatpush.bf16.xpose.msra.mxu0 0
        %450 = vmatpush.bf16.xpose.msra.mxu0 0
        %451 = vmatpush.bf16.xpose.msra.mxu0 0
        %452 = vmatpush.bf16.xpose.msra.mxu0 0
        %453 = vmatpush.bf16.xpose.msra.mxu0 %v444
        %454 = vmatmul.bf16.gmra.mxu0 %v441
        %v455 = vpop.f32.mrf.mxu0
        %v456 = vadd.f32 0.0, %v455
        %v457 = vpop.f32.mrf.mxu0
        %v458 = vadd.f32 0.0, %v457
        %459 = vdwg.mxu0
        %v460 = vld [vmem:[#allocation2] sm:$0xff]
        %v461 = vld [vmem:[#allocation2 + $0x8] sm:$0xff]
        %vm462 = vcmask 130048
        %v463 = vsel %vm462, %v456, -inf
        %464 = vmax.xlane.f32.xlu0 %v463
        %v465 = vpop.xlane.xlu0 %464
        %v466 = vsel %vm462, %v458, -inf
        %467 = vmax.xlane.f32.xlu0 %v466
        %v468 = vpop.xlane.xlu0 %467
        %v469 = vmax.f32 %v460, %v465
        %v470 = vmax.f32 %v461, %v468
        %v471 = vsub.f32 %v460, %v469
        %v472 = vsub.f32 %v461, %v470
        %v473 = vmul.f32 %v471, 1.442695
        %v474 = vpow.pop %v473
        %v475 = vmul.f32 %v472, 1.442695
        %v476 = vpow.pop %v475
        %478 = vset.pattern.permute.xlu0 0
        %479 = vperm.xlu0 %478, %v469
        %v480 = vpop.permute.xlu0 %479
        %483 = vset.pattern.permute.xlu0 0
        %484 = vperm.xlu0 %483, %v470
        %v485 = vpop.permute.xlu0 %484
        %v487 = vsub.f32 %v456, %v480
        %v488 = vsub.f32 %v458, %v485
        %v489 = vmul.f32 %v487, 1.442695
        %v490 = vpow.pop %v489
        %v491 = vmul.f32 %v488, 1.442695
        %v492 = vpow.pop %v491
        %v493 = vld [vmem:[#allocation3] sm:$0xff]
        %v494 = vld [vmem:[#allocation3 + $0x8] sm:$0xff]
        %v495 = vmul.f32 %v474, %v493
        %v496 = vmul.f32 %v476, %v494
        %v497 = vsel %vm462, %v490, 0.0
        %498 = vadd.xlane.f32.xlu0 %v497
        %v499 = vpop.xlane.xlu0 %498
        %v500 = vsel %vm462, %v492, 0.0
        %501 = vadd.xlane.f32.xlu0 %v500
        %v502 = vpop.xlane.xlu0 %501
        %v503 = vadd.f32 %v495, %v499
        %v504 = vadd.f32 %v496, %v502
        %vm505 = vcmask 7168
        %506 = vst.msk [vmem:[#allocation3] sm:$0xff] %vm505, %v503
        %507 = vst.msk [vmem:[#allocation3 + $0x8] sm:$0xff] %vm505, %v504
        %v508 = vld [vmem:[#allocation4] sm:$0xff]
        %v509 = vld [vmem:[#allocation4 + $0x8] sm:$0xff]
        %511 = vset.pattern.permute.xlu0 0
        %512 = vperm.xlu0 %511, %v474
        %v513 = vpop.permute.xlu0 %512
        %516 = vset.pattern.permute.xlu0 0
        %517 = vperm.xlu0 %516, %v476
        %v518 = vpop.permute.xlu0 %517
        %v520 = vmul.f32 %v513, %v508
        %v521 = vmul.f32 %v518, %v509
        %v522 = vpack.c.bf16 %v492, %v490
        %v525 = vunpack.c.l.b16 %v427
        %v526 = vunpack.c.l.b16 %v428
        %v527 = vpack.c.b16 %v526, %v525
        %v530 = vsel %vm462, %v522, 0
        %532 = vmatpush.bf16.msra.mxu0 0
        %533 = vmatpush.bf16.msra.mxu0 0
        %534 = vmatpush.bf16.msra.mxu0 0
        %535 = vmatpush.bf16.msra.mxu0 0
        %536 = vmatpush.bf16.msra.mxu0 0
        %537 = vmatpush.bf16.msra.mxu0 0
        %538 = vmatpush.bf16.msra.mxu0 0
        %539 = vmatpush.bf16.msra.mxu0 %v527
        %540 = vmatmul.bf16.gmra.mxu0 %v530
        %v541 = vpop.f32.mrf.mxu0
        %v542 = vadd.f32 0.0, %v541
        %v543 = vpop.f32.mrf.mxu0
        %v544 = vadd.f32 0.0, %v543
        %545 = vdwg.mxu0
        %v546 = vadd.f32 %v520, %v542
        %v547 = vadd.f32 %v521, %v544
        %548 = vst.msk [vmem:[#allocation4] sm:$0xff] %vm439, %v546
        %549 = vst.msk [vmem:[#allocation4 + $0x8] sm:$0xff] %vm439, %v547
        %550 = vst.msk [vmem:[#allocation2] sm:$0xff] %vm505, %v469
        %551 = vst.msk [vmem:[#allocation2 + $0x8] sm:$0xff] %vm505, %v470
        %552 = vrot.lane.b32.xlu0 %v433, 96
        %v553 = vpop.permute.xlu0 %552
        %554 = vrot.lane.b32.xlu0 %v438, 96
        %v555 = vpop.permute.xlu0 %554
        %v557 = vsel %vm439, %v553, 0
        %v560 = vsel %vm439, %v555, 0
        %562 = vmatpush.bf16.xpose.msra.mxu0 0
        %563 = vmatpush.bf16.xpose.msra.mxu0 0
        %564 = vmatpush.bf16.xpose.msra.mxu0 0
        %565 = vmatpush.bf16.xpose.msra.mxu0 0
        %566 = vmatpush.bf16.xpose.msra.mxu0 0
        %567 = vmatpush.bf16.xpose.msra.mxu0 0
        %568 = vmatpush.bf16.xpose.msra.mxu0 0
        %569 = vmatpush.bf16.xpose.msra.mxu0 %v560
        %570 = vmatmul.bf16.gmra.mxu0 %v557
        %v571 = vpop.f32.mrf.mxu0
        %v572 = vadd.f32 0.0, %v571
        %v573 = vpop.f32.mrf.mxu0
        %v574 = vadd.f32 0.0, %v573
        %575 = vdwg.mxu0
        %v576 = vld [vmem:[#allocation2] sm:$0xff]
        %v577 = vld [vmem:[#allocation2 + $0x8] sm:$0xff]
        %v578 = vsel %vm462, %v572, -inf
        %579 = vmax.xlane.f32.xlu0 %v578
        %v580 = vpop.xlane.xlu0 %579
        %v581 = vsel %vm462, %v574, -inf
        %582 = vmax.xlane.f32.xlu0 %v581
        %v583 = vpop.xlane.xlu0 %582
        %v584 = vmax.f32 %v576, %v580
        %v585 = vmax.f32 %v577, %v583
        %v586 = vsub.f32 %v576, %v584
        %v587 = vsub.f32 %v577, %v585
        %v588 = vmul.f32 %v586, 1.442695
        %v589 = vpow.pop %v588
        %v590 = vmul.f32 %v587, 1.442695
        %v591 = vpow.pop %v590
        %593 = vset.pattern.permute.xlu0 1
        %594 = vperm.xlu0 %593, %v584
        %v595 = vpop.permute.xlu0 %594
        %598 = vset.pattern.permute.xlu0 1
        %599 = vperm.xlu0 %598, %v585
        %v600 = vpop.permute.xlu0 %599
        %v602 = vsub.f32 %v572, %v595
        %v603 = vsub.f32 %v574, %v600
        %v604 = vmul.f32 %v602, 1.442695
        %v605 = vpow.pop %v604
        %v606 = vmul.f32 %v603, 1.442695
        %v607 = vpow.pop %v606
        %v608 = vld [vmem:[#allocation3] sm:$0xff]
        %v609 = vld [vmem:[#allocation3 + $0x8] sm:$0xff]
        %v610 = vmul.f32 %v589, %v608
        %v611 = vmul.f32 %v591, %v609
        %v612 = vsel %vm462, %v605, 0.0
        %613 = vadd.xlane.f32.xlu0 %v612
        %v614 = vpop.xlane.xlu0 %613
        %v615 = vsel %vm462, %v607, 0.0
        %616 = vadd.xlane.f32.xlu0 %v615
        %v617 = vpop.xlane.xlu0 %616
        %v618 = vadd.f32 %v610, %v614
        %v619 = vadd.f32 %v611, %v617
        %vm620 = vcmask 15368
        %621 = vst.msk [vmem:[#allocation3] sm:$0xff] %vm620, %v618
        %622 = vst.msk [vmem:[#allocation3 + $0x8] sm:$0xff] %vm620, %v619
        %v623 = vld [vmem:[#allocation4] sm:$0xff]
        %v624 = vld [vmem:[#allocation4 + $0x8] sm:$0xff]
        %626 = vset.pattern.permute.xlu0 1
        %627 = vperm.xlu0 %626, %v589
        %v628 = vpop.permute.xlu0 %627
        %631 = vset.pattern.permute.xlu0 1
        %632 = vperm.xlu0 %631, %v591
        %v633 = vpop.permute.xlu0 %632
        %v635 = vmul.f32 %v628, %v623
        %v636 = vmul.f32 %v633, %v624
        %v637 = vpack.c.bf16 %v607, %v605
        %638 = vrot.lane.b32.xlu0 %v527, 96
        %v639 = vpop.permute.xlu0 %638
        %v642 = vsel %vm462, %v637, 0
        %644 = vmatpush.bf16.msra.mxu0 0
        %645 = vmatpush.bf16.msra.mxu0 0
        %646 = vmatpush.bf16.msra.mxu0 0
        %647 = vmatpush.bf16.msra.mxu0 0
        %648 = vmatpush.bf16.msra.mxu0 0
        %649 = vmatpush.bf16.msra.mxu0 0
        %650 = vmatpush.bf16.msra.mxu0 0
        %651 = vmatpush.bf16.msra.mxu0 %v639
        %652 = vmatmul.bf16.gmra.mxu0 %v642
        %v653 = vpop.f32.mrf.mxu0
        %v654 = vadd.f32 0.0, %v653
        %v655 = vpop.f32.mrf.mxu0
        %v656 = vadd.f32 0.0, %v655
        %657 = vdwg.mxu0
        %660 = vrot.lane.b32.xlu0 %v654, 32
        %v661 = vpop.permute.xlu0 %660
        %662 = vrot.lane.b32.xlu0 %v656, 32
        %v663 = vpop.permute.xlu0 %662
        %v666 = vadd.f32 %v635, %v661
        %v667 = vadd.f32 %v636, %v663
        %vm668 = vcmask 523520
        %669 = vst.msk [vmem:[#allocation4] sm:$0xff] %vm668, %v666
        %670 = vst.msk [vmem:[#allocation4 + $0x8] sm:$0xff] %vm668, %v667
        %671 = vst.msk [vmem:[#allocation2] sm:$0xff] %vm620, %v584
        %672 = vst.msk [vmem:[#allocation2 + $0x8] sm:$0xff] %vm620, %v585
        %673 = vrot.lane.b32.xlu0 %v433, 64
        %v674 = vpop.permute.xlu0 %673
        %675 = vrot.lane.b32.xlu0 %v438, 64
        %v676 = vpop.permute.xlu0 %675
        %v678 = vsel %vm439, %v674, 0
        %v681 = vsel %vm439, %v676, 0
        %683 = vmatpush.bf16.xpose.msra.mxu0 0
        %684 = vmatpush.bf16.xpose.msra.mxu0 0
        %685 = vmatpush.bf16.xpose.msra.mxu0 0
        %686 = vmatpush.bf16.xpose.msra.mxu0 0
        %687 = vmatpush.bf16.xpose.msra.mxu0 0
        %688 = vmatpush.bf16.xpose.msra.mxu0 0
        %689 = vmatpush.bf16.xpose.msra.mxu0 0
        %690 = vmatpush.bf16.xpose.msra.mxu0 %v681
        %691 = vmatmul.bf16.gmra.mxu0 %v678
        %v692 = vpop.f32.mrf.mxu0
        %v693 = vadd.f32 0.0, %v692
        %v694 = vpop.f32.mrf.mxu0
        %v695 = vadd.f32 0.0, %v694
        %696 = vdwg.mxu0
        %v697 = vld [vmem:[#allocation2] sm:$0xff]
        %v698 = vld [vmem:[#allocation2 + $0x8] sm:$0xff]
        %v699 = vsel %vm462, %v693, -inf
        %700 = vmax.xlane.f32.xlu0 %v699
        %v701 = vpop.xlane.xlu0 %700
        %v702 = vsel %vm462, %v695, -inf
        %703 = vmax.xlane.f32.xlu0 %v702
        %v704 = vpop.xlane.xlu0 %703
        %v705 = vmax.f32 %v697, %v701
        %v706 = vmax.f32 %v698, %v704
        %v707 = vsub.f32 %v697, %v705
        %v708 = vsub.f32 %v698, %v706
        %v709 = vmul.f32 %v707, 1.442695
        %v710 = vpow.pop %v709
        %v711 = vmul.f32 %v708, 1.442695
        %v712 = vpow.pop %v711
        %714 = vset.pattern.permute.xlu0 2
        %715 = vperm.xlu0 %714, %v705
        %v716 = vpop.permute.xlu0 %715
        %719 = vset.pattern.permute.xlu0 2
        %720 = vperm.xlu0 %719, %v706
        %v721 = vpop.permute.xlu0 %720
        %v723 = vsub.f32 %v693, %v716
        %v724 = vsub.f32 %v695, %v721
        %v725 = vmul.f32 %v723, 1.442695
        %v726 = vpow.pop %v725
        %v727 = vmul.f32 %v724, 1.442695
        %v728 = vpow.pop %v727
        %v729 = vld [vmem:[#allocation3] sm:$0xff]
        %v730 = vld [vmem:[#allocation3 + $0x8] sm:$0xff]
        %v731 = vmul.f32 %v710, %v729
        %v732 = vmul.f32 %v712, %v730
        %v733 = vsel %vm462, %v726, 0.0
        %734 = vadd.xlane.f32.xlu0 %v733
        %v735 = vpop.xlane.xlu0 %734
        %v736 = vsel %vm462, %v728, 0.0
        %737 = vadd.xlane.f32.xlu0 %v736
        %v738 = vpop.xlane.xlu0 %737
        %v739 = vadd.f32 %v731, %v735
        %v740 = vadd.f32 %v732, %v738
        %vm741 = vcmask 23568
        %742 = vst.msk [vmem:[#allocation3] sm:$0xff] %vm741, %v739
        %743 = vst.msk [vmem:[#allocation3 + $0x8] sm:$0xff] %vm741, %v740
        %v744 = vld [vmem:[#allocation4] sm:$0xff]
        %v745 = vld [vmem:[#allocation4 + $0x8] sm:$0xff]
        %747 = vset.pattern.permute.xlu0 2
        %748 = vperm.xlu0 %747, %v710
        %v749 = vpop.permute.xlu0 %748
        %752 = vset.pattern.permute.xlu0 2
        %753 = vperm.xlu0 %752, %v712
        %v754 = vpop.permute.xlu0 %753
        %v756 = vmul.f32 %v749, %v744
        %v757 = vmul.f32 %v754, %v745
        %v758 = vpack.c.bf16 %v728, %v726
        %759 = vrot.lane.b32.xlu0 %v527, 64
        %v760 = vpop.permute.xlu0 %759
        %v763 = vsel %vm462, %v758, 0
        %765 = vmatpush.bf16.msra.mxu0 0
        %766 = vmatpush.bf16.msra.mxu0 0
        %767 = vmatpush.bf16.msra.mxu0 0
        %768 = vmatpush.bf16.msra.mxu0 0
        %769 = vmatpush.bf16.msra.mxu0 0
        %770 = vmatpush.bf16.msra.mxu0 0
        %771 = vmatpush.bf16.msra.mxu0 0
        %772 = vmatpush.bf16.msra.mxu0 %v760
        %773 = vmatmul.bf16.gmra.mxu0 %v763
        %v774 = vpop.f32.mrf.mxu0
        %v775 = vadd.f32 0.0, %v774
        %v776 = vpop.f32.mrf.mxu0
        %v777 = vadd.f32 0.0, %v776
        %778 = vdwg.mxu0
        %781 = vrot.lane.b32.xlu0 %v775, 64
        %v782 = vpop.permute.xlu0 %781
        %783 = vrot.lane.b32.xlu0 %v777, 64
        %v784 = vpop.permute.xlu0 %783
        %v787 = vadd.f32 %v756, %v782
        %v788 = vadd.f32 %v757, %v784
        %vm789 = vcmask 785920
        %790 = vst.msk [vmem:[#allocation4] sm:$0xff] %vm789, %v787
        %791 = vst.msk [vmem:[#allocation4 + $0x8] sm:$0xff] %vm789, %v788
        %792 = vst.msk [vmem:[#allocation2] sm:$0xff] %vm741, %v705
        %793 = vst.msk [vmem:[#allocation2 + $0x8] sm:$0xff] %vm741, %v706
        %794 = vrot.lane.b32.xlu0 %v433, 32
        %v795 = vpop.permute.xlu0 %794
        %796 = vrot.lane.b32.xlu0 %v438, 32
        %v797 = vpop.permute.xlu0 %796
        %v799 = vsel %vm439, %v795, 0
        %v802 = vsel %vm439, %v797, 0
        %804 = vmatpush.bf16.xpose.msra.mxu0 0
        %805 = vmatpush.bf16.xpose.msra.mxu0 0
        %806 = vmatpush.bf16.xpose.msra.mxu0 0
        %807 = vmatpush.bf16.xpose.msra.mxu0 0
        %808 = vmatpush.bf16.xpose.msra.mxu0 0
        %809 = vmatpush.bf16.xpose.msra.mxu0 0
        %810 = vmatpush.bf16.xpose.msra.mxu0 0
        %811 = vmatpush.bf16.xpose.msra.mxu0 %v802
        %812 = vmatmul.bf16.gmra.mxu0 %v799
        %v813 = vpop.f32.mrf.mxu0
        %v814 = vadd.f32 0.0, %v813
        %v815 = vpop.f32.mrf.mxu0
        %v816 = vadd.f32 0.0, %v815
        %817 = vdwg.mxu0
        %v818 = vld [vmem:[#allocation2] sm:$0xff]
        %v819 = vld [vmem:[#allocation2 + $0x8] sm:$0xff]
        %v820 = vsel %vm462, %v814, -inf
        %821 = vmax.xlane.f32.xlu0 %v820
        %v822 = vpop.xlane.xlu0 %821
        %v823 = vsel %vm462, %v816, -inf
        %824 = vmax.xlane.f32.xlu0 %v823
        %v825 = vpop.xlane.xlu0 %824
        %v826 = vmax.f32 %v818, %v822
        %v827 = vmax.f32 %v819, %v825
        %v828 = vsub.f32 %v818, %v826
        %v829 = vsub.f32 %v819, %v827
        %v830 = vmul.f32 %v828, 1.442695
        %v831 = vpow.pop %v830
        %v832 = vmul.f32 %v829, 1.442695
        %v833 = vpow.pop %v832
        %835 = vset.pattern.permute.xlu0 3
        %836 = vperm.xlu0 %835, %v826
        %v837 = vpop.permute.xlu0 %836
        %840 = vset.pattern.permute.xlu0 3
        %841 = vperm.xlu0 %840, %v827
        %v842 = vpop.permute.xlu0 %841
        %v844 = vsub.f32 %v814, %v837
        %v845 = vsub.f32 %v816, %v842
        %v846 = vmul.f32 %v844, 1.442695
        %v847 = vpow.pop %v846
        %v848 = vmul.f32 %v845, 1.442695
        %v849 = vpow.pop %v848
        %v850 = vld [vmem:[#allocation3] sm:$0xff]
        %v851 = vld [vmem:[#allocation3 + $0x8] sm:$0xff]
        %v852 = vmul.f32 %v831, %v850
        %v853 = vmul.f32 %v833, %v851
        %v854 = vsel %vm462, %v847, 0.0
        %855 = vadd.xlane.f32.xlu0 %v854
        %v856 = vpop.xlane.xlu0 %855
        %v857 = vsel %vm462, %v849, 0.0
        %858 = vadd.xlane.f32.xlu0 %v857
        %v859 = vpop.xlane.xlu0 %858
        %v860 = vadd.f32 %v852, %v856
        %v861 = vadd.f32 %v853, %v859
        %vm862 = vcmask 31768
        %863 = vst.msk [vmem:[#allocation3] sm:$0xff] %vm862, %v860
        %864 = vst.msk [vmem:[#allocation3 + $0x8] sm:$0xff] %vm862, %v861
        %v865 = vld [vmem:[#allocation4] sm:$0xff]
        %v866 = vld [vmem:[#allocation4 + $0x8] sm:$0xff]
        %868 = vset.pattern.permute.xlu0 3
        %869 = vperm.xlu0 %868, %v831
        %v870 = vpop.permute.xlu0 %869
        %873 = vset.pattern.permute.xlu0 3
        %874 = vperm.xlu0 %873, %v833
        %v875 = vpop.permute.xlu0 %874
        %v877 = vmul.f32 %v870, %v865
        %v878 = vmul.f32 %v875, %v866
        %v879 = vpack.c.bf16 %v849, %v847
        %880 = vrot.lane.b32.xlu0 %v527, 32
        %v881 = vpop.permute.xlu0 %880
        %v884 = vsel %vm462, %v879, 0
        %886 = vmatpush.bf16.msra.mxu0 0
        %887 = vmatpush.bf16.msra.mxu0 0
        %888 = vmatpush.bf16.msra.mxu0 0
        %889 = vmatpush.bf16.msra.mxu0 0
        %890 = vmatpush.bf16.msra.mxu0 0
        %891 = vmatpush.bf16.msra.mxu0 0
        %892 = vmatpush.bf16.msra.mxu0 0
        %893 = vmatpush.bf16.msra.mxu0 %v881
        %894 = vmatmul.bf16.gmra.mxu0 %v884
        %v895 = vpop.f32.mrf.mxu0
        %v896 = vadd.f32 0.0, %v895
        %v897 = vpop.f32.mrf.mxu0
        %v898 = vadd.f32 0.0, %v897
        %899 = vdwg.mxu0
        %902 = vrot.lane.b32.xlu0 %v896, 96
        %v903 = vpop.permute.xlu0 %902
        %904 = vrot.lane.b32.xlu0 %v898, 96
        %v905 = vpop.permute.xlu0 %904
        %v908 = vadd.f32 %v877, %v903
        %v909 = vadd.f32 %v878, %v905
        %vm910 = vcmask 1048320
        %911 = vst.msk [vmem:[#allocation4] sm:$0xff] %vm910, %v908
        %912 = vst.msk [vmem:[#allocation4 + $0x8] sm:$0xff] %vm910, %v909
        %913 = vst.msk [vmem:[#allocation2] sm:$0xff] %vm862, %v826
        %914 = vst.msk [vmem:[#allocation2 + $0x8] sm:$0xff] %vm862, %v827
        // Predicated region
        $region160: #{transformer_net_forward.14} parent=142 // pred_check
          %p915 = pneg %p406
        $region161: #{transformer_net_forward.14} parent=142 // pred_check_branch
          %917 = sbr.rel (%p915) target = $region163
        $region162: #{transformer_net_forward.14} parent=142 // pred_region
          %v918 = vld [vmem:[#allocation4] sm:$0xff]
          %v919 = vld [vmem:[#allocation4 + $0x8] sm:$0xff]
          %v920 = vld [vmem:[#allocation3] sm:$0xff]
          %v921 = vld [vmem:[#allocation3 + $0x8] sm:$0xff]
          %923 = vset.pattern.permute.xlu0 0
          %924 = vperm.xlu0 %923, %v920
          %v925 = vpop.permute.xlu0 %924
          %928 = vset.pattern.permute.xlu0 0
          %929 = vperm.xlu0 %928, %v921
          %v930 = vpop.permute.xlu0 %929
          %v932 = vrcp.pop %v925
          %v933 = vmul.f32 %v925, %v932
          %v934 = vsub.f32 1.0, %v933
          %v935 = vmul.f32 %v932, %v934
          %v936 = vadd.f32 %v932, %v935
          %vm937 = vweird.f32 %v925
          %vm938 = vweird.f32 %v932
          %vm939 = vmor %vm937, %vm938
          %v940 = vsel %vm939, %v932, %v936
          %v941 = vand.u32 2147483647, %v925
          %vm942 = vcmp.eq.f32.partialorder %v941, 8.507059e+37
          %v943 = vand.u32 %v925, 2147483648
          %v944 = vor.u32 1.1754944e-38, %v943
          %v945 = vsel %vm942, %v944, %v940
          %v946 = vmul.f32 %v918, %v945
          %v947 = vrcp.pop %v930
          %v948 = vmul.f32 %v930, %v947
          %v949 = vsub.f32 1.0, %v948
          %v950 = vmul.f32 %v947, %v949
          %v951 = vadd.f32 %v947, %v950
          %vm952 = vweird.f32 %v930
          %vm953 = vweird.f32 %v947
          %vm954 = vmor %vm952, %vm953
          %v955 = vsel %vm954, %v947, %v951
          %v956 = vand.u32 2147483647, %v930
          %vm957 = vcmp.eq.f32.partialorder %v956, 8.507059e+37
          %v958 = vand.u32 %v930, 2147483648
          %v959 = vor.u32 1.1754944e-38, %v958
          %v960 = vsel %vm957, %v959, %v955
          %v961 = vmul.f32 %v919, %v960
          %962 = vset.pattern.permute.xlu0 1
          %963 = vperm.xlu0 %962, %v920
          %v964 = vpop.permute.xlu0 %963
          %966 = vset.pattern.permute.xlu0 1
          %967 = vperm.xlu0 %966, %v921
          %v968 = vpop.permute.xlu0 %967
          %v970 = vrcp.pop %v964
          %v971 = vmul.f32 %v964, %v970
          %v972 = vsub.f32 1.0, %v971
          %v973 = vmul.f32 %v970, %v972
          %v974 = vadd.f32 %v970, %v973
          %vm975 = vweird.f32 %v964
          %vm976 = vweird.f32 %v970
          %vm977 = vmor %vm975, %vm976
          %v978 = vsel %vm977, %v970, %v974
          %v979 = vand.u32 2147483647, %v964
          %vm980 = vcmp.eq.f32.partialorder %v979, 8.507059e+37
          %v981 = vand.u32 %v964, 2147483648
          %v982 = vor.u32 1.1754944e-38, %v981
          %v983 = vsel %vm980, %v982, %v978
          %v984 = vmul.f32 %v918, %v983
          %v985 = vrcp.pop %v968
          %v986 = vmul.f32 %v968, %v985
          %v987 = vsub.f32 1.0, %v986
          %v988 = vmul.f32 %v985, %v987
          %v989 = vadd.f32 %v985, %v988
          %vm990 = vweird.f32 %v968
          %vm991 = vweird.f32 %v985
          %vm992 = vmor %vm990, %vm991
          %v993 = vsel %vm992, %v985, %v989
          %v994 = vand.u32 2147483647, %v968
          %vm995 = vcmp.eq.f32.partialorder %v994, 8.507059e+37
          %v996 = vand.u32 %v968, 2147483648
          %v997 = vor.u32 1.1754944e-38, %v996
          %v998 = vsel %vm995, %v997, %v993
          %v999 = vmul.f32 %v919, %v998
          %1000 = vset.pattern.permute.xlu0 2
          %1001 = vperm.xlu0 %1000, %v920
          %v1002 = vpop.permute.xlu0 %1001
          %1004 = vset.pattern.permute.xlu0 2
          %1005 = vperm.xlu0 %1004, %v921
          %v1006 = vpop.permute.xlu0 %1005
          %v1008 = vrcp.pop %v1002
          %v1009 = vmul.f32 %v1002, %v1008
          %v1010 = vsub.f32 1.0, %v1009
          %v1011 = vmul.f32 %v1008, %v1010
          %v1012 = vadd.f32 %v1008, %v1011
          %vm1013 = vweird.f32 %v1002
          %vm1014 = vweird.f32 %v1008
          %vm1015 = vmor %vm1013, %vm1014
          %v1016 = vsel %vm1015, %v1008, %v1012
          %v1017 = vand.u32 2147483647, %v1002
          %vm1018 = vcmp.eq.f32.partialorder %v1017, 8.507059e+37
          %v1019 = vand.u32 %v1002, 2147483648
          %v1020 = vor.u32 1.1754944e-38, %v1019
          %v1021 = vsel %vm1018, %v1020, %v1016
          %v1022 = vmul.f32 %v918, %v1021
          %v1023 = vrcp.pop %v1006
          %v1024 = vmul.f32 %v1006, %v1023
          %v1025 = vsub.f32 1.0, %v1024
          %v1026 = vmul.f32 %v1023, %v1025
          %v1027 = vadd.f32 %v1023, %v1026
          %vm1028 = vweird.f32 %v1006
          %vm1029 = vweird.f32 %v1023
          %vm1030 = vmor %vm1028, %vm1029
          %v1031 = vsel %vm1030, %v1023, %v1027
          %v1032 = vand.u32 2147483647, %v1006
          %vm1033 = vcmp.eq.f32.partialorder %v1032, 8.507059e+37
          %v1034 = vand.u32 %v1006, 2147483648
          %v1035 = vor.u32 1.1754944e-38, %v1034
          %v1036 = vsel %vm1033, %v1035, %v1031
          %v1037 = vmul.f32 %v919, %v1036
          %1038 = vset.pattern.permute.xlu0 3
          %1039 = vperm.xlu0 %1038, %v920
          %v1040 = vpop.permute.xlu0 %1039
          %1042 = vset.pattern.permute.xlu0 3
          %1043 = vperm.xlu0 %1042, %v921
          %v1044 = vpop.permute.xlu0 %1043
          %v1046 = vrcp.pop %v1040
          %v1047 = vmul.f32 %v1040, %v1046
          %v1048 = vsub.f32 1.0, %v1047
          %v1049 = vmul.f32 %v1046, %v1048
          %v1050 = vadd.f32 %v1046, %v1049
          %vm1051 = vweird.f32 %v1040
          %vm1052 = vweird.f32 %v1046
          %vm1053 = vmor %vm1051, %vm1052
          %v1054 = vsel %vm1053, %v1046, %v1050
          %v1055 = vand.u32 2147483647, %v1040
          %vm1056 = vcmp.eq.f32.partialorder %v1055, 8.507059e+37
          %v1057 = vand.u32 %v1040, 2147483648
          %v1058 = vor.u32 1.1754944e-38, %v1057
          %v1059 = vsel %vm1056, %v1058, %v1054
          %v1060 = vmul.f32 %v918, %v1059
          %v1061 = vrcp.pop %v1044
          %v1062 = vmul.f32 %v1044, %v1061
          %v1063 = vsub.f32 1.0, %v1062
          %v1064 = vmul.f32 %v1061, %v1063
          %v1065 = vadd.f32 %v1061, %v1064
          %vm1066 = vweird.f32 %v1044
          %vm1067 = vweird.f32 %v1061
          %vm1068 = vmor %vm1066, %vm1067
          %v1069 = vsel %vm1068, %v1061, %v1065
          %v1070 = vand.u32 2147483647, %v1044
          %vm1071 = vcmp.eq.f32.partialorder %v1070, 8.507059e+37
          %v1072 = vand.u32 %v1044, 2147483648
          %v1073 = vor.u32 1.1754944e-38, %v1072
          %v1074 = vsel %vm1071, %v1073, %v1069
          %v1075 = vmul.f32 %v919, %v1074
          %v1076 = vsel %vm439, %v946, %v984
          %v1077 = vsel %vm439, %v961, %v999
          %vm1078 = vcmask 523264
          %v1079 = vsel %vm1078, %v1076, %v1022
          %v1080 = vsel %vm1078, %v1077, %v1037
          %vm1081 = vcmask 785408
          %v1082 = vsel %vm1081, %v1079, %v1060
          %v1083 = vsel %vm1081, %v1080, %v1075
          %v1084 = vpack.c.bf16 %v1082, %v1082
          %v1085 = vpack.c.bf16 %v1083, %v1083
          %1086 = vst [vmem:[%s403] sm:$0xf] %v1084
          %1087 = vst [vmem:[%s403 + $0x4] sm:$0xf] %v1085
        $region163: #{transformer_net_forward.14} parent=142 // pred_fallthru
          _
        %s1088 = smul.u32 2, %s20
        %p1089 = scmp.lt.s32.totalorder %s19, 1
        %s1090 = scalar_select %p1089, %s19, 1
        %p1091 = scmp.lt.s32.totalorder %s1088, 1
        %s1092 = scalar_select %p1091, %s1088, 1
        %s1093 = smul.addr %s1090, 2
        %s1094 = sadd.s32 %s1092, %s1093
        %s1095 = smul.addr %s1094, 4
        %s1096 = scalar_lea.vmem %s3, %s1095
        // Predicated region
        $region164: #{transformer_net_forward.14} parent=142 // pred_check
          %p1097 = pneg %p137
        $region165: #{transformer_net_forward.14} parent=142 // pred_check_branch
          %1099 = sbr.rel (%p1097) target = $region167
        $region166: #{transformer_net_forward.14} parent=142 // pred_region
          %s1100 = smul.u32 2, %s20
        $region167: #{transformer_net_forward.14} parent=142 // pred_fallthru
          _
      $region143: #{transformer_net_forward.14} parent=5 // pred_fallthru
        _
      %p1101 = scmp.le.s32.totalorder 2, %s9
      // Predicated region
      $region168: #{transformer_net_forward.14} parent=5 // pred_check
        %p1102 = pneg %p1101
      $region169: #{transformer_net_forward.14} parent=5 // pred_check_branch
        %1104 = sbr.rel (%p1102) target = $region171
      $region170: #{transformer_net_forward.14} parent=5 // pred_region
        %s1105 = ssub.s32 %s9, 2
        // Predicated region
        $region172: #{transformer_net_forward.14} parent=170 // pred_check
          %p1106 = pneg %p143
        $region173: #{transformer_net_forward.14} parent=170 // pred_check_branch
          %1108 = sbr.rel (%p1106) target = $region175
        $region174: #{transformer_net_forward.14} parent=170 // pred_region
          %s1109 = smul.u32 2, %s23
          %p1110 = scmp.lt.s32.totalorder %s22, 1
          %s1111 = scalar_select %p1110, %s22, 1
          %p1112 = scmp.lt.s32.totalorder %s1109, 1
          %s1113 = scalar_select %p1112, %s1109, 1
          %s1114 = smul.addr %s1111, 2
          %s1115 = sadd.s32 %s1113, %s1114
          %s1116 = smul.addr %s1115, 4
          %s1117 = scalar_lea.vmem %s3, %s1116
        $region175: #{transformer_net_forward.14} parent=170 // pred_fallthru
          _
      $region171: #{transformer_net_forward.14} parent=5 // pred_fallthru
        _
    $region6: #{transformer_net_forward.14} parent=1 // loop_footer
      %s13 = sadd.s32 1, %s9
    $region7: #{transformer_net_forward.14} parent=1 // loop_footer_branch
      %8 = sbr.rel target = $region3
    $region8: #{transformer_net_forward.14} parent=1 // loop_exit
      _

// kernel: transformer_net_forward.17
$region0: #{transformer_net_forward.17}
  #allocation0 [shape = 'u32[]', space=smem, size = 0x4, offset = 0x4, fixed_abs, tag = 'smem constant byte address 0x4 - core index']
  #allocation1 [shape = 'u32[72,128]{1,0:T(1,128)}', space=vmem, size = 0x9000, scoped, tag = 'internal scratch']
  %s0 = inlined_call_operand.vmem [shape: bf16[32,512], index: 0, kind: input, shape index: {}]
  %s1 = inlined_call_operand.hbm [shape: bf16[512,128], index: 1, kind: input, shape index: {}]
  %s2 = inlined_call_operand.vmem [shape: bf16[1,128], index: 2, kind: input, shape index: {}]
  %s3 = inlined_call_operand.vmem [shape: bf16[32,128], index: 3, kind: input, shape index: {}]
  %s4 = inlined_call_operand.vmem [shape: bf16[1,128], index: 4, kind: input, shape index: {}]
  %s5 = inlined_call_operand.vmem [shape: bf16[1,128], index: 5, kind: input, shape index: {}]
  %s6 = inlined_call_operand.vmem [shape: bf16[32,128], index: 6, kind: output, shape index: {}]
  %s7 = sld [smem:[#allocation0]]
  $region38: #{transformer_net_forward.17} parent=0
    _
  %s9 = ssub.s32 1, %s7
  %s10 = scalar_select 0, %s9, %s7
  $region1: #{transformer_net_forward.17} parent=0
    #allocation2 [shape = 'u8[131072]{0}', space=vmem, size = 0x20000, scoped, tag = 'input window, operand 1, single buffered']
    #allocation3 [shape = 's32[1]{0}', space=sflag, size = 0x4, scoped, tag = 'scoped memory for transformer_net_forward.17']
    %11 = vsyncpa [#allocation3], 0
    // Predicated region
    $region2: #{transformer_net_forward.17} parent=1 // pred_check
      _
    $region3: #{transformer_net_forward.17} parent=1 // pred_check_branch
      %13 = sbr.rel (0) target = $region5
    $region4: #{transformer_net_forward.17} parent=1 // pred_region
      _
    $region5: #{transformer_net_forward.17} parent=1 // pred_fallthru
      _
    // Predicated region
    $region6: #{transformer_net_forward.17} parent=1 // pred_check
      _
    $region7: #{transformer_net_forward.17} parent=1 // pred_check_branch
      %15 = sbr.rel (0) target = $region9
    $region8: #{transformer_net_forward.17} parent=1 // pred_region
      %17 = vsyncadd [#allocation3], 0
      %s18 = sshll.u32 %s1, 4
      %s19 = int_to_ptr.hbm [resolvable:$true] %s18
      %s20 = sshll.u32 [#allocation2], 4
      %s21 = int_to_ptr.vmem [resolvable:$true] %s20
      %26 = dma.hbm_to_vmem [thread:$0]  %s19, 4096, %s21, [#allocation3], 64, 64, 4
    $region9: #{transformer_net_forward.17} parent=1 // pred_fallthru
      _
    // Predicated region
    $region10: #{transformer_net_forward.17} parent=1 // pred_check
      _
    $region11: #{transformer_net_forward.17} parent=1 // pred_check_branch
      %28 = sbr.rel (0) target = $region13
    $region12: #{transformer_net_forward.17} parent=1 // pred_region
      _
    $region13: #{transformer_net_forward.17} parent=1 // pred_fallthru
      _
    // Predicated region
    $region14: #{transformer_net_forward.17} parent=1 // pred_check
      _
    $region15: #{transformer_net_forward.17} parent=1 // pred_check_branch
      %30 = sbr.rel (0) target = $region17
    $region16: #{transformer_net_forward.17} parent=1 // pred_region
      _
    $region17: #{transformer_net_forward.17} parent=1 // pred_fallthru
      _
    // Predicated region
    $region18: #{transformer_net_forward.17} parent=1 // pred_check
      _
    $region19: #{transformer_net_forward.17} parent=1 // pred_check_branch
      %32 = sbr.rel (0) target = $region21
    $region20: #{transformer_net_forward.17} parent=1 // pred_region
      _
    $region21: #{transformer_net_forward.17} parent=1 // pred_fallthru
      _
    // Predicated region
    $region22: #{transformer_net_forward.17} parent=1 // pred_check
      _
    $region23: #{transformer_net_forward.17} parent=1 // pred_check_branch
      %34 = sbr.rel (0) target = $region25
    $region24: #{transformer_net_forward.17} parent=1 // pred_region
      _
    $region25: #{transformer_net_forward.17} parent=1 // pred_fallthru
      _
    // Predicated region
    $region26: #{transformer_net_forward.17} parent=1 // pred_check
      _
    $region27: #{transformer_net_forward.17} parent=1 // pred_check_branch
      %36 = sbr.rel (0) target = $region29
    $region28: #{transformer_net_forward.17} parent=1 // pred_region
      %38 = dma.done [#allocation3], 4096
    $region29: #{transformer_net_forward.17} parent=1 // pred_fallthru
      _
    %v39 = vld [vmem:[%s0] sm:$0xff]
    %v40 = vld [vmem:[%s0 + $0x8] sm:$0xff]
    %v41 = vld [vmem:[%s0 + $0x10] sm:$0xff]
    %v42 = vld [vmem:[%s0 + $0x18] sm:$0xff]
    %v43 = vld [vmem:[%s0 + $0x20] sm:$0xff]
    %v44 = vld [vmem:[%s0 + $0x28] sm:$0xff]
    %v45 = vld [vmem:[%s0 + $0x30] sm:$0xff]
    %v46 = vld [vmem:[%s0 + $0x38] sm:$0xff]
    %v47 = vld [vmem:[#allocation2] sm:$0xf]
    %v48 = vld [vmem:[#allocation2 + $0x4] sm:$0xf]
    %v49 = vld [vmem:[#allocation2 + $0x8] sm:$0xf]
    %v50 = vld [vmem:[#allocation2 + $0xc] sm:$0xf]
    %v51 = vld [vmem:[#allocation2 + $0x10] sm:$0xf]
    %v52 = vld [vmem:[#allocation2 + $0x14] sm:$0xf]
    %v53 = vld [vmem:[#allocation2 + $0x18] sm:$0xf]
    %v54 = vld [vmem:[#allocation2 + $0x1c] sm:$0xf]
    %v55 = vld [vmem:[#allocation2 + $0x20] sm:$0xf]
    %v56 = vld [vmem:[#allocation2 + $0x24] sm:$0xf]
    %v57 = vld [vmem:[#allocation2 + $0x28] sm:$0xf]
    %v58 = vld [vmem:[#allocation2 + $0x2c] sm:$0xf]
    %v59 = vld [vmem:[#allocation2 + $0x30] sm:$0xf]
    %v60 = vld [vmem:[#allocation2 + $0x34] sm:$0xf]
    %v61 = vld [vmem:[#allocation2 + $0x38] sm:$0xf]
    %v62 = vld [vmem:[#allocation2 + $0x3c] sm:$0xf]
    %v63 = vld [vmem:[#allocation2 + $0x40] sm:$0xf]
    %v64 = vld [vmem:[#allocation2 + $0x44] sm:$0xf]
    %v65 = vld [vmem:[#allocation2 + $0x48] sm:$0xf]
    %v66 = vld [vmem:[#allocation2 + $0x4c] sm:$0xf]
    %v67 = vld [vmem:[#allocation2 + $0x50] sm:$0xf]
    %v68 = vld [vmem:[#allocation2 + $0x54] sm:$0xf]
    %v69 = vld [vmem:[#allocation2 + $0x58] sm:$0xf]
    %v70 = vld [vmem:[#allocation2 + $0x5c] sm:$0xf]
    %v71 = vld [vmem:[#allocation2 + $0x60] sm:$0xf]
    %v72 = vld [vmem:[#allocation2 + $0x64] sm:$0xf]
    %v73 = vld [vmem:[#allocation2 + $0x68] sm:$0xf]
    %v74 = vld [vmem:[#allocation2 + $0x6c] sm:$0xf]
    %v75 = vld [vmem:[#allocation2 + $0x70] sm:$0xf]
    %v76 = vld [vmem:[#allocation2 + $0x74] sm:$0xf]
    %v77 = vld [vmem:[#allocation2 + $0x78] sm:$0xf]
    %v78 = vld [vmem:[#allocation2 + $0x7c] sm:$0xf]
    %v79 = vld [vmem:[#allocation2 + $0x80] sm:$0xf]
    %v80 = vld [vmem:[#allocation2 + $0x84] sm:$0xf]
    %v81 = vld [vmem:[#allocation2 + $0x88] sm:$0xf]
    %v82 = vld [vmem:[#allocation2 + $0x8c] sm:$0xf]
    %v83 = vld [vmem:[#allocation2 + $0x90] sm:$0xf]
    %v84 = vld [vmem:[#allocation2 + $0x94] sm:$0xf]
    %v85 = vld [vmem:[#allocation2 + $0x98] sm:$0xf]
    %v86 = vld [vmem:[#allocation2 + $0x9c] sm:$0xf]
    %v87 = vld [vmem:[#allocation2 + $0xa0] sm:$0xf]
    %v88 = vld [vmem:[#allocation2 + $0xa4] sm:$0xf]
    %v89 = vld [vmem:[#allocation2 + $0xa8] sm:$0xf]
    %v90 = vld [vmem:[#allocation2 + $0xac] sm:$0xf]
    %v91 = vld [vmem:[#allocation2 + $0xb0] sm:$0xf]
    %v92 = vld [vmem:[#allocation2 + $0xb4] sm:$0xf]
    %v93 = vld [vmem:[#allocation2 + $0xb8] sm:$0xf]
    %v94 = vld [vmem:[#allocation2 + $0xbc] sm:$0xf]
    %v95 = vld [vmem:[#allocation2 + $0xc0] sm:$0xf]
    %v96 = vld [vmem:[#allocation2 + $0xc4] sm:$0xf]
    %v97 = vld [vmem:[#allocation2 + $0xc8] sm:$0xf]
    %v98 = vld [vmem:[#allocation2 + $0xcc] sm:$0xf]
    %v99 = vld [vmem:[#allocation2 + $0xd0] sm:$0xf]
    %v100 = vld [vmem:[#allocation2 + $0xd4] sm:$0xf]
    %v101 = vld [vmem:[#allocation2 + $0xd8] sm:$0xf]
    %v102 = vld [vmem:[#allocation2 + $0xdc] sm:$0xf]
    %v103 = vld [vmem:[#allocation2 + $0xe0] sm:$0xf]
    %v104 = vld [vmem:[#allocation2 + $0xe4] sm:$0xf]
    %v105 = vld [vmem:[#allocation2 + $0xe8] sm:$0xf]
    %v106 = vld [vmem:[#allocation2 + $0xec] sm:$0xf]
    %v107 = vld [vmem:[#allocation2 + $0xf0] sm:$0xf]
    %v108 = vld [vmem:[#allocation2 + $0xf4] sm:$0xf]
    %v109 = vld [vmem:[#allocation2 + $0xf8] sm:$0xf]
    %v110 = vld [vmem:[#allocation2 + $0xfc] sm:$0xf]
    %v111 = vld [vmem:[%s2] sm:$0x1]
    %v112 = vunpack.c.l.bf16 %v111
    %v113 = vperm.slane %v112, 0
    %v122 = vunpack.c.l.b16 %v39
    %v123 = vunpack.c.h.b16 %v39
    %v124 = vunpack.c.l.b16 %v40
    %v125 = vunpack.c.h.b16 %v40
    %v126 = vunpack.c.l.b16 %v41
    %v127 = vunpack.c.h.b16 %v41
    %v128 = vunpack.c.l.b16 %v42
    %v129 = vunpack.c.h.b16 %v42
    %v130 = vunpack.c.l.b16 %v43
    %v131 = vunpack.c.h.b16 %v43
    %v132 = vunpack.c.l.b16 %v44
    %v133 = vunpack.c.h.b16 %v44
    %v134 = vunpack.c.l.b16 %v45
    %v135 = vunpack.c.h.b16 %v45
    %v136 = vunpack.c.l.b16 %v46
    %v137 = vunpack.c.h.b16 %v46
    %v138 = vpack.c.b16 %v126, %v122
    %v139 = vpack.c.b16 %v127, %v123
    %v140 = vpack.c.b16 %v128, %v124
    %v141 = vpack.c.b16 %v129, %v125
    %v142 = vpack.c.b16 %v134, %v130
    %v143 = vpack.c.b16 %v135, %v131
    %v144 = vpack.c.b16 %v136, %v132
    %v145 = vpack.c.b16 %v137, %v133
    %v218 = vunpack.c.l.b16 %v47
    %v219 = vunpack.c.l.b16 %v48
    %v220 = vunpack.c.l.b16 %v49
    %v221 = vunpack.c.l.b16 %v50
    %v222 = vunpack.c.l.b16 %v51
    %v223 = vunpack.c.l.b16 %v52
    %v224 = vunpack.c.l.b16 %v53
    %v225 = vunpack.c.l.b16 %v54
    %v226 = vunpack.c.l.b16 %v55
    %v227 = vunpack.c.l.b16 %v56
    %v228 = vunpack.c.l.b16 %v57
    %v229 = vunpack.c.l.b16 %v58
    %v230 = vunpack.c.l.b16 %v59
    %v231 = vunpack.c.l.b16 %v60
    %v232 = vunpack.c.l.b16 %v61
    %v233 = vunpack.c.l.b16 %v62
    %v234 = vunpack.c.l.b16 %v63
    %v235 = vunpack.c.l.b16 %v64
    %v236 = vunpack.c.l.b16 %v65
    %v237 = vunpack.c.l.b16 %v66
    %v238 = vunpack.c.l.b16 %v67
    %v239 = vunpack.c.l.b16 %v68
    %v240 = vunpack.c.l.b16 %v69
    %v241 = vunpack.c.l.b16 %v70
    %v242 = vunpack.c.l.b16 %v71
    %v243 = vunpack.c.l.b16 %v72
    %v244 = vunpack.c.l.b16 %v73
    %v245 = vunpack.c.l.b16 %v74
    %v246 = vunpack.c.l.b16 %v75
    %v247 = vunpack.c.l.b16 %v76
    %v248 = vunpack.c.l.b16 %v77
    %v249 = vunpack.c.l.b16 %v78
    %v250 = vunpack.c.l.b16 %v79
    %v251 = vunpack.c.l.b16 %v80
    %v252 = vunpack.c.l.b16 %v81
    %v253 = vunpack.c.l.b16 %v82
    %v254 = vunpack.c.l.b16 %v83
    %v255 = vunpack.c.l.b16 %v84
    %v256 = vunpack.c.l.b16 %v85
    %v257 = vunpack.c.l.b16 %v86
    %v258 = vunpack.c.l.b16 %v87
    %v259 = vunpack.c.l.b16 %v88
    %v260 = vunpack.c.l.b16 %v89
    %v261 = vunpack.c.l.b16 %v90
    %v262 = vunpack.c.l.b16 %v91
    %v263 = vunpack.c.l.b16 %v92
    %v264 = vunpack.c.l.b16 %v93
    %v265 = vunpack.c.l.b16 %v94
    %v266 = vunpack.c.l.b16 %v95
    %v267 = vunpack.c.l.b16 %v96
    %v268 = vunpack.c.l.b16 %v97
    %v269 = vunpack.c.l.b16 %v98
    %v270 = vunpack.c.l.b16 %v99
    %v271 = vunpack.c.l.b16 %v100
    %v272 = vunpack.c.l.b16 %v101
    %v273 = vunpack.c.l.b16 %v102
    %v274 = vunpack.c.l.b16 %v103
    %v275 = vunpack.c.l.b16 %v104
    %v276 = vunpack.c.l.b16 %v105
    %v277 = vunpack.c.l.b16 %v106
    %v278 = vunpack.c.l.b16 %v107
    %v279 = vunpack.c.l.b16 %v108
    %v280 = vunpack.c.l.b16 %v109
    %v281 = vunpack.c.l.b16 %v110
    %v282 = vpack.c.b16 %v219, %v218
    %v283 = vpack.c.b16 %v221, %v220
    %v284 = vpack.c.b16 %v223, %v222
    %v285 = vpack.c.b16 %v225, %v224
    %v286 = vpack.c.b16 %v227, %v226
    %v287 = vpack.c.b16 %v229, %v228
    %v288 = vpack.c.b16 %v231, %v230
    %v289 = vpack.c.b16 %v233, %v232
    %v290 = vpack.c.b16 %v235, %v234
    %v291 = vpack.c.b16 %v237, %v236
    %v292 = vpack.c.b16 %v239, %v238
    %v293 = vpack.c.b16 %v241, %v240
    %v294 = vpack.c.b16 %v243, %v242
    %v295 = vpack.c.b16 %v245, %v244
    %v296 = vpack.c.b16 %v247, %v246
    %v297 = vpack.c.b16 %v249, %v248
    %v298 = vpack.c.b16 %v251, %v250
    %v299 = vpack.c.b16 %v253, %v252
    %v300 = vpack.c.b16 %v255, %v254
    %v301 = vpack.c.b16 %v257, %v256
    %v302 = vpack.c.b16 %v259, %v258
    %v303 = vpack.c.b16 %v261, %v260
    %v304 = vpack.c.b16 %v263, %v262
    %v305 = vpack.c.b16 %v265, %v264
    %v306 = vpack.c.b16 %v267, %v266
    %v307 = vpack.c.b16 %v269, %v268
    %v308 = vpack.c.b16 %v271, %v270
    %v309 = vpack.c.b16 %v273, %v272
    %v310 = vpack.c.b16 %v275, %v274
    %v311 = vpack.c.b16 %v277, %v276
    %v312 = vpack.c.b16 %v279, %v278
    %v313 = vpack.c.b16 %v281, %v280
    %346 = vmatpush.bf16.msra.mxu0 %v289
    %347 = vmatpush.bf16.msra.mxu0 %v288
    %348 = vmatpush.bf16.msra.mxu0 %v287
    %349 = vmatpush.bf16.msra.mxu0 %v286
    %350 = vmatpush.bf16.msra.mxu0 %v285
    %351 = vmatpush.bf16.msra.mxu0 %v284
    %352 = vmatpush.bf16.msra.mxu0 %v283
    %353 = vmatpush.bf16.msra.mxu0 %v282
    %354 = vmatmul.bf16.gmra.mxu0 %v138
    %v355 = vpop.f32.mrf.mxu0
    %v356 = vadd.f32 %v113, %v355
    %v357 = vpop.f32.mrf.mxu0
    %v358 = vadd.f32 %v113, %v357
    %359 = vmatmul.bf16.gmra.mxu0 %v142
    %v360 = vpop.f32.mrf.mxu0
    %v361 = vadd.f32 %v113, %v360
    %v362 = vpop.f32.mrf.mxu0
    %v363 = vadd.f32 %v113, %v362
    %364 = vdwg.mxu0
    %365 = vmatpush.bf16.msra.mxu0 %v297
    %366 = vmatpush.bf16.msra.mxu0 %v296
    %367 = vmatpush.bf16.msra.mxu0 %v295
    %368 = vmatpush.bf16.msra.mxu0 %v294
    %369 = vmatpush.bf16.msra.mxu0 %v293
    %370 = vmatpush.bf16.msra.mxu0 %v292
    %371 = vmatpush.bf16.msra.mxu0 %v291
    %372 = vmatpush.bf16.msra.mxu0 %v290
    %373 = vmatmul.bf16.gmra.mxu0 %v139
    %v374 = vpop.f32.mrf.mxu0
    %v375 = vadd.f32 %v356, %v374
    %v376 = vpop.f32.mrf.mxu0
    %v377 = vadd.f32 %v358, %v376
    %378 = vmatmul.bf16.gmra.mxu0 %v143
    %v379 = vpop.f32.mrf.mxu0
    %v380 = vadd.f32 %v361, %v379
    %v381 = vpop.f32.mrf.mxu0
    %v382 = vadd.f32 %v363, %v381
    %383 = vdwg.mxu0
    %384 = vmatpush.bf16.msra.mxu0 %v305
    %385 = vmatpush.bf16.msra.mxu0 %v304
    %386 = vmatpush.bf16.msra.mxu0 %v303
    %387 = vmatpush.bf16.msra.mxu0 %v302
    %388 = vmatpush.bf16.msra.mxu0 %v301
    %389 = vmatpush.bf16.msra.mxu0 %v300
    %390 = vmatpush.bf16.msra.mxu0 %v299
    %391 = vmatpush.bf16.msra.mxu0 %v298
    %392 = vmatmul.bf16.gmra.mxu0 %v140
    %v393 = vpop.f32.mrf.mxu0
    %v394 = vadd.f32 %v375, %v393
    %v395 = vpop.f32.mrf.mxu0
    %v396 = vadd.f32 %v377, %v395
    %397 = vmatmul.bf16.gmra.mxu0 %v144
    %v398 = vpop.f32.mrf.mxu0
    %v399 = vadd.f32 %v380, %v398
    %v400 = vpop.f32.mrf.mxu0
    %v401 = vadd.f32 %v382, %v400
    %402 = vdwg.mxu0
    %403 = vmatpush.bf16.msra.mxu0 %v313
    %404 = vmatpush.bf16.msra.mxu0 %v312
    %405 = vmatpush.bf16.msra.mxu0 %v311
    %406 = vmatpush.bf16.msra.mxu0 %v310
    %407 = vmatpush.bf16.msra.mxu0 %v309
    %408 = vmatpush.bf16.msra.mxu0 %v308
    %409 = vmatpush.bf16.msra.mxu0 %v307
    %410 = vmatpush.bf16.msra.mxu0 %v306
    %411 = vmatmul.bf16.gmra.mxu0 %v141
    %v412 = vpop.f32.mrf.mxu0
    %v413 = vadd.f32 %v394, %v412
    %v414 = vpop.f32.mrf.mxu0
    %v415 = vadd.f32 %v396, %v414
    %416 = vmatmul.bf16.gmra.mxu0 %v145
    %v417 = vpop.f32.mrf.mxu0
    %v418 = vadd.f32 %v399, %v417
    %v419 = vpop.f32.mrf.mxu0
    %v420 = vadd.f32 %v401, %v419
    %421 = vdwg.mxu0
    %v422 = vld [vmem:[%s3] sm:$0xf]
    %v423 = vld [vmem:[%s3 + $0x4] sm:$0xf]
    %v424 = vld [vmem:[%s3 + $0x8] sm:$0xf]
    %v425 = vld [vmem:[%s3 + $0xc] sm:$0xf]
    %v426 = vunpack.c.l.bf16 %v422
    %v427 = vunpack.c.l.bf16 %v423
    %v428 = vunpack.c.l.bf16 %v424
    %v429 = vunpack.c.l.bf16 %v425
    %v430 = vadd.f32 %v413, %v426
    %v431 = vadd.f32 %v415, %v427
    %v432 = vadd.f32 %v418, %v428
    %v433 = vadd.f32 %v420, %v429
    %434 = vadd.xlane.f32.xlu0 %v430
    %v435 = vpop.xlane.xlu0 %434
    %436 = vadd.xlane.f32.xlu0 %v431
    %v437 = vpop.xlane.xlu0 %436
    %438 = vadd.xlane.f32.xlu0 %v432
    %v439 = vpop.xlane.xlu0 %438
    %440 = vadd.xlane.f32.xlu0 %v433
    %v441 = vpop.xlane.xlu0 %440
    %v442 = vrcp.pop 128.0
    %v443 = vmul.f32 128.0, %v442
    %v444 = vsub.f32 1.0, %v443
    %v445 = vmul.f32 %v442, %v444
    %v446 = vadd.f32 %v442, %v445
    %vm447 = vweird.f32 %v442
    %v448 = vsel %vm447, %v442, %v446
    %v449 = vmul.f32 %v435, %v448
    %v450 = vmul.f32 %v437, %v448
    %v451 = vmul.f32 %v439, %v448
    %v452 = vmul.f32 %v441, %v448
    %v453 = vsub.f32 %v430, %v449
    %v454 = vsub.f32 %v431, %v450
    %v455 = vsub.f32 %v432, %v451
    %v456 = vsub.f32 %v433, %v452
    %v457 = vmul.f32 %v453, %v453
    %v458 = vmul.f32 %v454, %v454
    %v459 = vmul.f32 %v455, %v455
    %v460 = vmul.f32 %v456, %v456
    %461 = vadd.xlane.f32.xlu0 %v457
    %v462 = vpop.xlane.xlu0 %461
    %463 = vadd.xlane.f32.xlu0 %v458
    %v464 = vpop.xlane.xlu0 %463
    %465 = vadd.xlane.f32.xlu0 %v459
    %v466 = vpop.xlane.xlu0 %465
    %467 = vadd.xlane.f32.xlu0 %v460
    %v468 = vpop.xlane.xlu0 %467
    %v469 = vmul.f32 %v462, %v448
    %v470 = vmul.f32 %v464, %v448
    %v471 = vmul.f32 %v466, %v448
    %v472 = vmul.f32 %v468, %v448
    %v473 = vadd.f32 %v469, 1e-05
    %v474 = vadd.f32 %v470, 1e-05
    %v475 = vadd.f32 %v471, 1e-05
    %v476 = vadd.f32 %v472, 1e-05
    %v477 = vrsqrt.pop %v473
    %v478 = vmul.f32 %v477, %v473
    %v479 = vmul.f32 %v478, %v477
    %v480 = vmul.f32 0.5, %v479
    %v481 = vsub.f32 1.5, %v480
    %v482 = vmul.f32 %v477, %v481
    %vm483 = vweird.f32 %v473
    %vm484 = vweird.f32 %v477
    %vm485 = vmor %vm483, %vm484
    %v486 = vsel %vm485, %v477, %v482
    %v487 = vrsqrt.pop %v474
    %v488 = vmul.f32 %v487, %v474
    %v489 = vmul.f32 %v488, %v487
    %v490 = vmul.f32 0.5, %v489
    %v491 = vsub.f32 1.5, %v490
    %v492 = vmul.f32 %v487, %v491
    %vm493 = vweird.f32 %v474
    %vm494 = vweird.f32 %v487
    %vm495 = vmor %vm493, %vm494
    %v496 = vsel %vm495, %v487, %v492
    %v497 = vrsqrt.pop %v475
    %v498 = vmul.f32 %v497, %v475
    %v499 = vmul.f32 %v498, %v497
    %v500 = vmul.f32 0.5, %v499
    %v501 = vsub.f32 1.5, %v500
    %v502 = vmul.f32 %v497, %v501
    %vm503 = vweird.f32 %v475
    %vm504 = vweird.f32 %v497
    %vm505 = vmor %vm503, %vm504
    %v506 = vsel %vm505, %v497, %v502
    %v507 = vrsqrt.pop %v476
    %v508 = vmul.f32 %v507, %v476
    %v509 = vmul.f32 %v508, %v507
    %v510 = vmul.f32 0.5, %v509
    %v511 = vsub.f32 1.5, %v510
    %v512 = vmul.f32 %v507, %v511
    %vm513 = vweird.f32 %v476
    %vm514 = vweird.f32 %v507
    %vm515 = vmor %vm513, %vm514
    %v516 = vsel %vm515, %v507, %v512
    %v517 = vmul.f32 %v453, %v486
    %v518 = vmul.f32 %v454, %v496
    %v519 = vmul.f32 %v455, %v506
    %v520 = vmul.f32 %v456, %v516
    %v521 = vld [vmem:[%s4] sm:$0x1]
    %v522 = vunpack.c.l.bf16 %v521
    %v523 = vperm.slane %v522, 0
    %v524 = vmul.f32 %v517, %v523
    %v525 = vmul.f32 %v518, %v523
    %v526 = vmul.f32 %v519, %v523
    %v527 = vmul.f32 %v520, %v523
    %v528 = vld [vmem:[%s5] sm:$0x1]
    %v529 = vunpack.c.l.bf16 %v528
    %v530 = vperm.slane %v529, 0
    %v531 = vadd.f32 %v524, %v530
    %v532 = vadd.f32 %v525, %v530
    %v533 = vadd.f32 %v526, %v530
    %v534 = vadd.f32 %v527, %v530
    %v535 = vpack.c.bf16 %v531, %v531
    %v536 = vpack.c.bf16 %v532, %v532
    %v537 = vpack.c.bf16 %v533, %v533
    %v538 = vpack.c.bf16 %v534, %v534
    %539 = vst [vmem:[%s6] sm:$0xf] %v535
    %540 = vst [vmem:[%s6 + $0x4] sm:$0xf] %v536
    %541 = vst [vmem:[%s6 + $0x8] sm:$0xf] %v537
    %542 = vst [vmem:[%s6 + $0xc] sm:$0xf] %v538
    // Predicated region
    $region30: #{transformer_net_forward.17} parent=1 // pred_check
      _
    $region31: #{transformer_net_forward.17} parent=1 // pred_check_branch
      %544 = sbr.rel (0) target = $region33
    $region32: #{transformer_net_forward.17} parent=1 // pred_region
      _
    $region33: #{transformer_net_forward.17} parent=1 // pred_fallthru
      _
    // Predicated region
    $region34: #{transformer_net_forward.17} parent=1 // pred_check
      _
    $region35: #{transformer_net_forward.17} parent=1 // pred_check_branch
      %546 = sbr.rel (0) target = $region37
    $region36: #{transformer_net_forward.17} parent=1 // pred_region
      _
    $region37: #{transformer_net_forward.17} parent=1 // pred_fallthru
      _
    %547 = vsyncpa [#allocation3], 1

// kernel: transformer_net_forward.23
$region0: #{transformer_net_forward.23}
  #allocation0 [shape = 'u32[]', space=smem, size = 0x4, offset = 0x4, fixed_abs, tag = 'smem constant byte address 0x4 - core index']
  #allocation1 [shape = 'u32[72,128]{1,0:T(1,128)}', space=vmem, size = 0x9000, scoped, tag = 'internal scratch']
  %s0 = inlined_call_operand.vmem [shape: bf16[32,128], index: 0, kind: input, shape index: {}]
  %s1 = inlined_call_operand.hbm [shape: bf16[128,128], index: 1, kind: input, shape index: {}]
  %s2 = inlined_call_operand.vmem [shape: bf16[1,128], index: 2, kind: input, shape index: {}]
  %s3 = inlined_call_operand.hbm [shape: bf16[32,128], index: 3, kind: output, shape index: {}]
  %s4 = sld [smem:[#allocation0]]
  $region26: #{transformer_net_forward.23} parent=0
    _
  %s6 = ssub.s32 1, %s4
  %s7 = scalar_select 0, %s6, %s4
  $region1: #{transformer_net_forward.23} parent=0
    #allocation2 [shape = 'u8[32768]{0}', space=vmem, size = 0x8000, scoped, tag = 'input window, operand 1, single buffered']
    #allocation3 [shape = 's32[1]{0}', space=sflag, size = 0x4, scoped, tag = 'scoped memory for transformer_net_forward.23']
    #allocation4 [shape = 's32[1]{0}', space=sflag, size = 0x4, scoped, tag = 'scoped memory for transformer_net_forward.23']
    #allocation5 [shape = 'u8[8192]{0}', space=vmem, size = 0x2000, scoped, tag = 'output window, operand 0, single buffered']
    %8 = vsyncpa [#allocation3], 0
    %9 = vsyncpa [#allocation4], 0
    // Predicated region
    $region2: #{transformer_net_forward.23} parent=1 // pred_check
      _
    $region3: #{transformer_net_forward.23} parent=1 // pred_check_branch
      %11 = sbr.rel (0) target = $region5
    $region4: #{transformer_net_forward.23} parent=1 // pred_region
      _
    $region5: #{transformer_net_forward.23} parent=1 // pred_fallthru
      _
    // Predicated region
    $region6: #{transformer_net_forward.23} parent=1 // pred_check
      _
    $region7: #{transformer_net_forward.23} parent=1 // pred_check_branch
      %13 = sbr.rel (0) target = $region9
    $region8: #{transformer_net_forward.23} parent=1 // pred_region
      %15 = vsyncadd [#allocation3], 0
      %s16 = sshll.u32 %s1, 4
      %s17 = int_to_ptr.hbm [resolvable:$true] %s16
      %s18 = sshll.u32 [#allocation2], 4
      %s19 = int_to_ptr.vmem [resolvable:$true] %s18
      %24 = dma.hbm_to_vmem [thread:$0]  %s17, 1024, %s19, [#allocation3], 64, 64, 4
    $region9: #{transformer_net_forward.23} parent=1 // pred_fallthru
      _
    // Predicated region
    $region10: #{transformer_net_forward.23} parent=1 // pred_check
      _
    $region11: #{transformer_net_forward.23} parent=1 // pred_check_branch
      %26 = sbr.rel (0) target = $region13
    $region12: #{transformer_net_forward.23} parent=1 // pred_region
      _
    $region13: #{transformer_net_forward.23} parent=1 // pred_fallthru
      _
    // Predicated region
    $region14: #{transformer_net_forward.23} parent=1 // pred_check
      _
    $region15: #{transformer_net_forward.23} parent=1 // pred_check_branch
      %28 = sbr.rel (0) target = $region17
    $region16: #{transformer_net_forward.23} parent=1 // pred_region
      %30 = dma.done [#allocation3], 1024
    $region17: #{transformer_net_forward.23} parent=1 // pred_fallthru
      _
    %v31 = vld [vmem:[%s0] sm:$0xf]
    %v32 = vld [vmem:[%s0 + $0x4] sm:$0xf]
    %v33 = vld [vmem:[%s0 + $0x8] sm:$0xf]
    %v34 = vld [vmem:[%s0 + $0xc] sm:$0xf]
    %v35 = vld [vmem:[#allocation2] sm:$0xf]
    %v36 = vld [vmem:[#allocation2 + $0x4] sm:$0xf]
    %v37 = vld [vmem:[#allocation2 + $0x8] sm:$0xf]
    %v38 = vld [vmem:[#allocation2 + $0xc] sm:$0xf]
    %v39 = vld [vmem:[#allocation2 + $0x10] sm:$0xf]
    %v40 = vld [vmem:[#allocation2 + $0x14] sm:$0xf]
    %v41 = vld [vmem:[#allocation2 + $0x18] sm:$0xf]
    %v42 = vld [vmem:[#allocation2 + $0x1c] sm:$0xf]
    %v43 = vld [vmem:[#allocation2 + $0x20] sm:$0xf]
    %v44 = vld [vmem:[#allocation2 + $0x24] sm:$0xf]
    %v45 = vld [vmem:[#allocation2 + $0x28] sm:$0xf]
    %v46 = vld [vmem:[#allocation2 + $0x2c] sm:$0xf]
    %v47 = vld [vmem:[#allocation2 + $0x30] sm:$0xf]
    %v48 = vld [vmem:[#allocation2 + $0x34] sm:$0xf]
    %v49 = vld [vmem:[#allocation2 + $0x38] sm:$0xf]
    %v50 = vld [vmem:[#allocation2 + $0x3c] sm:$0xf]
    %v51 = vld [vmem:[%s2] sm:$0x1]
    %v52 = vunpack.c.l.bf16 %v51
    %v53 = vperm.slane %v52, 0
    %v58 = vunpack.c.l.b16 %v31
    %v59 = vunpack.c.l.b16 %v32
    %v60 = vunpack.c.l.b16 %v33
    %v61 = vunpack.c.l.b16 %v34
    %v62 = vpack.c.b16 %v59, %v58
    %v63 = vpack.c.b16 %v61, %v60
    %v82 = vunpack.c.l.b16 %v35
    %v83 = vunpack.c.l.b16 %v36
    %v84 = vunpack.c.l.b16 %v37
    %v85 = vunpack.c.l.b16 %v38
    %v86 = vunpack.c.l.b16 %v39
    %v87 = vunpack.c.l.b16 %v40
    %v88 = vunpack.c.l.b16 %v41
    %v89 = vunpack.c.l.b16 %v42
    %v90 = vunpack.c.l.b16 %v43
    %v91 = vunpack.c.l.b16 %v44
    %v92 = vunpack.c.l.b16 %v45
    %v93 = vunpack.c.l.b16 %v46
    %v94 = vunpack.c.l.b16 %v47
    %v95 = vunpack.c.l.b16 %v48
    %v96 = vunpack.c.l.b16 %v49
    %v97 = vunpack.c.l.b16 %v50
    %v98 = vpack.c.b16 %v83, %v82
    %v99 = vpack.c.b16 %v85, %v84
    %v100 = vpack.c.b16 %v87, %v86
    %v101 = vpack.c.b16 %v89, %v88
    %v102 = vpack.c.b16 %v91, %v90
    %v103 = vpack.c.b16 %v93, %v92
    %v104 = vpack.c.b16 %v95, %v94
    %v105 = vpack.c.b16 %v97, %v96
    %114 = vmatpush.bf16.msra.mxu0 %v105
    %115 = vmatpush.bf16.msra.mxu0 %v104
    %116 = vmatpush.bf16.msra.mxu0 %v103
    %117 = vmatpush.bf16.msra.mxu0 %v102
    %118 = vmatpush.bf16.msra.mxu0 %v101
    %119 = vmatpush.bf16.msra.mxu0 %v100
    %120 = vmatpush.bf16.msra.mxu0 %v99
    %121 = vmatpush.bf16.msra.mxu0 %v98
    %122 = vmatmul.bf16.gmra.mxu0 %v62
    %v123 = vpop.f32.mrf.mxu0
    %v124 = vadd.f32 %v53, %v123
    %v125 = vpop.f32.mrf.mxu0
    %v126 = vadd.f32 %v53, %v125
    %127 = vmatmul.bf16.gmra.mxu0 %v63
    %v128 = vpop.f32.mrf.mxu0
    %v129 = vadd.f32 %v53, %v128
    %v130 = vpop.f32.mrf.mxu0
    %v131 = vadd.f32 %v53, %v130
    %132 = vdwg.mxu0
    %v133 = vpack.c.bf16 %v124, %v124
    %v134 = vpack.c.bf16 %v126, %v126
    %v135 = vpack.c.bf16 %v129, %v129
    %v136 = vpack.c.bf16 %v131, %v131
    %137 = vst [vmem:[#allocation5] sm:$0xf] %v133
    %138 = vst [vmem:[#allocation5 + $0x4] sm:$0xf] %v134
    %139 = vst [vmem:[#allocation5 + $0x8] sm:$0xf] %v135
    %140 = vst [vmem:[#allocation5 + $0xc] sm:$0xf] %v136
    // Predicated region
    $region18: #{transformer_net_forward.23} parent=1 // pred_check
      _
    $region19: #{transformer_net_forward.23} parent=1 // pred_check_branch
      %142 = sbr.rel (0) target = $region21
    $region20: #{transformer_net_forward.23} parent=1 // pred_region
      %144 = vsyncadd [#allocation4], 0
      %s145 = sshll.u32 [#allocation5], 4
      %s146 = int_to_ptr.vmem [resolvable:$true] %s145
      %s147 = sshll.u32 %s3, 4
      %s148 = int_to_ptr.hbm [resolvable:$true] %s147
      %153 = dma.vmem_to_hbm [thread:$0]  %s146, 256, %s148, [#allocation4], 64, 64, 4
    $region21: #{transformer_net_forward.23} parent=1 // pred_fallthru
      _
    // Predicated region
    $region22: #{transformer_net_forward.23} parent=1 // pred_check
      _
    $region23: #{transformer_net_forward.23} parent=1 // pred_check_branch
      %155 = sbr.rel (0) target = $region25
    $region24: #{transformer_net_forward.23} parent=1 // pred_region
      %157 = dma.done [#allocation4], 256
    $region25: #{transformer_net_forward.23} parent=1 // pred_fallthru
      _
    %158 = vsyncpa [#allocation3], 1
    %159 = vsyncpa [#allocation4], 1

// kernel: transformer_net_forward.21
$region0: #{transformer_net_forward.21}
  #allocation0 [shape = 'u32[]', space=smem, size = 0x4, offset = 0x4, fixed_abs, tag = 'smem constant byte address 0x4 - core index']
  #allocation1 [shape = 'u32[72,128]{1,0:T(1,128)}', space=vmem, size = 0x9000, scoped, tag = 'internal scratch']
  %s0 = inlined_call_operand.vmem [shape: bf16[32,128], index: 0, kind: input, shape index: {}]
  %s1 = inlined_call_operand.hbm [shape: bf16[128,512], index: 1, kind: input, shape index: {}]
  %s2 = inlined_call_operand.vmem [shape: bf16[1,512], index: 2, kind: input, shape index: {}]
  %s3 = inlined_call_operand.vmem [shape: bf16[32,512], index: 3, kind: output, shape index: {}]
  %s4 = sld [smem:[#allocation0]]
  $region26: #{transformer_net_forward.21} parent=0
    _
  %s6 = ssub.s32 1, %s4
  %s7 = scalar_select 0, %s6, %s4
  $region1: #{transformer_net_forward.21} parent=0
    #allocation2 [shape = 'u8[131072]{0}', space=vmem, size = 0x20000, scoped, tag = 'input window, operand 1, single buffered']
    #allocation3 [shape = 's32[1]{0}', space=sflag, size = 0x4, scoped, tag = 'scoped memory for transformer_net_forward.21']
    %8 = vsyncpa [#allocation3], 0
    // Predicated region
    $region2: #{transformer_net_forward.21} parent=1 // pred_check
      _
    $region3: #{transformer_net_forward.21} parent=1 // pred_check_branch
      %10 = sbr.rel (0) target = $region5
    $region4: #{transformer_net_forward.21} parent=1 // pred_region
      _
    $region5: #{transformer_net_forward.21} parent=1 // pred_fallthru
      _
    // Predicated region
    $region6: #{transformer_net_forward.21} parent=1 // pred_check
      _
    $region7: #{transformer_net_forward.21} parent=1 // pred_check_branch
      %12 = sbr.rel (0) target = $region9
    $region8: #{transformer_net_forward.21} parent=1 // pred_region
      %14 = vsyncadd [#allocation3], 0
      %s15 = sshll.u32 %s1, 4
      %s16 = int_to_ptr.hbm [resolvable:$true] %s15
      %s17 = sshll.u32 [#allocation2], 4
      %s18 = int_to_ptr.vmem [resolvable:$true] %s17
      %23 = dma.hbm_to_vmem [thread:$0]  %s16, 4096, %s18, [#allocation3], 256, 256, 16
    $region9: #{transformer_net_forward.21} parent=1 // pred_fallthru
      _
    // Predicated region
    $region10: #{transformer_net_forward.21} parent=1 // pred_check
      _
    $region11: #{transformer_net_forward.21} parent=1 // pred_check_branch
      %25 = sbr.rel (0) target = $region13
    $region12: #{transformer_net_forward.21} parent=1 // pred_region
      _
    $region13: #{transformer_net_forward.21} parent=1 // pred_fallthru
      _
    // Predicated region
    $region14: #{transformer_net_forward.21} parent=1 // pred_check
      _
    $region15: #{transformer_net_forward.21} parent=1 // pred_check_branch
      %27 = sbr.rel (0) target = $region17
    $region16: #{transformer_net_forward.21} parent=1 // pred_region
      %29 = dma.done [#allocation3], 4096
    $region17: #{transformer_net_forward.21} parent=1 // pred_fallthru
      _
    %v30 = vld [vmem:[%s0] sm:$0xf]
    %v31 = vld [vmem:[%s0 + $0x4] sm:$0xf]
    %v32 = vld [vmem:[%s0 + $0x8] sm:$0xf]
    %v33 = vld [vmem:[%s0 + $0xc] sm:$0xf]
    %v34 = vld [vmem:[#allocation2] sm:$0xff]
    %v35 = vld [vmem:[#allocation2 + $0x8] sm:$0xff]
    %v36 = vld [vmem:[#allocation2 + $0x10] sm:$0xff]
    %v37 = vld [vmem:[#allocation2 + $0x18] sm:$0xff]
    %v38 = vld [vmem:[#allocation2 + $0x20] sm:$0xff]
    %v39 = vld [vmem:[#allocation2 + $0x28] sm:$0xff]
    %v40 = vld [vmem:[#allocation2 + $0x30] sm:$0xff]
    %v41 = vld [vmem:[#allocation2 + $0x38] sm:$0xff]
    %v42 = vld [vmem:[#allocation2 + $0x40] sm:$0xff]
    %v43 = vld [vmem:[#allocation2 + $0x48] sm:$0xff]
    %v44 = vld [vmem:[#allocation2 + $0x50] sm:$0xff]
    %v45 = vld [vmem:[#allocation2 + $0x58] sm:$0xff]
    %v46 = vld [vmem:[#allocation2 + $0x60] sm:$0xff]
    %v47 = vld [vmem:[#allocation2 + $0x68] sm:$0xff]
    %v48 = vld [vmem:[#allocation2 + $0x70] sm:$0xff]
    %v49 = vld [vmem:[#allocation2 + $0x78] sm:$0xff]
    %v50 = vld [vmem:[#allocation2 + $0x80] sm:$0xff]
    %v51 = vld [vmem:[#allocation2 + $0x88] sm:$0xff]
    %v52 = vld [vmem:[#allocation2 + $0x90] sm:$0xff]
    %v53 = vld [vmem:[#allocation2 + $0x98] sm:$0xff]
    %v54 = vld [vmem:[#allocation2 + $0xa0] sm:$0xff]
    %v55 = vld [vmem:[#allocation2 + $0xa8] sm:$0xff]
    %v56 = vld [vmem:[#allocation2 + $0xb0] sm:$0xff]
    %v57 = vld [vmem:[#allocation2 + $0xb8] sm:$0xff]
    %v58 = vld [vmem:[#allocation2 + $0xc0] sm:$0xff]
    %v59 = vld [vmem:[#allocation2 + $0xc8] sm:$0xff]
    %v60 = vld [vmem:[#allocation2 + $0xd0] sm:$0xff]
    %v61 = vld [vmem:[#allocation2 + $0xd8] sm:$0xff]
    %v62 = vld [vmem:[#allocation2 + $0xe0] sm:$0xff]
    %v63 = vld [vmem:[#allocation2 + $0xe8] sm:$0xff]
    %v64 = vld [vmem:[#allocation2 + $0xf0] sm:$0xff]
    %v65 = vld [vmem:[#allocation2 + $0xf8] sm:$0xff]
    %v66 = vld [vmem:[%s2] sm:$0xf]
    %v67 = vunpack.c.l.bf16 %v66
    %v69 = vperm.slane %v67, 0
    %v70 = vperm.slane %v67, 2
    %v71 = vperm.slane %v67, 4
    %v72 = vperm.slane %v67, 6
    %v77 = vperm.slane %v69, 0
    %v78 = vperm.slane %v70, 0
    %v79 = vperm.slane %v71, 0
    %v80 = vperm.slane %v72, 0
    %v85 = vunpack.c.l.b16 %v30
    %v86 = vunpack.c.l.b16 %v31
    %v87 = vunpack.c.l.b16 %v32
    %v88 = vunpack.c.l.b16 %v33
    %v89 = vpack.c.b16 %v86, %v85
    %v90 = vpack.c.b16 %v88, %v87
    %v125 = vunpack.c.l.b16 %v34
    %v126 = vunpack.c.h.b16 %v34
    %v127 = vunpack.c.l.b16 %v35
    %v128 = vunpack.c.h.b16 %v35
    %v129 = vunpack.c.l.b16 %v36
    %v130 = vunpack.c.h.b16 %v36
    %v131 = vunpack.c.l.b16 %v37
    %v132 = vunpack.c.h.b16 %v37
    %v133 = vunpack.c.l.b16 %v38
    %v134 = vunpack.c.h.b16 %v38
    %v135 = vunpack.c.l.b16 %v39
    %v136 = vunpack.c.h.b16 %v39
    %v137 = vunpack.c.l.b16 %v40
    %v138 = vunpack.c.h.b16 %v40
    %v139 = vunpack.c.l.b16 %v41
    %v140 = vunpack.c.h.b16 %v41
    %v141 = vunpack.c.l.b16 %v42
    %v142 = vunpack.c.h.b16 %v42
    %v143 = vunpack.c.l.b16 %v43
    %v144 = vunpack.c.h.b16 %v43
    %v145 = vunpack.c.l.b16 %v44
    %v146 = vunpack.c.h.b16 %v44
    %v147 = vunpack.c.l.b16 %v45
    %v148 = vunpack.c.h.b16 %v45
    %v149 = vunpack.c.l.b16 %v46
    %v150 = vunpack.c.h.b16 %v46
    %v151 = vunpack.c.l.b16 %v47
    %v152 = vunpack.c.h.b16 %v47
    %v153 = vunpack.c.l.b16 %v48
    %v154 = vunpack.c.h.b16 %v48
    %v155 = vunpack.c.l.b16 %v49
    %v156 = vunpack.c.h.b16 %v49
    %v157 = vunpack.c.l.b16 %v50
    %v158 = vunpack.c.h.b16 %v50
    %v159 = vunpack.c.l.b16 %v51
    %v160 = vunpack.c.h.b16 %v51
    %v161 = vunpack.c.l.b16 %v52
    %v162 = vunpack.c.h.b16 %v52
    %v163 = vunpack.c.l.b16 %v53
    %v164 = vunpack.c.h.b16 %v53
    %v165 = vunpack.c.l.b16 %v54
    %v166 = vunpack.c.h.b16 %v54
    %v167 = vunpack.c.l.b16 %v55
    %v168 = vunpack.c.h.b16 %v55
    %v169 = vunpack.c.l.b16 %v56
    %v170 = vunpack.c.h.b16 %v56
    %v171 = vunpack.c.l.b16 %v57
    %v172 = vunpack.c.h.b16 %v57
    %v173 = vunpack.c.l.b16 %v58
    %v174 = vunpack.c.h.b16 %v58
    %v175 = vunpack.c.l.b16 %v59
    %v176 = vunpack.c.h.b16 %v59
    %v177 = vunpack.c.l.b16 %v60
    %v178 = vunpack.c.h.b16 %v60
    %v179 = vunpack.c.l.b16 %v61
    %v180 = vunpack.c.h.b16 %v61
    %v181 = vunpack.c.l.b16 %v62
    %v182 = vunpack.c.h.b16 %v62
    %v183 = vunpack.c.l.b16 %v63
    %v184 = vunpack.c.h.b16 %v63
    %v185 = vunpack.c.l.b16 %v64
    %v186 = vunpack.c.h.b16 %v64
    %v187 = vunpack.c.l.b16 %v65
    %v188 = vunpack.c.h.b16 %v65
    %v189 = vpack.c.b16 %v129, %v125
    %v190 = vpack.c.b16 %v130, %v126
    %v191 = vpack.c.b16 %v131, %v127
    %v192 = vpack.c.b16 %v132, %v128
    %v193 = vpack.c.b16 %v137, %v133
    %v194 = vpack.c.b16 %v138, %v134
    %v195 = vpack.c.b16 %v139, %v135
    %v196 = vpack.c.b16 %v140, %v136
    %v197 = vpack.c.b16 %v145, %v141
    %v198 = vpack.c.b16 %v146, %v142
    %v199 = vpack.c.b16 %v147, %v143
    %v200 = vpack.c.b16 %v148, %v144
    %v201 = vpack.c.b16 %v153, %v149
    %v202 = vpack.c.b16 %v154, %v150
    %v203 = vpack.c.b16 %v155, %v151
    %v204 = vpack.c.b16 %v156, %v152
    %v205 = vpack.c.b16 %v161, %v157
    %v206 = vpack.c.b16 %v162, %v158
    %v207 = vpack.c.b16 %v163, %v159
    %v208 = vpack.c.b16 %v164, %v160
    %v209 = vpack.c.b16 %v169, %v165
    %v210 = vpack.c.b16 %v170, %v166
    %v211 = vpack.c.b16 %v171, %v167
    %v212 = vpack.c.b16 %v172, %v168
    %v213 = vpack.c.b16 %v177, %v173
    %v214 = vpack.c.b16 %v178, %v174
    %v215 = vpack.c.b16 %v179, %v175
    %v216 = vpack.c.b16 %v180, %v176
    %v217 = vpack.c.b16 %v185, %v181
    %v218 = vpack.c.b16 %v186, %v182
    %v219 = vpack.c.b16 %v187, %v183
    %v220 = vpack.c.b16 %v188, %v184
    %253 = vmatpush.bf16.msra.mxu0 %v217
    %254 = vmatpush.bf16.msra.mxu0 %v213
    %255 = vmatpush.bf16.msra.mxu0 %v209
    %256 = vmatpush.bf16.msra.mxu0 %v205
    %257 = vmatpush.bf16.msra.mxu0 %v201
    %258 = vmatpush.bf16.msra.mxu0 %v197
    %259 = vmatpush.bf16.msra.mxu0 %v193
    %260 = vmatpush.bf16.msra.mxu0 %v189
    %261 = vmatmul.bf16.gmra.mxu0 %v89
    %v262 = vpop.f32.mrf.mxu0
    %v263 = vadd.f32 %v77, %v262
    %v264 = vpop.f32.mrf.mxu0
    %v265 = vadd.f32 %v77, %v264
    %266 = vmatmul.bf16.gmra.mxu0 %v90
    %v267 = vpop.f32.mrf.mxu0
    %v268 = vadd.f32 %v77, %v267
    %v269 = vpop.f32.mrf.mxu0
    %v270 = vadd.f32 %v77, %v269
    %271 = vdwg.mxu0
    %272 = vmatpush.bf16.msra.mxu0 %v218
    %273 = vmatpush.bf16.msra.mxu0 %v214
    %274 = vmatpush.bf16.msra.mxu0 %v210
    %275 = vmatpush.bf16.msra.mxu0 %v206
    %276 = vmatpush.bf16.msra.mxu0 %v202
    %277 = vmatpush.bf16.msra.mxu0 %v198
    %278 = vmatpush.bf16.msra.mxu0 %v194
    %279 = vmatpush.bf16.msra.mxu0 %v190
    %280 = vmatmul.bf16.gmra.mxu0 %v89
    %v281 = vpop.f32.mrf.mxu0
    %v282 = vadd.f32 %v78, %v281
    %v283 = vpop.f32.mrf.mxu0
    %v284 = vadd.f32 %v78, %v283
    %285 = vmatmul.bf16.gmra.mxu0 %v90
    %v286 = vpop.f32.mrf.mxu0
    %v287 = vadd.f32 %v78, %v286
    %v288 = vpop.f32.mrf.mxu0
    %v289 = vadd.f32 %v78, %v288
    %290 = vdwg.mxu0
    %291 = vmatpush.bf16.msra.mxu0 %v219
    %292 = vmatpush.bf16.msra.mxu0 %v215
    %293 = vmatpush.bf16.msra.mxu0 %v211
    %294 = vmatpush.bf16.msra.mxu0 %v207
    %295 = vmatpush.bf16.msra.mxu0 %v203
    %296 = vmatpush.bf16.msra.mxu0 %v199
    %297 = vmatpush.bf16.msra.mxu0 %v195
    %298 = vmatpush.bf16.msra.mxu0 %v191
    %299 = vmatmul.bf16.gmra.mxu0 %v89
    %v300 = vpop.f32.mrf.mxu0
    %v301 = vadd.f32 %v79, %v300
    %v302 = vpop.f32.mrf.mxu0
    %v303 = vadd.f32 %v79, %v302
    %304 = vmatmul.bf16.gmra.mxu0 %v90
    %v305 = vpop.f32.mrf.mxu0
    %v306 = vadd.f32 %v79, %v305
    %v307 = vpop.f32.mrf.mxu0
    %v308 = vadd.f32 %v79, %v307
    %309 = vdwg.mxu0
    %310 = vmatpush.bf16.msra.mxu0 %v220
    %311 = vmatpush.bf16.msra.mxu0 %v216
    %312 = vmatpush.bf16.msra.mxu0 %v212
    %313 = vmatpush.bf16.msra.mxu0 %v208
    %314 = vmatpush.bf16.msra.mxu0 %v204
    %315 = vmatpush.bf16.msra.mxu0 %v200
    %316 = vmatpush.bf16.msra.mxu0 %v196
    %317 = vmatpush.bf16.msra.mxu0 %v192
    %318 = vmatmul.bf16.gmra.mxu0 %v89
    %v319 = vpop.f32.mrf.mxu0
    %v320 = vadd.f32 %v80, %v319
    %v321 = vpop.f32.mrf.mxu0
    %v322 = vadd.f32 %v80, %v321
    %323 = vmatmul.bf16.gmra.mxu0 %v90
    %v324 = vpop.f32.mrf.mxu0
    %v325 = vadd.f32 %v80, %v324
    %v326 = vpop.f32.mrf.mxu0
    %v327 = vadd.f32 %v80, %v326
    %328 = vdwg.mxu0
    %v329 = vmul.f32 %v263, %v263
    %v330 = vmul.f32 %v282, %v282
    %v331 = vmul.f32 %v301, %v301
    %v332 = vmul.f32 %v320, %v320
    %v333 = vmul.f32 %v265, %v265
    %v334 = vmul.f32 %v284, %v284
    %v335 = vmul.f32 %v303, %v303
    %v336 = vmul.f32 %v322, %v322
    %v337 = vmul.f32 %v268, %v268
    %v338 = vmul.f32 %v287, %v287
    %v339 = vmul.f32 %v306, %v306
    %v340 = vmul.f32 %v325, %v325
    %v341 = vmul.f32 %v270, %v270
    %v342 = vmul.f32 %v289, %v289
    %v343 = vmul.f32 %v308, %v308
    %v344 = vmul.f32 %v327, %v327
    %v345 = vmul.f32 %v263, %v329
    %v346 = vmul.f32 %v282, %v330
    %v347 = vmul.f32 %v301, %v331
    %v348 = vmul.f32 %v320, %v332
    %v349 = vmul.f32 %v265, %v333
    %v350 = vmul.f32 %v284, %v334
    %v351 = vmul.f32 %v303, %v335
    %v352 = vmul.f32 %v322, %v336
    %v353 = vmul.f32 %v268, %v337
    %v354 = vmul.f32 %v287, %v338
    %v355 = vmul.f32 %v306, %v339
    %v356 = vmul.f32 %v325, %v340
    %v357 = vmul.f32 %v270, %v341
    %v358 = vmul.f32 %v289, %v342
    %v359 = vmul.f32 %v308, %v343
    %v360 = vmul.f32 %v327, %v344
    %v361 = vmul.f32 %v345, 0.044715
    %v362 = vmul.f32 %v346, 0.044715
    %v363 = vmul.f32 %v347, 0.044715
    %v364 = vmul.f32 %v348, 0.044715
    %v365 = vmul.f32 %v349, 0.044715
    %v366 = vmul.f32 %v350, 0.044715
    %v367 = vmul.f32 %v351, 0.044715
    %v368 = vmul.f32 %v352, 0.044715
    %v369 = vmul.f32 %v353, 0.044715
    %v370 = vmul.f32 %v354, 0.044715
    %v371 = vmul.f32 %v355, 0.044715
    %v372 = vmul.f32 %v356, 0.044715
    %v373 = vmul.f32 %v357, 0.044715
    %v374 = vmul.f32 %v358, 0.044715
    %v375 = vmul.f32 %v359, 0.044715
    %v376 = vmul.f32 %v360, 0.044715
    %v377 = vadd.f32 %v263, %v361
    %v378 = vadd.f32 %v282, %v362
    %v379 = vadd.f32 %v301, %v363
    %v380 = vadd.f32 %v320, %v364
    %v381 = vadd.f32 %v265, %v365
    %v382 = vadd.f32 %v284, %v366
    %v383 = vadd.f32 %v303, %v367
    %v384 = vadd.f32 %v322, %v368
    %v385 = vadd.f32 %v268, %v369
    %v386 = vadd.f32 %v287, %v370
    %v387 = vadd.f32 %v306, %v371
    %v388 = vadd.f32 %v325, %v372
    %v389 = vadd.f32 %v270, %v373
    %v390 = vadd.f32 %v289, %v374
    %v391 = vadd.f32 %v308, %v375
    %v392 = vadd.f32 %v327, %v376
    %v393 = vmul.f32 %v377, 0.7978846
    %v394 = vmul.f32 %v378, 0.7978846
    %v395 = vmul.f32 %v379, 0.7978846
    %v396 = vmul.f32 %v380, 0.7978846
    %v397 = vmul.f32 %v381, 0.7978846
    %v398 = vmul.f32 %v382, 0.7978846
    %v399 = vmul.f32 %v383, 0.7978846
    %v400 = vmul.f32 %v384, 0.7978846
    %v401 = vmul.f32 %v385, 0.7978846
    %v402 = vmul.f32 %v386, 0.7978846
    %v403 = vmul.f32 %v387, 0.7978846
    %v404 = vmul.f32 %v388, 0.7978846
    %v405 = vmul.f32 %v389, 0.7978846
    %v406 = vmul.f32 %v390, 0.7978846
    %v407 = vmul.f32 %v391, 0.7978846
    %v408 = vmul.f32 %v392, 0.7978846
    %v409 = vtanh.pop %v393
    %v410 = vtanh.pop %v394
    %v411 = vtanh.pop %v395
    %v412 = vtanh.pop %v396
    %v413 = vtanh.pop %v397
    %v414 = vtanh.pop %v398
    %v415 = vtanh.pop %v399
    %v416 = vtanh.pop %v400
    %v417 = vtanh.pop %v401
    %v418 = vtanh.pop %v402
    %v419 = vtanh.pop %v403
    %v420 = vtanh.pop %v404
    %v421 = vtanh.pop %v405
    %v422 = vtanh.pop %v406
    %v423 = vtanh.pop %v407
    %v424 = vtanh.pop %v408
    %v425 = vadd.f32 %v409, 1.0
    %v426 = vadd.f32 %v410, 1.0
    %v427 = vadd.f32 %v411, 1.0
    %v428 = vadd.f32 %v412, 1.0
    %v429 = vadd.f32 %v413, 1.0
    %v430 = vadd.f32 %v414, 1.0
    %v431 = vadd.f32 %v415, 1.0
    %v432 = vadd.f32 %v416, 1.0
    %v433 = vadd.f32 %v417, 1.0
    %v434 = vadd.f32 %v418, 1.0
    %v435 = vadd.f32 %v419, 1.0
    %v436 = vadd.f32 %v420, 1.0
    %v437 = vadd.f32 %v421, 1.0
    %v438 = vadd.f32 %v422, 1.0
    %v439 = vadd.f32 %v423, 1.0
    %v440 = vadd.f32 %v424, 1.0
    %v441 = vmul.f32 %v425, 0.5
    %v442 = vmul.f32 %v426, 0.5
    %v443 = vmul.f32 %v427, 0.5
    %v444 = vmul.f32 %v428, 0.5
    %v445 = vmul.f32 %v429, 0.5
    %v446 = vmul.f32 %v430, 0.5
    %v447 = vmul.f32 %v431, 0.5
    %v448 = vmul.f32 %v432, 0.5
    %v449 = vmul.f32 %v433, 0.5
    %v450 = vmul.f32 %v434, 0.5
    %v451 = vmul.f32 %v435, 0.5
    %v452 = vmul.f32 %v436, 0.5
    %v453 = vmul.f32 %v437, 0.5
    %v454 = vmul.f32 %v438, 0.5
    %v455 = vmul.f32 %v439, 0.5
    %v456 = vmul.f32 %v440, 0.5
    %v457 = vmul.f32 %v263, %v441
    %v458 = vmul.f32 %v282, %v442
    %v459 = vmul.f32 %v301, %v443
    %v460 = vmul.f32 %v320, %v444
    %v461 = vmul.f32 %v265, %v445
    %v462 = vmul.f32 %v284, %v446
    %v463 = vmul.f32 %v303, %v447
    %v464 = vmul.f32 %v322, %v448
    %v465 = vmul.f32 %v268, %v449
    %v466 = vmul.f32 %v287, %v450
    %v467 = vmul.f32 %v306, %v451
    %v468 = vmul.f32 %v325, %v452
    %v469 = vmul.f32 %v270, %v453
    %v470 = vmul.f32 %v289, %v454
    %v471 = vmul.f32 %v308, %v455
    %v472 = vmul.f32 %v327, %v456
    %v473 = vpack.c.bf16 %v458, %v457
    %v474 = vpack.c.bf16 %v460, %v459
    %v475 = vpack.c.bf16 %v462, %v461
    %v476 = vpack.c.bf16 %v464, %v463
    %v477 = vpack.c.bf16 %v466, %v465
    %v478 = vpack.c.bf16 %v468, %v467
    %v479 = vpack.c.bf16 %v470, %v469
    %v480 = vpack.c.bf16 %v472, %v471
    %481 = vst [vmem:[%s3] sm:$0xff] %v473
    %482 = vst [vmem:[%s3 + $0x8] sm:$0xff] %v474
    %483 = vst [vmem:[%s3 + $0x10] sm:$0xff] %v475
    %484 = vst [vmem:[%s3 + $0x18] sm:$0xff] %v476
    %485 = vst [vmem:[%s3 + $0x20] sm:$0xff] %v477
    %486 = vst [vmem:[%s3 + $0x28] sm:$0xff] %v478
    %487 = vst [vmem:[%s3 + $0x30] sm:$0xff] %v479
    %488 = vst [vmem:[%s3 + $0x38] sm:$0xff] %v480
    // Predicated region
    $region18: #{transformer_net_forward.21} parent=1 // pred_check
      _
    $region19: #{transformer_net_forward.21} parent=1 // pred_check_branch
      %490 = sbr.rel (0) target = $region21
    $region20: #{transformer_net_forward.21} parent=1 // pred_region
      _
    $region21: #{transformer_net_forward.21} parent=1 // pred_fallthru
      _
    // Predicated region
    $region22: #{transformer_net_forward.21} parent=1 // pred_check
      _
    $region23: #{transformer_net_forward.21} parent=1 // pred_check_branch
      %492 = sbr.rel (0) target = $region25
    $region24: #{transformer_net_forward.21} parent=1 // pred_region
      _
    $region25: #{transformer_net_forward.21} parent=1 // pred_fallthru
      _
    %493 = vsyncpa [#allocation3], 1

</llo_original>
